<compile_context>
chip_gen: v5e
topology: v5e:2x2
jax: 0.10.0
libtpu: 0.0.40
codegen_flags: <defaults>
</compile_context>

<pallas_src>
import functools

import jax
import jax.numpy as jnp
from jax import lax
from jax.experimental import pallas as pl
from jax.experimental.pallas import tpu as pltpu

_VMEM_LIMIT_BYTES = 64 * 1024 * 1024


def _pick_spatial_tile(hw, max_t=2048):
    """Largest tile T dividing hw with T <= max_t, preferring multiples of 128."""
    if hw <= max_t:
        return hw
    for t in range(max_t - max_t % 128, 0, -128):
        if hw % t == 0:
            return t
    for t in range(max_t, 0, -1):
        if hw % t == 0:
            return t
    return hw


# ---------------------------------------------------------------------------
# Fused (conv-as-matmul) + folded-BN + SiLU (+ optional residual add) kernel.
# ---------------------------------------------------------------------------
def _conv_bn_silu_kernel(*refs, add):
    if add:
        x_ref, w_ref, s_ref, b_ref, r_ref, o_ref = refs
    else:
        x_ref, w_ref, s_ref, b_ref, o_ref = refs
        r_ref = None
    x = x_ref[0, :, :]                 # (K, T)    lane-dense activations
    w = w_ref[...]                     # (Cout, K) conv weight (1x1 or im2col'd 3x3)
    acc = jnp.dot(w, x, preferred_element_type=jnp.float32)    # MXU, (Cout, T)
    y = acc * s_ref[...] + b_ref[...]                          # folded BatchNorm
    y = y * (1.0 / (1.0 + jnp.exp(-y)))                        # SiLU
    if add:
        y = y + r_ref[0, :, :].astype(jnp.float32)             # Bottleneck shortcut
    o_ref[0, :, :] = y.astype(o_ref.dtype)


def _conv_bn_silu(x, w2d, scale, bias, residual=None):
    """x: (N, K, HW); w2d: (Cout, K); scale/bias: (Cout,). Returns (N, Cout, HW)."""
    n, k, hw = x.shape
    cout = w2d.shape[0]
    t = _pick_spatial_tile(hw)
    grid = (n, hw // t)
    scale2d = scale.reshape(cout, 1).astype(jnp.float32)
    bias2d = bias.reshape(cout, 1).astype(jnp.float32)

    in_specs = [
        pl.BlockSpec((1, k, t), lambda i, j: (i, 0, j)),     # activations
        pl.BlockSpec((cout, k), lambda i, j: (0, 0)),        # weights (resident)
        pl.BlockSpec((cout, 1), lambda i, j: (0, 0)),        # BN scale
        pl.BlockSpec((cout, 1), lambda i, j: (0, 0)),        # BN bias
    ]
    inputs = [x, w2d, scale2d, bias2d]
    add = residual is not None
    if add:
        in_specs.append(pl.BlockSpec((1, cout, t), lambda i, j: (i, 0, j)))
        inputs.append(residual)

    return pl.pallas_call(
        functools.partial(_conv_bn_silu_kernel, add=add),
        out_shape=jax.ShapeDtypeStruct((n, cout, hw), x.dtype),
        grid_spec=pltpu.PrefetchScalarGridSpec(
            num_scalar_prefetch=0,
            grid=grid,
            in_specs=in_specs,
            out_specs=pl.BlockSpec((1, cout, t), lambda i, j: (i, 0, j)),
        ),
        compiler_params=pltpu.CompilerParams(
            dimension_semantics=("parallel", "parallel"),
            vmem_limit_bytes=_VMEM_LIMIT_BYTES,
        ),
    )(*inputs)


# ---------------------------------------------------------------------------
# Lane-dense channel concat kernel (torch.cat(..., dim=1)).
# ---------------------------------------------------------------------------
def _concat_kernel(*refs):
    *in_refs, o_ref = refs
    off = 0
    for r in in_refs:
        c = r.shape[1]
        o_ref[:, off:off + c, :] = r[...]      # (1, Ci, T) slab, full-width lanes
        off += c


def concat_channels(xs):
    """Pallas equivalent of torch.cat(xs, dim=1) on (N, Ci, H*W) activations."""
    n, _, hw = xs[0].shape
    dtype = xs[0].dtype
    for x in xs:
        assert x.shape[0] == n and x.shape[2] == hw and x.dtype == dtype
    c_total = sum(x.shape[1] for x in xs)
    t = _pick_spatial_tile(hw)
    grid = (n, hw // t)

    in_specs = [
        pl.BlockSpec((1, x.shape[1], t), lambda i, j: (i, 0, j)) for x in xs
    ]
    out_spec = pl.BlockSpec((1, c_total, t), lambda i, j: (i, 0, j))

    return pl.pallas_call(
        _concat_kernel,
        out_shape=jax.ShapeDtypeStruct((n, c_total, hw), dtype),
        grid_spec=pltpu.PrefetchScalarGridSpec(
            num_scalar_prefetch=0,
            grid=grid,
            in_specs=in_specs,
            out_specs=out_spec,
        ),
        compiler_params=pltpu.CompilerParams(
            dimension_semantics=("parallel", "parallel"),
            vmem_limit_bytes=_VMEM_LIMIT_BYTES,
        ),
    )(*xs)


# ---------------------------------------------------------------------------
# C3x forward.
# ---------------------------------------------------------------------------
def _im2col_3x3(x_nchw):
    """(N, C, H, W) -> (N, C*9, H*W) patches for a 3x3, pad=1, stride=1 conv."""
    n, c, h, w = x_nchw.shape
    xp = jnp.pad(x_nchw, ((0, 0), (0, 0), (1, 1), (1, 1)))
    taps = [xp[:, :, ky:ky + h, kx:kx + w] for ky in range(3) for kx in range(3)]
    col = jnp.stack(taps, axis=2)                  # (N, C, 9, H, W) -- (ci, ky, kx)
    return col.reshape(n, c * 9, h * w)            # matches w.reshape(Cout, Cin*9)


def c3x_forward_pallas(x, params, *, shortcut=True):
    n, c1, h, w = x.shape
    hw = h * w
    xf = x.reshape(n, c1, hw)          # free reshape of contiguous NCHW

    def pw(act, p):                    # fused 1x1 conv + BN + SiLU
        cout, cin = p["w"].shape[:2]
        return _conv_bn_silu(act, p["w"].reshape(cout, cin), p["scale"], p["bias"])

    y1 = pw(xf, params["cv1"])
    y2 = pw(xf, params["cv2"])

    hcur = y1
    for blk in params["m"]:            # Bottleneck(c_, c_, shortcut, e=1.0)
        t1 = pw(hcur, blk["cv1"])
        cout = blk["cv2"]["w"].shape[0]
        patches = _im2col_3x3(t1.reshape(n, -1, h, w))
        hcur = _conv_bn_silu(
            patches,
            blk["cv2"]["w"].reshape(cout, -1),
            blk["cv2"]["scale"],
            blk["cv2"]["bias"],
            residual=hcur if shortcut else None,
        )

    cat = concat_channels([hcur, y2])  # torch.cat((m(cv1(x)), cv2(x)), dim=1)
    out = pw(cat, params["cv3"])
    return out.reshape(n, -1, h, w)


# ---------------------------------------------------------------------------
# Parameter construction (BN folded to eval-mode scale/bias) and XLA reference.
# ---------------------------------------------------------------------------
def make_c3x_params(key, c1, c2, n=1, e=0.5, dtype=jnp.float32):
    c_ = int(c2 * e)

    def conv_bn(k, cin, cout, ksize):
        kw, kg, kb, km, kv = jax.random.split(k, 5)
        fan_in = cin * ksize * ksize
        w = jax.random.normal(kw, (cout, cin, ksize, ksize), dtype) * (2.0 / fan_in) ** 0.5
        gamma = 1.0 + 0.1 * jax.random.normal(kg, (cout,), dtype)
        beta = 0.1 * jax.random.normal(kb, (cout,), dtype)
        mean = 0.1 * jax.random.normal(km, (cout,), dtype)
        var = jax.random.uniform(kv, (cout,), dtype, 0.5, 1.5)
        scale = gamma / jnp.sqrt(var + 1e-5)       # BatchNorm2d eps, eval mode
        bias = beta - mean * scale
        return dict(w=w, scale=scale, bias=bias)

    keys = jax.random.split(key, 3 + 2 * n)
    return dict(
        cv1=conv_bn(keys[0], c1, c_, 1),
        cv2=conv_bn(keys[1], c1, c_, 1),
        cv3=conv_bn(keys[2], 2 * c_, c2, 1),
        m=[dict(cv1=conv_bn(keys[3 + 2 * i], c_, c_, 1),
                cv2=conv_bn(keys[4 + 2 * i], c_, c_, 3)) for i in range(n)],
    )


def c3x_forward_ref(x, params, *, shortcut=True):
    """Pure-XLA reference (lax.conv) for validation."""
    def conv_bn_silu(a, p, pad):
        y = lax.conv_general_dilated(
            a, p["w"], (1, 1), [(pad, pad), (pad, pad)],
            dimension_numbers=("NCHW", "OIHW", "NCHW"),
            precision=lax.Precision.HIGHEST)
        y = y * p["scale"][None, :, None, None] + p["bias"][None, :, None, None]
        return y * jax.nn.sigmoid(y)

    y1 = conv_bn_silu(x, params["cv1"], 0)
    y2 = conv_bn_silu(x, params["cv2"], 0)
    h = y1
    for blk in params["m"]:
        t = conv_bn_silu(h, blk["cv1"], 0)
        t = conv_bn_silu(t, blk["cv2"], 1)
        h = h + t if shortcut else t
    cat = jnp.concatenate([h, y2], axis=1)
    return conv_bn_silu(cat, params["cv3"], 0)


if __name__ == "__main__":
    key = jax.random.PRNGKey(0)
    kx, kp = jax.random.split(key)

    # C3x(c1=32, c2=32, n=2, shortcut=True, e=0.5) -> c_ = 16, H*W = 256.
    N, C1, C2, H, W, NBLK = 2, 32, 32, 16, 16, 2
    x = jax.random.normal(kx, (N, C1, H, W), jnp.float32)
    params = make_c3x_params(kp, C1, C2, n=NBLK, e=0.5)

    fwd = jax.jit(functools.partial(c3x_forward_pallas, shortcut=True))
    out = jax.block_until_ready(fwd(x, params))

    ref = jax.block_until_ready(c3x_forward_ref(x, params, shortcut=True))

    assert out.shape == (N, C2, H, W), out.shape
    max_err = float(jnp.max(jnp.abs(out - ref)))
    # Tolerance covers MXU-pass vs XLA-conv contraction-order differences.
    assert jnp.allclose(out, ref, rtol=2e-2, atol=2e-2), f"max abs err {max_err}"
    print("KERNEL_OK")
</pallas_src>

<mosaic_0001>
module attributes {stable_mosaic.version = 11 : i64} {
  func.func @_conv_bn_silu_kernel(%arg0: i32, %arg1: i32, %arg2: memref<1x32x256xf32, #tpu.memory_space<vmem>>, %arg3: memref<16x32xf32, #tpu.memory_space<vmem>>, %arg4: memref<16x1xf32, #tpu.memory_space<vmem>>, %arg5: memref<16x1xf32, #tpu.memory_space<vmem>>, %arg6: memref<1x16x256xf32, #tpu.memory_space<vmem>>) attributes {dimension_semantics = [#tpu.dimension_semantics<parallel>, #tpu.dimension_semantics<parallel>], iteration_bounds = array<i64: 2, 1>, scalar_prefetch = 0 : i64, scratch_operands = 0 : i64, tpu.core_type = #tpu.core_type<tc>, window_params = [{transform_indices = @transform_0, window_bounds = array<i64: 1, 32, 256>}, {pipeline_mode = #tpu.pipeline_mode<synchronous>, transform_indices = @transform_1, window_bounds = array<i64: 16, 32>}, {pipeline_mode = #tpu.pipeline_mode<synchronous>, transform_indices = @transform_2, window_bounds = array<i64: 16, 1>}, {pipeline_mode = #tpu.pipeline_mode<synchronous>, transform_indices = @transform_3, window_bounds = array<i64: 16, 1>}, {transform_indices = @transform_4, window_bounds = array<i64: 1, 16, 256>}]} {
    %c0 = arith.constant 0 : index
    %c0_0 = arith.constant 0 : index
    %c0_1 = arith.constant 0 : index
    %0 = vector.load %arg2[%c0, %c0_0, %c0_1] : memref<1x32x256xf32, #tpu.memory_space<vmem>>, vector<1x32x256xf32>
    %1 = vector.shape_cast %0 : vector<1x32x256xf32> to vector<32x256xf32>
    %c0_2 = arith.constant 0 : index
    %c0_3 = arith.constant 0 : index
    %2 = vector.load %arg3[%c0_2, %c0_3] : memref<16x32xf32, #tpu.memory_space<vmem>>, vector<16x32xf32>
    %cst = arith.constant dense<0.000000e+00> : vector<16x256xf32>
    %3 = tpu.matmul %2, %1, %cst {dimension_numbers = #tpu.dot_dimension_numbers<[1], [0], [0], [1], [0, 0, 1, 1], [], []>} : vector<16x32xf32>, vector<32x256xf32>, vector<16x256xf32> -> vector<16x256xf32>
    %c0_4 = arith.constant 0 : index
    %c0_5 = arith.constant 0 : index
    %4 = vector.load %arg4[%c0_4, %c0_5] : memref<16x1xf32, #tpu.memory_space<vmem>>, vector<16x1xf32>
    %5 = vector.broadcast %4 : vector<16x1xf32> to vector<16x256xf32>
    %6 = arith.mulf %3, %5 : vector<16x256xf32>
    %c0_6 = arith.constant 0 : index
    %c0_7 = arith.constant 0 : index
    %7 = vector.load %arg5[%c0_6, %c0_7] : memref<16x1xf32, #tpu.memory_space<vmem>>, vector<16x1xf32>
    %8 = vector.broadcast %7 : vector<16x1xf32> to vector<16x256xf32>
    %9 = arith.addf %6, %8 : vector<16x256xf32>
    %cst_8 = arith.constant 0.000000e+00 : f32
    %10 = vector.broadcast %cst_8 : f32 to vector<16x256xf32>
    %11 = arith.subf %10, %9 : vector<16x256xf32>
    %12 = math.exp %11 : vector<16x256xf32>
    %cst_9 = arith.constant 1.000000e+00 : f32
    %13 = vector.broadcast %cst_9 : f32 to vector<16x256xf32>
    %14 = arith.addf %13, %12 : vector<16x256xf32>
    %cst_10 = arith.constant 1.000000e+00 : f32
    %15 = vector.broadcast %cst_10 : f32 to vector<16x256xf32>
    %16 = arith.divf %15, %14 : vector<16x256xf32>
    %17 = arith.mulf %9, %16 : vector<16x256xf32>
    %c0_11 = arith.constant 0 : index
    %c0_12 = arith.constant 0 : index
    %c0_13 = arith.constant 0 : index
    %18 = vector.load %arg6[%c0_11, %c0_12, %c0_13] : memref<1x16x256xf32, #tpu.memory_space<vmem>>, vector<1x16x256xf32>
    %19 = vector.shape_cast %18 : vector<1x16x256xf32> to vector<16x256xf32>
    %20 = vector.shape_cast %17 : vector<16x256xf32> to vector<1x16x256xf32>
    tpu.vector_store %arg6[%c0_11, %c0_12, %c0_13], %20 {strides = array<i32>} : memref<1x16x256xf32, #tpu.memory_space<vmem>>, vector<1x16x256xf32>,
    return
  }
  func.func @transform_0(%arg0: i32, %arg1: i32) -> (i32, i32, i32) {
    %c0_i32 = arith.constant 0 : i32
    %c0_i32_0 = arith.constant 0 : i32
    return %arg0, %c0_i32, %arg1 : i32, i32, i32
  }
  func.func @transform_1(%arg0: i32, %arg1: i32) -> (i32, i32) {
    %c0_i32 = arith.constant 0 : i32
    %c0_i32_0 = arith.constant 0 : i32
    %c0_i32_1 = arith.constant 0 : i32
    return %c0_i32, %c0_i32_0 : i32, i32
  }
  func.func @transform_2(%arg0: i32, %arg1: i32) -> (i32, i32) {
    %c0_i32 = arith.constant 0 : i32
    %c0_i32_0 = arith.constant 0 : i32
    %c0_i32_1 = arith.constant 0 : i32
    return %c0_i32, %c0_i32_0 : i32, i32
  }
  func.func @transform_3(%arg0: i32, %arg1: i32) -> (i32, i32) {
    %c0_i32 = arith.constant 0 : i32
    %c0_i32_0 = arith.constant 0 : i32
    %c0_i32_1 = arith.constant 0 : i32
    return %c0_i32, %c0_i32_0 : i32, i32
  }
  func.func @transform_4(%arg0: i32, %arg1: i32) -> (i32, i32, i32) {
    %c0_i32 = arith.constant 0 : i32
    %c0_i32_0 = arith.constant 0 : i32
    return %arg0, %c0_i32, %arg1 : i32, i32, i32
  }
}

module attributes {stable_mosaic.version = 11 : i64} {
  func.func @_conv_bn_silu_kernel(%arg0: i32, %arg1: i32, %arg2: memref<1x16x256xf32, #tpu.memory_space<vmem>>, %arg3: memref<16x16xf32, #tpu.memory_space<vmem>>, %arg4: memref<16x1xf32, #tpu.memory_space<vmem>>, %arg5: memref<16x1xf32, #tpu.memory_space<vmem>>, %arg6: memref<1x16x256xf32, #tpu.memory_space<vmem>>) attributes {dimension_semantics = [#tpu.dimension_semantics<parallel>, #tpu.dimension_semantics<parallel>], iteration_bounds = array<i64: 2, 1>, scalar_prefetch = 0 : i64, scratch_operands = 0 : i64, tpu.core_type = #tpu.core_type<tc>, window_params = [{transform_indices = @transform_0, window_bounds = array<i64: 1, 16, 256>}, {pipeline_mode = #tpu.pipeline_mode<synchronous>, transform_indices = @transform_1, window_bounds = array<i64: 16, 16>}, {pipeline_mode = #tpu.pipeline_mode<synchronous>, transform_indices = @transform_2, window_bounds = array<i64: 16, 1>}, {pipeline_mode = #tpu.pipeline_mode<synchronous>, transform_indices = @transform_3, window_bounds = array<i64: 16, 1>}, {transform_indices = @transform_4, window_bounds = array<i64: 1, 16, 256>}]} {
    %c0 = arith.constant 0 : index
    %c0_0 = arith.constant 0 : index
    %c0_1 = arith.constant 0 : index
    %0 = vector.load %arg2[%c0, %c0_0, %c0_1] : memref<1x16x256xf32, #tpu.memory_space<vmem>>, vector<1x16x256xf32>
    %1 = vector.shape_cast %0 : vector<1x16x256xf32> to vector<16x256xf32>
    %c0_2 = arith.constant 0 : index
    %c0_3 = arith.constant 0 : index
    %2 = vector.load %arg3[%c0_2, %c0_3] : memref<16x16xf32, #tpu.memory_space<vmem>>, vector<16x16xf32>
    %cst = arith.constant dense<0.000000e+00> : vector<16x256xf32>
    %3 = tpu.matmul %2, %1, %cst {dimension_numbers = #tpu.dot_dimension_numbers<[1], [0], [0], [1], [0, 0, 1, 1], [], []>} : vector<16x16xf32>, vector<16x256xf32>, vector<16x256xf32> -> vector<16x256xf32>
    %c0_4 = arith.constant 0 : index
    %c0_5 = arith.constant 0 : index
    %4 = vector.load %arg4[%c0_4, %c0_5] : memref<16x1xf32, #tpu.memory_space<vmem>>, vector<16x1xf32>
    %5 = vector.broadcast %4 : vector<16x1xf32> to vector<16x256xf32>
    %6 = arith.mulf %3, %5 : vector<16x256xf32>
    %c0_6 = arith.constant 0 : index
    %c0_7 = arith.constant 0 : index
    %7 = vector.load %arg5[%c0_6, %c0_7] : memref<16x1xf32, #tpu.memory_space<vmem>>, vector<16x1xf32>
    %8 = vector.broadcast %7 : vector<16x1xf32> to vector<16x256xf32>
    %9 = arith.addf %6, %8 : vector<16x256xf32>
    %cst_8 = arith.constant 0.000000e+00 : f32
    %10 = vector.broadcast %cst_8 : f32 to vector<16x256xf32>
    %11 = arith.subf %10, %9 : vector<16x256xf32>
    %12 = math.exp %11 : vector<16x256xf32>
    %cst_9 = arith.constant 1.000000e+00 : f32
    %13 = vector.broadcast %cst_9 : f32 to vector<16x256xf32>
    %14 = arith.addf %13, %12 : vector<16x256xf32>
    %cst_10 = arith.constant 1.000000e+00 : f32
    %15 = vector.broadcast %cst_10 : f32 to vector<16x256xf32>
    %16 = arith.divf %15, %14 : vector<16x256xf32>
    %17 = arith.mulf %9, %16 : vector<16x256xf32>
    %c0_11 = arith.constant 0 : index
    %c0_12 = arith.constant 0 : index
    %c0_13 = arith.constant 0 : index
    %18 = vector.load %arg6[%c0_11, %c0_12, %c0_13] : memref<1x16x256xf32, #tpu.memory_space<vmem>>, vector<1x16x256xf32>
    %19 = vector.shape_cast %18 : vector<1x16x256xf32> to vector<16x256xf32>
    %20 = vector.shape_cast %17 : vector<16x256xf32> to vector<1x16x256xf32>
    tpu.vector_store %arg6[%c0_11, %c0_12, %c0_13], %20 {strides = array<i32>} : memref<1x16x256xf32, #tpu.memory_space<vmem>>, vector<1x16x256xf32>,
    return
  }
  func.func @transform_0(%arg0: i32, %arg1: i32) -> (i32, i32, i32) {
    %c0_i32 = arith.constant 0 : i32
    %c0_i32_0 = arith.constant 0 : i32
    return %arg0, %c0_i32, %arg1 : i32, i32, i32
  }
  func.func @transform_1(%arg0: i32, %arg1: i32) -> (i32, i32) {
    %c0_i32 = arith.constant 0 : i32
    %c0_i32_0 = arith.constant 0 : i32
    %c0_i32_1 = arith.constant 0 : i32
    return %c0_i32, %c0_i32_0 : i32, i32
  }
  func.func @transform_2(%arg0: i32, %arg1: i32) -> (i32, i32) {
    %c0_i32 = arith.constant 0 : i32
    %c0_i32_0 = arith.constant 0 : i32
    %c0_i32_1 = arith.constant 0 : i32
    return %c0_i32, %c0_i32_0 : i32, i32
  }
  func.func @transform_3(%arg0: i32, %arg1: i32) -> (i32, i32) {
    %c0_i32 = arith.constant 0 : i32
    %c0_i32_0 = arith.constant 0 : i32
    %c0_i32_1 = arith.constant 0 : i32
    return %c0_i32, %c0_i32_0 : i32, i32
  }
  func.func @transform_4(%arg0: i32, %arg1: i32) -> (i32, i32, i32) {
    %c0_i32 = arith.constant 0 : i32
    %c0_i32_0 = arith.constant 0 : i32
    return %arg0, %c0_i32, %arg1 : i32, i32, i32
  }
}

module attributes {stable_mosaic.version = 11 : i64} {
  func.func @_conv_bn_silu_kernel(%arg0: i32, %arg1: i32, %arg2: memref<1x144x256xf32, #tpu.memory_space<vmem>>, %arg3: memref<16x144xf32, #tpu.memory_space<vmem>>, %arg4: memref<16x1xf32, #tpu.memory_space<vmem>>, %arg5: memref<16x1xf32, #tpu.memory_space<vmem>>, %arg6: memref<1x16x256xf32, #tpu.memory_space<vmem>>, %arg7: memref<1x16x256xf32, #tpu.memory_space<vmem>>) attributes {dimension_semantics = [#tpu.dimension_semantics<parallel>, #tpu.dimension_semantics<parallel>], iteration_bounds = array<i64: 2, 1>, scalar_prefetch = 0 : i64, scratch_operands = 0 : i64, tpu.core_type = #tpu.core_type<tc>, window_params = [{transform_indices = @transform_0, window_bounds = array<i64: 1, 144, 256>}, {pipeline_mode = #tpu.pipeline_mode<synchronous>, transform_indices = @transform_1, window_bounds = array<i64: 16, 144>}, {pipeline_mode = #tpu.pipeline_mode<synchronous>, transform_indices = @transform_2, window_bounds = array<i64: 16, 1>}, {pipeline_mode = #tpu.pipeline_mode<synchronous>, transform_indices = @transform_3, window_bounds = array<i64: 16, 1>}, {transform_indices = @transform_4, window_bounds = array<i64: 1, 16, 256>}, {transform_indices = @transform_5, window_bounds = array<i64: 1, 16, 256>}]} {
    %c0 = arith.constant 0 : index
    %c0_0 = arith.constant 0 : index
    %c0_1 = arith.constant 0 : index
    %0 = vector.load %arg2[%c0, %c0_0, %c0_1] : memref<1x144x256xf32, #tpu.memory_space<vmem>>, vector<1x144x256xf32>
    %1 = vector.shape_cast %0 : vector<1x144x256xf32> to vector<144x256xf32>
    %c0_2 = arith.constant 0 : index
    %c0_3 = arith.constant 0 : index
    %2 = vector.load %arg3[%c0_2, %c0_3] : memref<16x144xf32, #tpu.memory_space<vmem>>, vector<16x144xf32>
    %cst = arith.constant dense<0.000000e+00> : vector<16x256xf32>
    %3 = tpu.matmul %2, %1, %cst {dimension_numbers = #tpu.dot_dimension_numbers<[1], [0], [0], [1], [0, 0, 1, 1], [], []>} : vector<16x144xf32>, vector<144x256xf32>, vector<16x256xf32> -> vector<16x256xf32>
    %c0_4 = arith.constant 0 : index
    %c0_5 = arith.constant 0 : index
    %4 = vector.load %arg4[%c0_4, %c0_5] : memref<16x1xf32, #tpu.memory_space<vmem>>, vector<16x1xf32>
    %5 = vector.broadcast %4 : vector<16x1xf32> to vector<16x256xf32>
    %6 = arith.mulf %3, %5 : vector<16x256xf32>
    %c0_6 = arith.constant 0 : index
    %c0_7 = arith.constant 0 : index
    %7 = vector.load %arg5[%c0_6, %c0_7] : memref<16x1xf32, #tpu.memory_space<vmem>>, vector<16x1xf32>
    %8 = vector.broadcast %7 : vector<16x1xf32> to vector<16x256xf32>
    %9 = arith.addf %6, %8 : vector<16x256xf32>
    %cst_8 = arith.constant 0.000000e+00 : f32
    %10 = vector.broadcast %cst_8 : f32 to vector<16x256xf32>
    %11 = arith.subf %10, %9 : vector<16x256xf32>
    %12 = math.exp %11 : vector<16x256xf32>
    %cst_9 = arith.constant 1.000000e+00 : f32
    %13 = vector.broadcast %cst_9 : f32 to vector<16x256xf32>
    %14 = arith.addf %13, %12 : vector<16x256xf32>
    %cst_10 = arith.constant 1.000000e+00 : f32
    %15 = vector.broadcast %cst_10 : f32 to vector<16x256xf32>
    %16 = arith.divf %15, %14 : vector<16x256xf32>
    %17 = arith.mulf %9, %16 : vector<16x256xf32>
    %c0_11 = arith.constant 0 : index
    %c0_12 = arith.constant 0 : index
    %c0_13 = arith.constant 0 : index
    %18 = vector.load %arg6[%c0_11, %c0_12, %c0_13] : memref<1x16x256xf32, #tpu.memory_space<vmem>>, vector<1x16x256xf32>
    %19 = vector.shape_cast %18 : vector<1x16x256xf32> to vector<16x256xf32>
    %20 = arith.addf %17, %19 : vector<16x256xf32>
    %c0_14 = arith.constant 0 : index
    %c0_15 = arith.constant 0 : index
    %c0_16 = arith.constant 0 : index
    %21 = vector.load %arg7[%c0_14, %c0_15, %c0_16] : memref<1x16x256xf32, #tpu.memory_space<vmem>>, vector<1x16x256xf32>
    %22 = vector.shape_cast %21 : vector<1x16x256xf32> to vector<16x256xf32>
    %23 = vector.shape_cast %20 : vector<16x256xf32> to vector<1x16x256xf32>
    tpu.vector_store %arg7[%c0_14, %c0_15, %c0_16], %23 {strides = array<i32>} : memref<1x16x256xf32, #tpu.memory_space<vmem>>, vector<1x16x256xf32>,
    return
  }
  func.func @transform_0(%arg0: i32, %arg1: i32) -> (i32, i32, i32) {
    %c0_i32 = arith.constant 0 : i32
    %c0_i32_0 = arith.constant 0 : i32
    return %arg0, %c0_i32, %arg1 : i32, i32, i32
  }
  func.func @transform_1(%arg0: i32, %arg1: i32) -> (i32, i32) {
    %c0_i32 = arith.constant 0 : i32
    %c0_i32_0 = arith.constant 0 : i32
    %c0_i32_1 = arith.constant 0 : i32
    return %c0_i32, %c0_i32_0 : i32, i32
  }
  func.func @transform_2(%arg0: i32, %arg1: i32) -> (i32, i32) {
    %c0_i32 = arith.constant 0 : i32
    %c0_i32_0 = arith.constant 0 : i32
    %c0_i32_1 = arith.constant 0 : i32
    return %c0_i32, %c0_i32_0 : i32, i32
  }
  func.func @transform_3(%arg0: i32, %arg1: i32) -> (i32, i32) {
    %c0_i32 = arith.constant 0 : i32
    %c0_i32_0 = arith.constant 0 : i32
    %c0_i32_1 = arith.constant 0 : i32
    return %c0_i32, %c0_i32_0 : i32, i32
  }
  func.func @transform_4(%arg0: i32, %arg1: i32) -> (i32, i32, i32) {
    %c0_i32 = arith.constant 0 : i32
    %c0_i32_0 = arith.constant 0 : i32
    return %arg0, %c0_i32, %arg1 : i32, i32, i32
  }
  func.func @transform_5(%arg0: i32, %arg1: i32) -> (i32, i32, i32) {
    %c0_i32 = arith.constant 0 : i32
    %c0_i32_0 = arith.constant 0 : i32
    return %arg0, %c0_i32, %arg1 : i32, i32, i32
  }
}

module attributes {stable_mosaic.version = 11 : i64} {
  func.func @_conv_bn_silu_kernel(%arg0: i32, %arg1: i32, %arg2: memref<1x32x256xf32, #tpu.memory_space<vmem>>, %arg3: memref<16x32xf32, #tpu.memory_space<vmem>>, %arg4: memref<16x1xf32, #tpu.memory_space<vmem>>, %arg5: memref<16x1xf32, #tpu.memory_space<vmem>>, %arg6: memref<1x16x256xf32, #tpu.memory_space<vmem>>) attributes {dimension_semantics = [#tpu.dimension_semantics<parallel>, #tpu.dimension_semantics<parallel>], iteration_bounds = array<i64: 2, 1>, scalar_prefetch = 0 : i64, scratch_operands = 0 : i64, tpu.core_type = #tpu.core_type<tc>, window_params = [{transform_indices = @transform_0, window_bounds = array<i64: 1, 32, 256>}, {pipeline_mode = #tpu.pipeline_mode<synchronous>, transform_indices = @transform_1, window_bounds = array<i64: 16, 32>}, {pipeline_mode = #tpu.pipeline_mode<synchronous>, transform_indices = @transform_2, window_bounds = array<i64: 16, 1>}, {pipeline_mode = #tpu.pipeline_mode<synchronous>, transform_indices = @transform_3, window_bounds = array<i64: 16, 1>}, {transform_indices = @transform_4, window_bounds = array<i64: 1, 16, 256>}]} {
    %c0 = arith.constant 0 : index
    %c0_0 = arith.constant 0 : index
    %c0_1 = arith.constant 0 : index
    %0 = vector.load %arg2[%c0, %c0_0, %c0_1] : memref<1x32x256xf32, #tpu.memory_space<vmem>>, vector<1x32x256xf32>
    %1 = vector.shape_cast %0 : vector<1x32x256xf32> to vector<32x256xf32>
    %c0_2 = arith.constant 0 : index
    %c0_3 = arith.constant 0 : index
    %2 = vector.load %arg3[%c0_2, %c0_3] : memref<16x32xf32, #tpu.memory_space<vmem>>, vector<16x32xf32>
    %cst = arith.constant dense<0.000000e+00> : vector<16x256xf32>
    %3 = tpu.matmul %2, %1, %cst {dimension_numbers = #tpu.dot_dimension_numbers<[1], [0], [0], [1], [0, 0, 1, 1], [], []>} : vector<16x32xf32>, vector<32x256xf32>, vector<16x256xf32> -> vector<16x256xf32>
    %c0_4 = arith.constant 0 : index
    %c0_5 = arith.constant 0 : index
    %4 = vector.load %arg4[%c0_4, %c0_5] : memref<16x1xf32, #tpu.memory_space<vmem>>, vector<16x1xf32>
    %5 = vector.broadcast %4 : vector<16x1xf32> to vector<16x256xf32>
    %6 = arith.mulf %3, %5 : vector<16x256xf32>
    %c0_6 = arith.constant 0 : index
    %c0_7 = arith.constant 0 : index
    %7 = vector.load %arg5[%c0_6, %c0_7] : memref<16x1xf32, #tpu.memory_space<vmem>>, vector<16x1xf32>
    %8 = vector.broadcast %7 : vector<16x1xf32> to vector<16x256xf32>
    %9 = arith.addf %6, %8 : vector<16x256xf32>
    %cst_8 = arith.constant 0.000000e+00 : f32
    %10 = vector.broadcast %cst_8 : f32 to vector<16x256xf32>
    %11 = arith.subf %10, %9 : vector<16x256xf32>
    %12 = math.exp %11 : vector<16x256xf32>
    %cst_9 = arith.constant 1.000000e+00 : f32
    %13 = vector.broadcast %cst_9 : f32 to vector<16x256xf32>
    %14 = arith.addf %13, %12 : vector<16x256xf32>
    %cst_10 = arith.constant 1.000000e+00 : f32
    %15 = vector.broadcast %cst_10 : f32 to vector<16x256xf32>
    %16 = arith.divf %15, %14 : vector<16x256xf32>
    %17 = arith.mulf %9, %16 : vector<16x256xf32>
    %c0_11 = arith.constant 0 : index
    %c0_12 = arith.constant 0 : index
    %c0_13 = arith.constant 0 : index
    %18 = vector.load %arg6[%c0_11, %c0_12, %c0_13] : memref<1x16x256xf32, #tpu.memory_space<vmem>>, vector<1x16x256xf32>
    %19 = vector.shape_cast %18 : vector<1x16x256xf32> to vector<16x256xf32>
    %20 = vector.shape_cast %17 : vector<16x256xf32> to vector<1x16x256xf32>
    tpu.vector_store %arg6[%c0_11, %c0_12, %c0_13], %20 {strides = array<i32>} : memref<1x16x256xf32, #tpu.memory_space<vmem>>, vector<1x16x256xf32>,
    return
  }
  func.func @transform_0(%arg0: i32, %arg1: i32) -> (i32, i32, i32) {
    %c0_i32 = arith.constant 0 : i32
    %c0_i32_0 = arith.constant 0 : i32
    return %arg0, %c0_i32, %arg1 : i32, i32, i32
  }
  func.func @transform_1(%arg0: i32, %arg1: i32) -> (i32, i32) {
    %c0_i32 = arith.constant 0 : i32
    %c0_i32_0 = arith.constant 0 : i32
    %c0_i32_1 = arith.constant 0 : i32
    return %c0_i32, %c0_i32_0 : i32, i32
  }
  func.func @transform_2(%arg0: i32, %arg1: i32) -> (i32, i32) {
    %c0_i32 = arith.constant 0 : i32
    %c0_i32_0 = arith.constant 0 : i32
    %c0_i32_1 = arith.constant 0 : i32
    return %c0_i32, %c0_i32_0 : i32, i32
  }
  func.func @transform_3(%arg0: i32, %arg1: i32) -> (i32, i32) {
    %c0_i32 = arith.constant 0 : i32
    %c0_i32_0 = arith.constant 0 : i32
    %c0_i32_1 = arith.constant 0 : i32
    return %c0_i32, %c0_i32_0 : i32, i32
  }
  func.func @transform_4(%arg0: i32, %arg1: i32) -> (i32, i32, i32) {
    %c0_i32 = arith.constant 0 : i32
    %c0_i32_0 = arith.constant 0 : i32
    return %arg0, %c0_i32, %arg1 : i32, i32, i32
  }
}

module attributes {stable_mosaic.version = 11 : i64} {
  func.func @_conv_bn_silu_kernel(%arg0: i32, %arg1: i32, %arg2: memref<1x16x256xf32, #tpu.memory_space<vmem>>, %arg3: memref<16x16xf32, #tpu.memory_space<vmem>>, %arg4: memref<16x1xf32, #tpu.memory_space<vmem>>, %arg5: memref<16x1xf32, #tpu.memory_space<vmem>>, %arg6: memref<1x16x256xf32, #tpu.memory_space<vmem>>) attributes {dimension_semantics = [#tpu.dimension_semantics<parallel>, #tpu.dimension_semantics<parallel>], iteration_bounds = array<i64: 2, 1>, scalar_prefetch = 0 : i64, scratch_operands = 0 : i64, tpu.core_type = #tpu.core_type<tc>, window_params = [{transform_indices = @transform_0, window_bounds = array<i64: 1, 16, 256>}, {pipeline_mode = #tpu.pipeline_mode<synchronous>, transform_indices = @transform_1, window_bounds = array<i64: 16, 16>}, {pipeline_mode = #tpu.pipeline_mode<synchronous>, transform_indices = @transform_2, window_bounds = array<i64: 16, 1>}, {pipeline_mode = #tpu.pipeline_mode<synchronous>, transform_indices = @transform_3, window_bounds = array<i64: 16, 1>}, {transform_indices = @transform_4, window_bounds = array<i64: 1, 16, 256>}]} {
    %c0 = arith.constant 0 : index
    %c0_0 = arith.constant 0 : index
    %c0_1 = arith.constant 0 : index
    %0 = vector.load %arg2[%c0, %c0_0, %c0_1] : memref<1x16x256xf32, #tpu.memory_space<vmem>>, vector<1x16x256xf32>
    %1 = vector.shape_cast %0 : vector<1x16x256xf32> to vector<16x256xf32>
    %c0_2 = arith.constant 0 : index
    %c0_3 = arith.constant 0 : index
    %2 = vector.load %arg3[%c0_2, %c0_3] : memref<16x16xf32, #tpu.memory_space<vmem>>, vector<16x16xf32>
    %cst = arith.constant dense<0.000000e+00> : vector<16x256xf32>
    %3 = tpu.matmul %2, %1, %cst {dimension_numbers = #tpu.dot_dimension_numbers<[1], [0], [0], [1], [0, 0, 1, 1], [], []>} : vector<16x16xf32>, vector<16x256xf32>, vector<16x256xf32> -> vector<16x256xf32>
    %c0_4 = arith.constant 0 : index
    %c0_5 = arith.constant 0 : index
    %4 = vector.load %arg4[%c0_4, %c0_5] : memref<16x1xf32, #tpu.memory_space<vmem>>, vector<16x1xf32>
    %5 = vector.broadcast %4 : vector<16x1xf32> to vector<16x256xf32>
    %6 = arith.mulf %3, %5 : vector<16x256xf32>
    %c0_6 = arith.constant 0 : index
    %c0_7 = arith.constant 0 : index
    %7 = vector.load %arg5[%c0_6, %c0_7] : memref<16x1xf32, #tpu.memory_space<vmem>>, vector<16x1xf32>
    %8 = vector.broadcast %7 : vector<16x1xf32> to vector<16x256xf32>
    %9 = arith.addf %6, %8 : vector<16x256xf32>
    %cst_8 = arith.constant 0.000000e+00 : f32
    %10 = vector.broadcast %cst_8 : f32 to vector<16x256xf32>
    %11 = arith.subf %10, %9 : vector<16x256xf32>
    %12 = math.exp %11 : vector<16x256xf32>
    %cst_9 = arith.constant 1.000000e+00 : f32
    %13 = vector.broadcast %cst_9 : f32 to vector<16x256xf32>
    %14 = arith.addf %13, %12 : vector<16x256xf32>
    %cst_10 = arith.constant 1.000000e+00 : f32
    %15 = vector.broadcast %cst_10 : f32 to vector<16x256xf32>
    %16 = arith.divf %15, %14 : vector<16x256xf32>
    %17 = arith.mulf %9, %16 : vector<16x256xf32>
    %c0_11 = arith.constant 0 : index
    %c0_12 = arith.constant 0 : index
    %c0_13 = arith.constant 0 : index
    %18 = vector.load %arg6[%c0_11, %c0_12, %c0_13] : memref<1x16x256xf32, #tpu.memory_space<vmem>>, vector<1x16x256xf32>
    %19 = vector.shape_cast %18 : vector<1x16x256xf32> to vector<16x256xf32>
    %20 = vector.shape_cast %17 : vector<16x256xf32> to vector<1x16x256xf32>
    tpu.vector_store %arg6[%c0_11, %c0_12, %c0_13], %20 {strides = array<i32>} : memref<1x16x256xf32, #tpu.memory_space<vmem>>, vector<1x16x256xf32>,
    return
  }
  func.func @transform_0(%arg0: i32, %arg1: i32) -> (i32, i32, i32) {
    %c0_i32 = arith.constant 0 : i32
    %c0_i32_0 = arith.constant 0 : i32
    return %arg0, %c0_i32, %arg1 : i32, i32, i32
  }
  func.func @transform_1(%arg0: i32, %arg1: i32) -> (i32, i32) {
    %c0_i32 = arith.constant 0 : i32
    %c0_i32_0 = arith.constant 0 : i32
    %c0_i32_1 = arith.constant 0 : i32
    return %c0_i32, %c0_i32_0 : i32, i32
  }
  func.func @transform_2(%arg0: i32, %arg1: i32) -> (i32, i32) {
    %c0_i32 = arith.constant 0 : i32
    %c0_i32_0 = arith.constant 0 : i32
    %c0_i32_1 = arith.constant 0 : i32
    return %c0_i32, %c0_i32_0 : i32, i32
  }
  func.func @transform_3(%arg0: i32, %arg1: i32) -> (i32, i32) {
    %c0_i32 = arith.constant 0 : i32
    %c0_i32_0 = arith.constant 0 : i32
    %c0_i32_1 = arith.constant 0 : i32
    return %c0_i32, %c0_i32_0 : i32, i32
  }
  func.func @transform_4(%arg0: i32, %arg1: i32) -> (i32, i32, i32) {
    %c0_i32 = arith.constant 0 : i32
    %c0_i32_0 = arith.constant 0 : i32
    return %arg0, %c0_i32, %arg1 : i32, i32, i32
  }
}

module attributes {stable_mosaic.version = 11 : i64} {
  func.func @_concat_kernel(%arg0: i32, %arg1: i32, %arg2: memref<1x16x256xf32, #tpu.memory_space<vmem>>, %arg3: memref<1x16x256xf32, #tpu.memory_space<vmem>>, %arg4: memref<1x32x256xf32, #tpu.memory_space<vmem>>) attributes {dimension_semantics = [#tpu.dimension_semantics<parallel>, #tpu.dimension_semantics<parallel>], iteration_bounds = array<i64: 2, 1>, scalar_prefetch = 0 : i64, scratch_operands = 0 : i64, tpu.core_type = #tpu.core_type<tc>, window_params = [{transform_indices = @transform_0, window_bounds = array<i64: 1, 16, 256>}, {transform_indices = @transform_1, window_bounds = array<i64: 1, 16, 256>}, {transform_indices = @transform_2, window_bounds = array<i64: 1, 32, 256>}]} {
    %c0 = arith.constant 0 : index
    %c0_0 = arith.constant 0 : index
    %c0_1 = arith.constant 0 : index
    %0 = vector.load %arg2[%c0, %c0_0, %c0_1] : memref<1x16x256xf32, #tpu.memory_space<vmem>>, vector<1x16x256xf32>
    %c0_2 = arith.constant 0 : index
    %c0_3 = arith.constant 0 : index
    %c0_4 = arith.constant 0 : index
    %1 = vector.load %arg4[%c0_2, %c0_3, %c0_4] : memref<1x32x256xf32, #tpu.memory_space<vmem>>, vector<1x16x256xf32>
    tpu.vector_store %arg4[%c0_2, %c0_3, %c0_4], %0 {strides = array<i32>} : memref<1x32x256xf32, #tpu.memory_space<vmem>>, vector<1x16x256xf32>,
    %c0_5 = arith.constant 0 : index
    %c0_6 = arith.constant 0 : index
    %c0_7 = arith.constant 0 : index
    %2 = vector.load %arg3[%c0_5, %c0_6, %c0_7] : memref<1x16x256xf32, #tpu.memory_space<vmem>>, vector<1x16x256xf32>
    %c0_8 = arith.constant 0 : index
    %c16 = arith.constant 16 : index
    %c0_9 = arith.constant 0 : index
    %3 = vector.load %arg4[%c0_8, %c16, %c0_9] : memref<1x32x256xf32, #tpu.memory_space<vmem>>, vector<1x16x256xf32>
    tpu.vector_store %arg4[%c0_8, %c16, %c0_9], %2 {strides = array<i32>} : memref<1x32x256xf32, #tpu.memory_space<vmem>>, vector<1x16x256xf32>,
    return
  }
  func.func @transform_0(%arg0: i32, %arg1: i32) -> (i32, i32, i32) {
    %c0_i32 = arith.constant 0 : i32
    %c0_i32_0 = arith.constant 0 : i32
    return %arg0, %c0_i32, %arg1 : i32, i32, i32
  }
  func.func @transform_1(%arg0: i32, %arg1: i32) -> (i32, i32, i32) {
    %c0_i32 = arith.constant 0 : i32
    %c0_i32_0 = arith.constant 0 : i32
    return %arg0, %c0_i32, %arg1 : i32, i32, i32
  }
  func.func @transform_2(%arg0: i32, %arg1: i32) -> (i32, i32, i32) {
    %c0_i32 = arith.constant 0 : i32
    %c0_i32_0 = arith.constant 0 : i32
    return %arg0, %c0_i32, %arg1 : i32, i32, i32
  }
}

module attributes {stable_mosaic.version = 11 : i64} {
  func.func @_conv_bn_silu_kernel(%arg0: i32, %arg1: i32, %arg2: memref<1x32x256xf32, #tpu.memory_space<vmem>>, %arg3: memref<32x32xf32, #tpu.memory_space<vmem>>, %arg4: memref<32x1xf32, #tpu.memory_space<vmem>>, %arg5: memref<32x1xf32, #tpu.memory_space<vmem>>, %arg6: memref<1x32x256xf32, #tpu.memory_space<vmem>>) attributes {dimension_semantics = [#tpu.dimension_semantics<parallel>, #tpu.dimension_semantics<parallel>], iteration_bounds = array<i64: 2, 1>, scalar_prefetch = 0 : i64, scratch_operands = 0 : i64, tpu.core_type = #tpu.core_type<tc>, window_params = [{transform_indices = @transform_0, window_bounds = array<i64: 1, 32, 256>}, {pipeline_mode = #tpu.pipeline_mode<synchronous>, transform_indices = @transform_1, window_bounds = array<i64: 32, 32>}, {pipeline_mode = #tpu.pipeline_mode<synchronous>, transform_indices = @transform_2, window_bounds = array<i64: 32, 1>}, {pipeline_mode = #tpu.pipeline_mode<synchronous>, transform_indices = @transform_3, window_bounds = array<i64: 32, 1>}, {transform_indices = @transform_4, window_bounds = array<i64: 1, 32, 256>}]} {
    %c0 = arith.constant 0 : index
    %c0_0 = arith.constant 0 : index
    %c0_1 = arith.constant 0 : index
    %0 = vector.load %arg2[%c0, %c0_0, %c0_1] : memref<1x32x256xf32, #tpu.memory_space<vmem>>, vector<1x32x256xf32>
    %1 = vector.shape_cast %0 : vector<1x32x256xf32> to vector<32x256xf32>
    %c0_2 = arith.constant 0 : index
    %c0_3 = arith.constant 0 : index
    %2 = vector.load %arg3[%c0_2, %c0_3] : memref<32x32xf32, #tpu.memory_space<vmem>>, vector<32x32xf32>
    %cst = arith.constant dense<0.000000e+00> : vector<32x256xf32>
    %3 = tpu.matmul %2, %1, %cst {dimension_numbers = #tpu.dot_dimension_numbers<[1], [0], [0], [1], [0, 0, 1, 1], [], []>} : vector<32x32xf32>, vector<32x256xf32>, vector<32x256xf32> -> vector<32x256xf32>
    %c0_4 = arith.constant 0 : index
    %c0_5 = arith.constant 0 : index
    %4 = vector.load %arg4[%c0_4, %c0_5] : memref<32x1xf32, #tpu.memory_space<vmem>>, vector<32x1xf32>
    %5 = vector.broadcast %4 : vector<32x1xf32> to vector<32x256xf32>
    %6 = arith.mulf %3, %5 : vector<32x256xf32>
    %c0_6 = arith.constant 0 : index
    %c0_7 = arith.constant 0 : index
    %7 = vector.load %arg5[%c0_6, %c0_7] : memref<32x1xf32, #tpu.memory_space<vmem>>, vector<32x1xf32>
    %8 = vector.broadcast %7 : vector<32x1xf32> to vector<32x256xf32>
    %9 = arith.addf %6, %8 : vector<32x256xf32>
    %cst_8 = arith.constant 0.000000e+00 : f32
    %10 = vector.broadcast %cst_8 : f32 to vector<32x256xf32>
    %11 = arith.subf %10, %9 : vector<32x256xf32>
    %12 = math.exp %11 : vector<32x256xf32>
    %cst_9 = arith.constant 1.000000e+00 : f32
    %13 = vector.broadcast %cst_9 : f32 to vector<32x256xf32>
    %14 = arith.addf %13, %12 : vector<32x256xf32>
    %cst_10 = arith.constant 1.000000e+00 : f32
    %15 = vector.broadcast %cst_10 : f32 to vector<32x256xf32>
    %16 = arith.divf %15, %14 : vector<32x256xf32>
    %17 = arith.mulf %9, %16 : vector<32x256xf32>
    %c0_11 = arith.constant 0 : index
    %c0_12 = arith.constant 0 : index
    %c0_13 = arith.constant 0 : index
    %18 = vector.load %arg6[%c0_11, %c0_12, %c0_13] : memref<1x32x256xf32, #tpu.memory_space<vmem>>, vector<1x32x256xf32>
    %19 = vector.shape_cast %18 : vector<1x32x256xf32> to vector<32x256xf32>
    %20 = vector.shape_cast %17 : vector<32x256xf32> to vector<1x32x256xf32>
    tpu.vector_store %arg6[%c0_11, %c0_12, %c0_13], %20 {strides = array<i32>} : memref<1x32x256xf32, #tpu.memory_space<vmem>>, vector<1x32x256xf32>,
    return
  }
  func.func @transform_0(%arg0: i32, %arg1: i32) -> (i32, i32, i32) {
    %c0_i32 = arith.constant 0 : i32
    %c0_i32_0 = arith.constant 0 : i32
    return %arg0, %c0_i32, %arg1 : i32, i32, i32
  }
  func.func @transform_1(%arg0: i32, %arg1: i32) -> (i32, i32) {
    %c0_i32 = arith.constant 0 : i32
    %c0_i32_0 = arith.constant 0 : i32
    %c0_i32_1 = arith.constant 0 : i32
    return %c0_i32, %c0_i32_0 : i32, i32
  }
  func.func @transform_2(%arg0: i32, %arg1: i32) -> (i32, i32) {
    %c0_i32 = arith.constant 0 : i32
    %c0_i32_0 = arith.constant 0 : i32
    %c0_i32_1 = arith.constant 0 : i32
    return %c0_i32, %c0_i32_0 : i32, i32
  }
  func.func @transform_3(%arg0: i32, %arg1: i32) -> (i32, i32) {
    %c0_i32 = arith.constant 0 : i32
    %c0_i32_0 = arith.constant 0 : i32
    %c0_i32_1 = arith.constant 0 : i32
    return %c0_i32, %c0_i32_0 : i32, i32
  }
  func.func @transform_4(%arg0: i32, %arg1: i32) -> (i32, i32, i32) {
    %c0_i32 = arith.constant 0 : i32
    %c0_i32_0 = arith.constant 0 : i32
    return %arg0, %c0_i32, %arg1 : i32, i32, i32
  }
}

</mosaic_0001>

<llo_original>
// kernel: c3x_forward_pallas.10
$region0: #{c3x_forward_pallas.10}
  #allocation0 [shape = 'u32[]', space=smem, size = 0x4, offset = 0x4, fixed_abs, tag = 'smem constant byte address 0x4 - core index']
  #allocation1 [shape = 'u32[72,128]{1,0:T(1,128)}', space=vmem, size = 0x9000, scoped, tag = 'internal scratch']
  %s0 = inlined_call_operand.vmem [shape: f32[2,16,256], index: 0, kind: input, shape index: {}]
  %s1 = inlined_call_operand.hbm [shape: f32[16,16], index: 1, kind: input, shape index: {}]
  %s2 = inlined_call_operand.vmem [shape: f32[16,1], index: 2, kind: input, shape index: {}]
  %s3 = inlined_call_operand.vmem [shape: f32[16,1], index: 3, kind: input, shape index: {}]
  %s4 = inlined_call_operand.vmem [shape: f32[2,16,256], index: 4, kind: output, shape index: {}]
  %s5 = sld [smem:[#allocation0]]
  $region53: #{c3x_forward_pallas.10} parent=0
    _
  %s7 = ssub.s32 1, %s5
  %s8 = scalar_select 0, %s7, %s5
  $region1: #{c3x_forward_pallas.10} parent=0
    #allocation2 [shape = 'u8[8192]{0}', space=vmem, size = 0x2000, scoped, tag = 'input window, operand 1, single buffered']
    #allocation3 [shape = 's32[2]{0}', space=sflag, size = 0x8, scoped, tag = 'scoped memory for c3x_forward_pallas.10']
    %9 = vsyncpa [#allocation3], 0
    loop: start=0, step=1, limit=4
    $region2: #{c3x_forward_pallas.10} parent=1 // loop_pre_header
      _
    $region3: #{c3x_forward_pallas.10} parent=1 // loop_header
      %s11 = sphi 0, %s15
      %p12 = scmp.ge.s32.totalorder %s11, 4
      %s18 = sphi 0, %s30
      %s19 = sphi 0, %s26
      %s20 = sphi 0, %s18
      %s21 = sphi 0, %s19
      %s22 = sphi 0, %s20
      %s23 = sphi 0, %s21
      %s35 = sphi 0, %s37
      %s38 = sphi 0, %s35
      %s39 = sphi 0, %s38
      %s55 = sphi 0, %s39
      %s59 = sphi 0, %s59
      %s61 = sphi 0, %s59
      %s62 = sphi 0, %s61
      %s76 = sphi 0, %s62
      %s80 = sphi 0, %s80
      %s82 = sphi 0, %s80
      %s83 = sphi 0, %s82
      %s97 = sphi 0, %s83
      %s101 = sphi 0, %s101
      %s103 = sphi 0, %s101
      %s104 = sphi 0, %s103
      %s118 = sphi 0, %s104
      %s126 = sphi 0, %s128
      %s129 = sphi 0, %s126
      %s130 = sphi 0, %s129
      %s146 = sphi 0, %s130
    $region4: #{c3x_forward_pallas.10} parent=1 // loop_header_branch
      %14 = sbr.rel (%p12) target = $region8
    $region5: #{c3x_forward_pallas.10} parent=1 // loop_body
      %s16 = ssub.s32 %s11, 1
      %s17 = ssub.s32 %s11, 2
      %s24 = sadd.s32 1, %s19
      %p25 = scmp.ge.s32.totalorder %s24, 1
      %s26 = scalar_select %p25, 0, %s24
      %s27 = sadd.s32 1, %s18
      %s28 = scalar_select %p25, %s27, %s18
      %p29 = scmp.ge.s32.totalorder %s28, 2
      %s30 = scalar_select %p29, 0, %s28
      %s31 = ssub.s32 %s18, %s30
      %s32 = ssub.s32 %s19, %s26
      %s33 = sor.u32 %s31, %s32
      %p34 = scmp.eq.s32.totalorder %s33, 0
      %s36 = sadd.s32 %s35, 1
      %s37 = scalar_select %p34, %s35, %s36
      %p40 = pneg %p34
      %p41 = scmp.eq.s32.totalorder %s11, 1
      %p42 = por %p40, %p41
      %p43 = scmp.ne.s32.totalorder %s35, %s38
      %p44 = scmp.eq.s32.totalorder %s11, 0
      %p45 = por %p43, %p44
      %p46 = scmp.ne.s32.totalorder %s35, %s38
      %p47 = scmp.eq.s32.totalorder %s16, 1
      %p48 = por %p46, %p47
      %p49 = scmp.ne.s32.totalorder %s38, %s39
      %p50 = scmp.eq.s32.totalorder %s16, 0
      %p51 = por %p49, %p50
      %p52 = scmp.ne.s32.totalorder %s38, %s39
      %p53 = scmp.eq.s32.totalorder %s17, 1
      %p54 = por %p52, %p53
      %p56 = scmp.ne.s32.totalorder %s39, %s55
      %p57 = scmp.eq.s32.totalorder %s17, 0
      %p58 = por %p56, %p57
      %s60 = sadd.s32 %s59, 1
      %p63 = scmp.eq.s32.totalorder %s11, 1
      %p64 = scmp.ne.s32.totalorder %s59, %s61
      %p65 = scmp.eq.s32.totalorder %s11, 0
      %p66 = por %p64, %p65
      %p67 = scmp.ne.s32.totalorder %s59, %s61
      %p68 = scmp.eq.s32.totalorder %s16, 1
      %p69 = por %p67, %p68
      %p70 = scmp.ne.s32.totalorder %s61, %s62
      %p71 = scmp.eq.s32.totalorder %s16, 0
      %p72 = por %p70, %p71
      %p73 = scmp.ne.s32.totalorder %s61, %s62
      %p74 = scmp.eq.s32.totalorder %s17, 1
      %p75 = por %p73, %p74
      %p77 = scmp.ne.s32.totalorder %s62, %s76
      %p78 = scmp.eq.s32.totalorder %s17, 0
      %p79 = por %p77, %p78
      %s81 = sadd.s32 %s80, 1
      %p84 = scmp.eq.s32.totalorder %s11, 1
      %p85 = scmp.ne.s32.totalorder %s80, %s82
      %p86 = scmp.eq.s32.totalorder %s11, 0
      %p87 = por %p85, %p86
      %p88 = scmp.ne.s32.totalorder %s80, %s82
      %p89 = scmp.eq.s32.totalorder %s16, 1
      %p90 = por %p88, %p89
      %p91 = scmp.ne.s32.totalorder %s82, %s83
      %p92 = scmp.eq.s32.totalorder %s16, 0
      %p93 = por %p91, %p92
      %p94 = scmp.ne.s32.totalorder %s82, %s83
      %p95 = scmp.eq.s32.totalorder %s17, 1
      %p96 = por %p94, %p95
      %p98 = scmp.ne.s32.totalorder %s83, %s97
      %p99 = scmp.eq.s32.totalorder %s17, 0
      %p100 = por %p98, %p99
      %s102 = sadd.s32 %s101, 1
      %p105 = scmp.eq.s32.totalorder %s11, 1
      %p106 = scmp.ne.s32.totalorder %s101, %s103
      %p107 = scmp.eq.s32.totalorder %s11, 0
      %p108 = por %p106, %p107
      %p109 = scmp.ne.s32.totalorder %s101, %s103
      %p110 = scmp.eq.s32.totalorder %s16, 1
      %p111 = por %p109, %p110
      %p112 = scmp.ne.s32.totalorder %s103, %s104
      %p113 = scmp.eq.s32.totalorder %s16, 0
      %p114 = por %p112, %p113
      %p115 = scmp.ne.s32.totalorder %s103, %s104
      %p116 = scmp.eq.s32.totalorder %s17, 1
      %p117 = por %p115, %p116
      %p119 = scmp.ne.s32.totalorder %s104, %s118
      %p120 = scmp.eq.s32.totalorder %s17, 0
      %p121 = por %p119, %p120
      %s122 = ssub.s32 %s18, %s30
      %s123 = ssub.s32 %s19, %s26
      %s124 = sor.u32 %s122, %s123
      %p125 = scmp.eq.s32.totalorder %s124, 0
      %s127 = sadd.s32 %s126, 1
      %s128 = scalar_select %p125, %s126, %s127
      %p131 = pneg %p125
      %p132 = scmp.eq.s32.totalorder %s11, 1
      %p133 = por %p131, %p132
      %p134 = scmp.ne.s32.totalorder %s126, %s129
      %p135 = scmp.eq.s32.totalorder %s11, 0
      %p136 = por %p134, %p135
      %p137 = scmp.ne.s32.totalorder %s126, %s129
      %p138 = scmp.eq.s32.totalorder %s16, 1
      %p139 = por %p137, %p138
      %p140 = scmp.ne.s32.totalorder %s129, %s130
      %p141 = scmp.eq.s32.totalorder %s16, 0
      %p142 = por %p140, %p141
      %p143 = scmp.ne.s32.totalorder %s129, %s130
      %p144 = scmp.eq.s32.totalorder %s17, 1
      %p145 = por %p143, %p144
      %p147 = scmp.ne.s32.totalorder %s130, %s146
      %p148 = scmp.eq.s32.totalorder %s17, 0
      %p149 = por %p147, %p148
      %p150 = scmp.le.s32.totalorder 1, %s11
      %p151 = scmp.lt.s32.totalorder %s11, 3
      %p152 = pnand %p150, %p151
      %p153 = pneg %p152
      // Predicated region
      $region9: #{c3x_forward_pallas.10} parent=5 // pred_check
        _
      $region10: #{c3x_forward_pallas.10} parent=5 // pred_check_branch
        %155 = sbr.rel (%p152) target = $region12
      $region11: #{c3x_forward_pallas.10} parent=5 // pred_region
        %s156 = ssub.s32 %s11, 1
        // Predicated region
        $region13: #{c3x_forward_pallas.10} parent=11 // pred_check
          %p157 = pneg %p72
        $region14: #{c3x_forward_pallas.10} parent=11 // pred_check_branch
          %159 = sbr.rel (%p157) target = $region16
        $region15: #{c3x_forward_pallas.10} parent=11 // pred_region
          %161 = vsyncadd [#allocation3], 0
          %s162 = sshll.u32 %s1, 4
          %s163 = int_to_ptr.hbm [resolvable:$true] %s162
          %s164 = sshll.u32 [#allocation2], 4
          %s165 = int_to_ptr.vmem [resolvable:$true] %s164
          %170 = dma.hbm_to_vmem [thread:$0]  %s163, 256, %s165, [#allocation3], 128, 128, 8
        $region16: #{c3x_forward_pallas.10} parent=11 // pred_fallthru
          _
        // Predicated region
        $region17: #{c3x_forward_pallas.10} parent=11 // pred_check
          %p171 = pneg %p93
        $region18: #{c3x_forward_pallas.10} parent=11 // pred_check_branch
          %173 = sbr.rel (%p171) target = $region20
        $region19: #{c3x_forward_pallas.10} parent=11 // pred_region
          _
        $region20: #{c3x_forward_pallas.10} parent=11 // pred_fallthru
          _
        // Predicated region
        $region21: #{c3x_forward_pallas.10} parent=11 // pred_check
          %p174 = pneg %p114
        $region22: #{c3x_forward_pallas.10} parent=11 // pred_check_branch
          %176 = sbr.rel (%p174) target = $region24
        $region23: #{c3x_forward_pallas.10} parent=11 // pred_region
          _
        $region24: #{c3x_forward_pallas.10} parent=11 // pred_fallthru
          _
      $region12: #{c3x_forward_pallas.10} parent=5 // pred_fallthru
        _
      %p177 = scmp.lt.s32.totalorder %s11, 2
      // Predicated region
      $region25: #{c3x_forward_pallas.10} parent=5 // pred_check
        %p178 = pneg %p177
      $region26: #{c3x_forward_pallas.10} parent=5 // pred_check_branch
        %180 = sbr.rel (%p178) target = $region28
      $region27: #{c3x_forward_pallas.10} parent=5 // pred_region
        // Predicated region
        $region29: #{c3x_forward_pallas.10} parent=27 // pred_check
          %p181 = pneg %p45
        $region30: #{c3x_forward_pallas.10} parent=27 // pred_check_branch
          %183 = sbr.rel (%p181) target = $region32
        $region31: #{c3x_forward_pallas.10} parent=27 // pred_region
          %s184 = smul.u32 2, %s19
          %p185 = scmp.lt.s32.totalorder %s18, 1
          %s186 = scalar_select %p185, %s18, 1
          %p187 = scmp.lt.s32.totalorder %s184, 1
          %s188 = scalar_select %p187, %s184, 1
          %s189 = smul.addr %s186, 4
          %s190 = sadd.s32 %s188, %s189
          %s191 = smul.addr %s190, 8
          %s192 = scalar_lea.vmem %s0, %s191
          %s193 = smul.u32 2, %s19
        $region32: #{c3x_forward_pallas.10} parent=27 // pred_fallthru
          _
      $region28: #{c3x_forward_pallas.10} parent=5 // pred_fallthru
        _
      %p194 = scmp.le.s32.totalorder 1, %s11
      %p195 = scmp.lt.s32.totalorder %s11, 3
      %p196 = pnand %p194, %p195
      %p197 = pneg %p196
      // Predicated region
      $region33: #{c3x_forward_pallas.10} parent=5 // pred_check
        _
      $region34: #{c3x_forward_pallas.10} parent=5 // pred_check_branch
        %199 = sbr.rel (%p196) target = $region36
      $region35: #{c3x_forward_pallas.10} parent=5 // pred_region
        %s200 = ssub.s32 %s11, 1
        // Predicated region
        $region37: #{c3x_forward_pallas.10} parent=35 // pred_check
          %p201 = pneg %p72
        $region38: #{c3x_forward_pallas.10} parent=35 // pred_check_branch
          %203 = sbr.rel (%p201) target = $region40
        $region39: #{c3x_forward_pallas.10} parent=35 // pred_region
          %205 = dma.done [#allocation3], 256
        $region40: #{c3x_forward_pallas.10} parent=35 // pred_fallthru
          _
        %s206 = smul.u32 2, %s21
        %p207 = scmp.lt.s32.totalorder %s20, 1
        %s208 = scalar_select %p207, %s20, 1
        %p209 = scmp.lt.s32.totalorder %s206, 1
        %s210 = scalar_select %p209, %s206, 1
        %s211 = smul.addr %s208, 4
        %s212 = sadd.s32 %s210, %s211
        %s213 = smul.addr %s212, 8
        %s214 = scalar_lea.vmem %s0, %s213
        %p215 = pneg %p51
        %p216 = pneg %p48
        %p217 = pneg %p72
        %p218 = pneg %p69
        %p219 = pneg %p93
        %p220 = pneg %p90
        %p221 = pneg %p114
        %p222 = pneg %p111
        %p223 = pneg %p142
        %p224 = pneg %p139
        %s225 = smul.u32 2, %s21
        %p226 = scmp.lt.s32.totalorder %s20, 1
        %s227 = scalar_select %p226, %s20, 1
        %p228 = scmp.lt.s32.totalorder %s225, 1
        %s229 = scalar_select %p228, %s225, 1
        %s230 = smul.addr %s227, 4
        %s231 = sadd.s32 %s229, %s230
        %s232 = smul.addr %s231, 8
        %s233 = scalar_lea.vmem %s4, %s232
        %s234 = smul.u32 2, %s21
        %p235 = scmp.lt.s32.totalorder %s20, 1
        %s236 = scalar_select %p235, %s20, 1
        %p237 = scmp.lt.s32.totalorder %s234, 1
        %s238 = scalar_select %p237, %s234, 1
        %s239 = smul.addr %s236, 4
        %s240 = sadd.s32 %s238, %s239
        %s241 = smul.addr %s240, 8
        %s242 = scalar_lea.vmem %s0, %s241
        %s243 = smul.u32 2, %s21
        %s244 = smul.u32 2, %s21
        %p245 = scmp.lt.s32.totalorder %s20, 1
        %s246 = scalar_select %p245, %s20, 1
        %p247 = scmp.lt.s32.totalorder %s244, 1
        %s248 = scalar_select %p247, %s244, 1
        %s249 = smul.addr %s246, 4
        %s250 = sadd.s32 %s248, %s249
        %s251 = smul.addr %s250, 8
        %s252 = scalar_lea.vmem %s4, %s251
        %s253 = smul.u32 2, %s21
        %v254 = vld [vmem:[%s242] sm:$0xff]
        %v255 = vld [vmem:[%s242 + $0x8] sm:$0xff]
        %v256 = vld [vmem:[%s242 + $0x10] sm:$0xff]
        %v257 = vld [vmem:[%s242 + $0x18] sm:$0xff]
        %v258 = vld [vmem:[#allocation2] sm:$0xff]
        %v259 = vld [vmem:[#allocation2 + $0x8] sm:$0xff]
        %vm260 = vcmask 130048
        %v262 = vsel %vm260, %v258, 0
        %v265 = vsel %vm260, %v259, 0
        %267 = vmatpush.msra.mxu0 0.0
        %268 = vmatpush.msra.mxu0 0.0
        %269 = vmatpush.msra.mxu0 0.0
        %270 = vmatpush.msra.mxu0 0.0
        %271 = vmatpush.msra.mxu0 0.0
        %272 = vmatpush.msra.mxu0 0.0
        %273 = vmatpush.msra.mxu0 0.0
        %274 = vmatpush.msra.mxu0 0.0
        %275 = vmatpush.msra.mxu0 0.0
        %276 = vmatpush.msra.mxu0 0.0
        %277 = vmatpush.msra.mxu0 0.0
        %278 = vmatpush.msra.mxu0 0.0
        %279 = vmatpush.msra.mxu0 0.0
        %280 = vmatpush.msra.mxu0 0.0
        %281 = vmatpush.msra.mxu0 %v256
        %282 = vmatpush.msra.mxu0 %v254
        %283 = vmatmul.f32.gmra.mxu0 %v262
        %v284 = vpop.f32.mrf.mxu0
        %v285 = vadd.f32 0.0, %v284
        %286 = vmatmul.f32.gmra.mxu0 %v265
        %v287 = vpop.f32.mrf.mxu0
        %v288 = vadd.f32 0.0, %v287
        %289 = vdwg.mxu0
        %290 = vmatpush.msra.mxu0 0.0
        %291 = vmatpush.msra.mxu0 0.0
        %292 = vmatpush.msra.mxu0 0.0
        %293 = vmatpush.msra.mxu0 0.0
        %294 = vmatpush.msra.mxu0 0.0
        %295 = vmatpush.msra.mxu0 0.0
        %296 = vmatpush.msra.mxu0 0.0
        %297 = vmatpush.msra.mxu0 0.0
        %298 = vmatpush.msra.mxu0 0.0
        %299 = vmatpush.msra.mxu0 0.0
        %300 = vmatpush.msra.mxu0 0.0
        %301 = vmatpush.msra.mxu0 0.0
        %302 = vmatpush.msra.mxu0 0.0
        %303 = vmatpush.msra.mxu0 0.0
        %304 = vmatpush.msra.mxu0 %v257
        %305 = vmatpush.msra.mxu0 %v255
        %306 = vmatmul.f32.gmra.mxu0 %v262
        %v307 = vpop.f32.mrf.mxu0
        %v308 = vadd.f32 0.0, %v307
        %309 = vmatmul.f32.gmra.mxu0 %v265
        %v310 = vpop.f32.mrf.mxu0
        %v311 = vadd.f32 0.0, %v310
        %312 = vdwg.mxu0
        %v313 = vld [vmem:[%s2] sm:$0xff]
        %v314 = vld [vmem:[%s2 + $0x8] sm:$0xff]
        %316 = vset.pattern.permute.xlu0 0
        %317 = vperm.xlu0 %316, %v313
        %v318 = vpop.permute.xlu0 %317
        %321 = vset.pattern.permute.xlu0 0
        %322 = vperm.xlu0 %321, %v314
        %v323 = vpop.permute.xlu0 %322
        %v325 = vmul.f32 %v285, %v318
        %v326 = vmul.f32 %v308, %v318
        %v327 = vmul.f32 %v288, %v323
        %v328 = vmul.f32 %v311, %v323
        %v329 = vld [vmem:[%s3] sm:$0xff]
        %v330 = vld [vmem:[%s3 + $0x8] sm:$0xff]
        %332 = vset.pattern.permute.xlu0 0
        %333 = vperm.xlu0 %332, %v329
        %v334 = vpop.permute.xlu0 %333
        %337 = vset.pattern.permute.xlu0 0
        %338 = vperm.xlu0 %337, %v330
        %v339 = vpop.permute.xlu0 %338
        %v341 = vadd.f32 %v325, %v334
        %v342 = vadd.f32 %v326, %v334
        %v343 = vadd.f32 %v327, %v339
        %v344 = vadd.f32 %v328, %v339
        %v345 = vsub.f32 0.0, %v341
        %v346 = vsub.f32 0.0, %v342
        %v347 = vsub.f32 0.0, %v343
        %v348 = vsub.f32 0.0, %v344
        %v349 = vmul.f32 %v345, 1.442695
        %v350 = vpow.pop %v349
        %v351 = vmul.f32 %v346, 1.442695
        %v352 = vpow.pop %v351
        %v353 = vmul.f32 %v347, 1.442695
        %v354 = vpow.pop %v353
        %v355 = vmul.f32 %v348, 1.442695
        %v356 = vpow.pop %v355
        %v357 = vadd.f32 %v350, 1.0
        %v358 = vadd.f32 %v352, 1.0
        %v359 = vadd.f32 %v354, 1.0
        %v360 = vadd.f32 %v356, 1.0
        %v361 = vrcp.pop %v357
        %v362 = vmul.f32 %v357, %v361
        %v363 = vsub.f32 1.0, %v362
        %v364 = vmul.f32 %v361, %v363
        %v365 = vadd.f32 %v361, %v364
        %vm366 = vweird.f32 %v357
        %vm367 = vweird.f32 %v361
        %vm368 = vmor %vm366, %vm367
        %v369 = vsel %vm368, %v361, %v365
        %v370 = vand.u32 2147483647, %v357
        %vm371 = vcmp.eq.f32.partialorder %v370, 8.507059e+37
        %v372 = vand.u32 %v357, 2147483648
        %v373 = vor.u32 1.1754944e-38, %v372
        %v374 = vsel %vm371, %v373, %v369
        %v375 = vmul.f32 1.0, %v374
        %v376 = vrcp.pop %v358
        %v377 = vmul.f32 %v358, %v376
        %v378 = vsub.f32 1.0, %v377
        %v379 = vmul.f32 %v376, %v378
        %v380 = vadd.f32 %v376, %v379
        %vm381 = vweird.f32 %v358
        %vm382 = vweird.f32 %v376
        %vm383 = vmor %vm381, %vm382
        %v384 = vsel %vm383, %v376, %v380
        %v385 = vand.u32 2147483647, %v358
        %vm386 = vcmp.eq.f32.partialorder %v385, 8.507059e+37
        %v387 = vand.u32 %v358, 2147483648
        %v388 = vor.u32 1.1754944e-38, %v387
        %v389 = vsel %vm386, %v388, %v384
        %v390 = vmul.f32 1.0, %v389
        %v391 = vrcp.pop %v359
        %v392 = vmul.f32 %v359, %v391
        %v393 = vsub.f32 1.0, %v392
        %v394 = vmul.f32 %v391, %v393
        %v395 = vadd.f32 %v391, %v394
        %vm396 = vweird.f32 %v359
        %vm397 = vweird.f32 %v391
        %vm398 = vmor %vm396, %vm397
        %v399 = vsel %vm398, %v391, %v395
        %v400 = vand.u32 2147483647, %v359
        %vm401 = vcmp.eq.f32.partialorder %v400, 8.507059e+37
        %v402 = vand.u32 %v359, 2147483648
        %v403 = vor.u32 1.1754944e-38, %v402
        %v404 = vsel %vm401, %v403, %v399
        %v405 = vmul.f32 1.0, %v404
        %v406 = vrcp.pop %v360
        %v407 = vmul.f32 %v360, %v406
        %v408 = vsub.f32 1.0, %v407
        %v409 = vmul.f32 %v406, %v408
        %v410 = vadd.f32 %v406, %v409
        %vm411 = vweird.f32 %v360
        %vm412 = vweird.f32 %v406
        %vm413 = vmor %vm411, %vm412
        %v414 = vsel %vm413, %v406, %v410
        %v415 = vand.u32 2147483647, %v360
        %vm416 = vcmp.eq.f32.partialorder %v415, 8.507059e+37
        %v417 = vand.u32 %v360, 2147483648
        %v418 = vor.u32 1.1754944e-38, %v417
        %v419 = vsel %vm416, %v418, %v414
        %v420 = vmul.f32 1.0, %v419
        %v421 = vmul.f32 %v341, %v375
        %v422 = vmul.f32 %v342, %v390
        %v423 = vmul.f32 %v343, %v405
        %v424 = vmul.f32 %v344, %v420
        %425 = vst [vmem:[%s252] sm:$0xff] %v421
        %426 = vst [vmem:[%s252 + $0x8] sm:$0xff] %v422
        %427 = vst [vmem:[%s252 + $0x10] sm:$0xff] %v423
        %428 = vst [vmem:[%s252 + $0x18] sm:$0xff] %v424
        %s429 = smul.u32 2, %s21
        %p430 = scmp.lt.s32.totalorder %s20, 1
        %s431 = scalar_select %p430, %s20, 1
        %p432 = scmp.lt.s32.totalorder %s429, 1
        %s433 = scalar_select %p432, %s429, 1
        %s434 = smul.addr %s431, 4
        %s435 = sadd.s32 %s433, %s434
        %s436 = smul.addr %s435, 8
        %s437 = scalar_lea.vmem %s4, %s436
        // Predicated region
        $region41: #{c3x_forward_pallas.10} parent=35 // pred_check
          %p438 = pneg %p139
        $region42: #{c3x_forward_pallas.10} parent=35 // pred_check_branch
          %440 = sbr.rel (%p438) target = $region44
        $region43: #{c3x_forward_pallas.10} parent=35 // pred_region
          %s441 = smul.u32 2, %s21
        $region44: #{c3x_forward_pallas.10} parent=35 // pred_fallthru
          _
      $region36: #{c3x_forward_pallas.10} parent=5 // pred_fallthru
        _
      %p442 = scmp.le.s32.totalorder 2, %s11
      // Predicated region
      $region45: #{c3x_forward_pallas.10} parent=5 // pred_check
        %p443 = pneg %p442
      $region46: #{c3x_forward_pallas.10} parent=5 // pred_check_branch
        %445 = sbr.rel (%p443) target = $region48
      $region47: #{c3x_forward_pallas.10} parent=5 // pred_region
        %s446 = ssub.s32 %s11, 2
        // Predicated region
        $region49: #{c3x_forward_pallas.10} parent=47 // pred_check
          %p447 = pneg %p145
        $region50: #{c3x_forward_pallas.10} parent=47 // pred_check_branch
          %449 = sbr.rel (%p447) target = $region52
        $region51: #{c3x_forward_pallas.10} parent=47 // pred_region
          %s450 = smul.u32 2, %s23
          %p451 = scmp.lt.s32.totalorder %s22, 1
          %s452 = scalar_select %p451, %s22, 1
          %p453 = scmp.lt.s32.totalorder %s450, 1
          %s454 = scalar_select %p453, %s450, 1
          %s455 = smul.addr %s452, 4
          %s456 = sadd.s32 %s454, %s455
          %s457 = smul.addr %s456, 8
          %s458 = scalar_lea.vmem %s4, %s457
        $region52: #{c3x_forward_pallas.10} parent=47 // pred_fallthru
          _
      $region48: #{c3x_forward_pallas.10} parent=5 // pred_fallthru
        _
    $region6: #{c3x_forward_pallas.10} parent=1 // loop_footer
      %s15 = sadd.s32 1, %s11
    $region7: #{c3x_forward_pallas.10} parent=1 // loop_footer_branch
      %10 = sbr.rel target = $region3
    $region8: #{c3x_forward_pallas.10} parent=1 // loop_exit
      _
    %459 = vsyncpa [#allocation3], 1
    %s460 = scalar_lea.sflag [#allocation3], 1
    %461 = vsyncpa %s460, 1

// kernel: c3x_forward_pallas.8
$region0: #{c3x_forward_pallas.8}
  #allocation0 [shape = 'u32[]', space=smem, size = 0x4, offset = 0x4, fixed_abs, tag = 'smem constant byte address 0x4 - core index']
  #allocation1 [shape = 'u32[72,128]{1,0:T(1,128)}', space=vmem, size = 0x9000, scoped, tag = 'internal scratch']
  %s0 = inlined_call_operand.vmem [shape: f32[2,32,256], index: 0, kind: input, shape index: {}]
  %s1 = inlined_call_operand.hbm [shape: f32[16,32], index: 1, kind: input, shape index: {}]
  %s2 = inlined_call_operand.vmem [shape: f32[16,1], index: 2, kind: input, shape index: {}]
  %s3 = inlined_call_operand.vmem [shape: f32[16,1], index: 3, kind: input, shape index: {}]
  %s4 = inlined_call_operand.vmem [shape: f32[2,16,256], index: 4, kind: output, shape index: {}]
  %s5 = sld [smem:[#allocation0]]
  $region53: #{c3x_forward_pallas.8} parent=0
    _
  %s7 = ssub.s32 1, %s5
  %s8 = scalar_select 0, %s7, %s5
  $region1: #{c3x_forward_pallas.8} parent=0
    #allocation2 [shape = 'u8[8192]{0}', space=vmem, size = 0x2000, scoped, tag = 'input window, operand 1, single buffered']
    #allocation3 [shape = 's32[2]{0}', space=sflag, size = 0x8, scoped, tag = 'scoped memory for c3x_forward_pallas.8']
    %9 = vsyncpa [#allocation3], 0
    loop: start=0, step=1, limit=4
    $region2: #{c3x_forward_pallas.8} parent=1 // loop_pre_header
      _
    $region3: #{c3x_forward_pallas.8} parent=1 // loop_header
      %s11 = sphi 0, %s15
      %p12 = scmp.ge.s32.totalorder %s11, 4
      %s18 = sphi 0, %s30
      %s19 = sphi 0, %s26
      %s20 = sphi 0, %s18
      %s21 = sphi 0, %s19
      %s22 = sphi 0, %s20
      %s23 = sphi 0, %s21
      %s35 = sphi 0, %s37
      %s38 = sphi 0, %s35
      %s39 = sphi 0, %s38
      %s55 = sphi 0, %s39
      %s59 = sphi 0, %s59
      %s61 = sphi 0, %s59
      %s62 = sphi 0, %s61
      %s76 = sphi 0, %s62
      %s80 = sphi 0, %s80
      %s82 = sphi 0, %s80
      %s83 = sphi 0, %s82
      %s97 = sphi 0, %s83
      %s101 = sphi 0, %s101
      %s103 = sphi 0, %s101
      %s104 = sphi 0, %s103
      %s118 = sphi 0, %s104
      %s126 = sphi 0, %s128
      %s129 = sphi 0, %s126
      %s130 = sphi 0, %s129
      %s146 = sphi 0, %s130
    $region4: #{c3x_forward_pallas.8} parent=1 // loop_header_branch
      %14 = sbr.rel (%p12) target = $region8
    $region5: #{c3x_forward_pallas.8} parent=1 // loop_body
      %s16 = ssub.s32 %s11, 1
      %s17 = ssub.s32 %s11, 2
      %s24 = sadd.s32 1, %s19
      %p25 = scmp.ge.s32.totalorder %s24, 1
      %s26 = scalar_select %p25, 0, %s24
      %s27 = sadd.s32 1, %s18
      %s28 = scalar_select %p25, %s27, %s18
      %p29 = scmp.ge.s32.totalorder %s28, 2
      %s30 = scalar_select %p29, 0, %s28
      %s31 = ssub.s32 %s18, %s30
      %s32 = ssub.s32 %s19, %s26
      %s33 = sor.u32 %s31, %s32
      %p34 = scmp.eq.s32.totalorder %s33, 0
      %s36 = sadd.s32 %s35, 1
      %s37 = scalar_select %p34, %s35, %s36
      %p40 = pneg %p34
      %p41 = scmp.eq.s32.totalorder %s11, 1
      %p42 = por %p40, %p41
      %p43 = scmp.ne.s32.totalorder %s35, %s38
      %p44 = scmp.eq.s32.totalorder %s11, 0
      %p45 = por %p43, %p44
      %p46 = scmp.ne.s32.totalorder %s35, %s38
      %p47 = scmp.eq.s32.totalorder %s16, 1
      %p48 = por %p46, %p47
      %p49 = scmp.ne.s32.totalorder %s38, %s39
      %p50 = scmp.eq.s32.totalorder %s16, 0
      %p51 = por %p49, %p50
      %p52 = scmp.ne.s32.totalorder %s38, %s39
      %p53 = scmp.eq.s32.totalorder %s17, 1
      %p54 = por %p52, %p53
      %p56 = scmp.ne.s32.totalorder %s39, %s55
      %p57 = scmp.eq.s32.totalorder %s17, 0
      %p58 = por %p56, %p57
      %s60 = sadd.s32 %s59, 1
      %p63 = scmp.eq.s32.totalorder %s11, 1
      %p64 = scmp.ne.s32.totalorder %s59, %s61
      %p65 = scmp.eq.s32.totalorder %s11, 0
      %p66 = por %p64, %p65
      %p67 = scmp.ne.s32.totalorder %s59, %s61
      %p68 = scmp.eq.s32.totalorder %s16, 1
      %p69 = por %p67, %p68
      %p70 = scmp.ne.s32.totalorder %s61, %s62
      %p71 = scmp.eq.s32.totalorder %s16, 0
      %p72 = por %p70, %p71
      %p73 = scmp.ne.s32.totalorder %s61, %s62
      %p74 = scmp.eq.s32.totalorder %s17, 1
      %p75 = por %p73, %p74
      %p77 = scmp.ne.s32.totalorder %s62, %s76
      %p78 = scmp.eq.s32.totalorder %s17, 0
      %p79 = por %p77, %p78
      %s81 = sadd.s32 %s80, 1
      %p84 = scmp.eq.s32.totalorder %s11, 1
      %p85 = scmp.ne.s32.totalorder %s80, %s82
      %p86 = scmp.eq.s32.totalorder %s11, 0
      %p87 = por %p85, %p86
      %p88 = scmp.ne.s32.totalorder %s80, %s82
      %p89 = scmp.eq.s32.totalorder %s16, 1
      %p90 = por %p88, %p89
      %p91 = scmp.ne.s32.totalorder %s82, %s83
      %p92 = scmp.eq.s32.totalorder %s16, 0
      %p93 = por %p91, %p92
      %p94 = scmp.ne.s32.totalorder %s82, %s83
      %p95 = scmp.eq.s32.totalorder %s17, 1
      %p96 = por %p94, %p95
      %p98 = scmp.ne.s32.totalorder %s83, %s97
      %p99 = scmp.eq.s32.totalorder %s17, 0
      %p100 = por %p98, %p99
      %s102 = sadd.s32 %s101, 1
      %p105 = scmp.eq.s32.totalorder %s11, 1
      %p106 = scmp.ne.s32.totalorder %s101, %s103
      %p107 = scmp.eq.s32.totalorder %s11, 0
      %p108 = por %p106, %p107
      %p109 = scmp.ne.s32.totalorder %s101, %s103
      %p110 = scmp.eq.s32.totalorder %s16, 1
      %p111 = por %p109, %p110
      %p112 = scmp.ne.s32.totalorder %s103, %s104
      %p113 = scmp.eq.s32.totalorder %s16, 0
      %p114 = por %p112, %p113
      %p115 = scmp.ne.s32.totalorder %s103, %s104
      %p116 = scmp.eq.s32.totalorder %s17, 1
      %p117 = por %p115, %p116
      %p119 = scmp.ne.s32.totalorder %s104, %s118
      %p120 = scmp.eq.s32.totalorder %s17, 0
      %p121 = por %p119, %p120
      %s122 = ssub.s32 %s18, %s30
      %s123 = ssub.s32 %s19, %s26
      %s124 = sor.u32 %s122, %s123
      %p125 = scmp.eq.s32.totalorder %s124, 0
      %s127 = sadd.s32 %s126, 1
      %s128 = scalar_select %p125, %s126, %s127
      %p131 = pneg %p125
      %p132 = scmp.eq.s32.totalorder %s11, 1
      %p133 = por %p131, %p132
      %p134 = scmp.ne.s32.totalorder %s126, %s129
      %p135 = scmp.eq.s32.totalorder %s11, 0
      %p136 = por %p134, %p135
      %p137 = scmp.ne.s32.totalorder %s126, %s129
      %p138 = scmp.eq.s32.totalorder %s16, 1
      %p139 = por %p137, %p138
      %p140 = scmp.ne.s32.totalorder %s129, %s130
      %p141 = scmp.eq.s32.totalorder %s16, 0
      %p142 = por %p140, %p141
      %p143 = scmp.ne.s32.totalorder %s129, %s130
      %p144 = scmp.eq.s32.totalorder %s17, 1
      %p145 = por %p143, %p144
      %p147 = scmp.ne.s32.totalorder %s130, %s146
      %p148 = scmp.eq.s32.totalorder %s17, 0
      %p149 = por %p147, %p148
      %p150 = scmp.le.s32.totalorder 1, %s11
      %p151 = scmp.lt.s32.totalorder %s11, 3
      %p152 = pnand %p150, %p151
      %p153 = pneg %p152
      // Predicated region
      $region9: #{c3x_forward_pallas.8} parent=5 // pred_check
        _
      $region10: #{c3x_forward_pallas.8} parent=5 // pred_check_branch
        %155 = sbr.rel (%p152) target = $region12
      $region11: #{c3x_forward_pallas.8} parent=5 // pred_region
        %s156 = ssub.s32 %s11, 1
        // Predicated region
        $region13: #{c3x_forward_pallas.8} parent=11 // pred_check
          %p157 = pneg %p72
        $region14: #{c3x_forward_pallas.8} parent=11 // pred_check_branch
          %159 = sbr.rel (%p157) target = $region16
        $region15: #{c3x_forward_pallas.8} parent=11 // pred_region
          %161 = vsyncadd [#allocation3], 0
          %s162 = sshll.u32 %s1, 4
          %s163 = int_to_ptr.hbm [resolvable:$true] %s162
          %s164 = sshll.u32 [#allocation2], 4
          %s165 = int_to_ptr.vmem [resolvable:$true] %s164
          %170 = dma.hbm_to_vmem [thread:$0]  %s163, 256, %s165, [#allocation3], 128, 128, 8
        $region16: #{c3x_forward_pallas.8} parent=11 // pred_fallthru
          _
        // Predicated region
        $region17: #{c3x_forward_pallas.8} parent=11 // pred_check
          %p171 = pneg %p93
        $region18: #{c3x_forward_pallas.8} parent=11 // pred_check_branch
          %173 = sbr.rel (%p171) target = $region20
        $region19: #{c3x_forward_pallas.8} parent=11 // pred_region
          _
        $region20: #{c3x_forward_pallas.8} parent=11 // pred_fallthru
          _
        // Predicated region
        $region21: #{c3x_forward_pallas.8} parent=11 // pred_check
          %p174 = pneg %p114
        $region22: #{c3x_forward_pallas.8} parent=11 // pred_check_branch
          %176 = sbr.rel (%p174) target = $region24
        $region23: #{c3x_forward_pallas.8} parent=11 // pred_region
          _
        $region24: #{c3x_forward_pallas.8} parent=11 // pred_fallthru
          _
      $region12: #{c3x_forward_pallas.8} parent=5 // pred_fallthru
        _
      %p177 = scmp.lt.s32.totalorder %s11, 2
      // Predicated region
      $region25: #{c3x_forward_pallas.8} parent=5 // pred_check
        %p178 = pneg %p177
      $region26: #{c3x_forward_pallas.8} parent=5 // pred_check_branch
        %180 = sbr.rel (%p178) target = $region28
      $region27: #{c3x_forward_pallas.8} parent=5 // pred_region
        // Predicated region
        $region29: #{c3x_forward_pallas.8} parent=27 // pred_check
          %p181 = pneg %p45
        $region30: #{c3x_forward_pallas.8} parent=27 // pred_check_branch
          %183 = sbr.rel (%p181) target = $region32
        $region31: #{c3x_forward_pallas.8} parent=27 // pred_region
          %s184 = smul.u32 2, %s19
          %p185 = scmp.lt.s32.totalorder %s18, 1
          %s186 = scalar_select %p185, %s18, 1
          %p187 = scmp.lt.s32.totalorder %s184, 1
          %s188 = scalar_select %p187, %s184, 1
          %s189 = smul.addr %s186, 8
          %s190 = sadd.s32 %s188, %s189
          %s191 = smul.addr %s190, 8
          %s192 = scalar_lea.vmem %s0, %s191
          %s193 = smul.u32 2, %s19
        $region32: #{c3x_forward_pallas.8} parent=27 // pred_fallthru
          _
      $region28: #{c3x_forward_pallas.8} parent=5 // pred_fallthru
        _
      %p194 = scmp.le.s32.totalorder 1, %s11
      %p195 = scmp.lt.s32.totalorder %s11, 3
      %p196 = pnand %p194, %p195
      %p197 = pneg %p196
      // Predicated region
      $region33: #{c3x_forward_pallas.8} parent=5 // pred_check
        _
      $region34: #{c3x_forward_pallas.8} parent=5 // pred_check_branch
        %199 = sbr.rel (%p196) target = $region36
      $region35: #{c3x_forward_pallas.8} parent=5 // pred_region
        %s200 = ssub.s32 %s11, 1
        // Predicated region
        $region37: #{c3x_forward_pallas.8} parent=35 // pred_check
          %p201 = pneg %p72
        $region38: #{c3x_forward_pallas.8} parent=35 // pred_check_branch
          %203 = sbr.rel (%p201) target = $region40
        $region39: #{c3x_forward_pallas.8} parent=35 // pred_region
          %205 = dma.done [#allocation3], 256
        $region40: #{c3x_forward_pallas.8} parent=35 // pred_fallthru
          _
        %s206 = smul.u32 2, %s21
        %p207 = scmp.lt.s32.totalorder %s20, 1
        %s208 = scalar_select %p207, %s20, 1
        %p209 = scmp.lt.s32.totalorder %s206, 1
        %s210 = scalar_select %p209, %s206, 1
        %s211 = smul.addr %s208, 8
        %s212 = sadd.s32 %s210, %s211
        %s213 = smul.addr %s212, 8
        %s214 = scalar_lea.vmem %s0, %s213
        %p215 = pneg %p51
        %p216 = pneg %p48
        %p217 = pneg %p72
        %p218 = pneg %p69
        %p219 = pneg %p93
        %p220 = pneg %p90
        %p221 = pneg %p114
        %p222 = pneg %p111
        %p223 = pneg %p142
        %p224 = pneg %p139
        %s225 = smul.u32 2, %s21
        %p226 = scmp.lt.s32.totalorder %s20, 1
        %s227 = scalar_select %p226, %s20, 1
        %p228 = scmp.lt.s32.totalorder %s225, 1
        %s229 = scalar_select %p228, %s225, 1
        %s230 = smul.addr %s227, 4
        %s231 = sadd.s32 %s229, %s230
        %s232 = smul.addr %s231, 8
        %s233 = scalar_lea.vmem %s4, %s232
        %s234 = smul.u32 2, %s21
        %p235 = scmp.lt.s32.totalorder %s20, 1
        %s236 = scalar_select %p235, %s20, 1
        %p237 = scmp.lt.s32.totalorder %s234, 1
        %s238 = scalar_select %p237, %s234, 1
        %s239 = smul.addr %s236, 8
        %s240 = sadd.s32 %s238, %s239
        %s241 = smul.addr %s240, 8
        %s242 = scalar_lea.vmem %s0, %s241
        %s243 = smul.u32 2, %s21
        %s244 = smul.u32 2, %s21
        %p245 = scmp.lt.s32.totalorder %s20, 1
        %s246 = scalar_select %p245, %s20, 1
        %p247 = scmp.lt.s32.totalorder %s244, 1
        %s248 = scalar_select %p247, %s244, 1
        %s249 = smul.addr %s246, 4
        %s250 = sadd.s32 %s248, %s249
        %s251 = smul.addr %s250, 8
        %s252 = scalar_lea.vmem %s4, %s251
        %s253 = smul.u32 2, %s21
        %v254 = vld [vmem:[%s242] sm:$0xff]
        %v255 = vld [vmem:[%s242 + $0x8] sm:$0xff]
        %v256 = vld [vmem:[%s242 + $0x10] sm:$0xff]
        %v257 = vld [vmem:[%s242 + $0x18] sm:$0xff]
        %v258 = vld [vmem:[%s242 + $0x20] sm:$0xff]
        %v259 = vld [vmem:[%s242 + $0x28] sm:$0xff]
        %v260 = vld [vmem:[%s242 + $0x30] sm:$0xff]
        %v261 = vld [vmem:[%s242 + $0x38] sm:$0xff]
        %v262 = vld [vmem:[#allocation2] sm:$0xff]
        %v263 = vld [vmem:[#allocation2 + $0x8] sm:$0xff]
        %vm264 = vcmask 261120
        %v266 = vsel %vm264, %v262, 0
        %v269 = vsel %vm264, %v263, 0
        %271 = vmatpush.msra.mxu0 0.0
        %272 = vmatpush.msra.mxu0 0.0
        %273 = vmatpush.msra.mxu0 0.0
        %274 = vmatpush.msra.mxu0 0.0
        %275 = vmatpush.msra.mxu0 0.0
        %276 = vmatpush.msra.mxu0 0.0
        %277 = vmatpush.msra.mxu0 0.0
        %278 = vmatpush.msra.mxu0 0.0
        %279 = vmatpush.msra.mxu0 0.0
        %280 = vmatpush.msra.mxu0 0.0
        %281 = vmatpush.msra.mxu0 0.0
        %282 = vmatpush.msra.mxu0 0.0
        %283 = vmatpush.msra.mxu0 %v260
        %284 = vmatpush.msra.mxu0 %v258
        %285 = vmatpush.msra.mxu0 %v256
        %286 = vmatpush.msra.mxu0 %v254
        %287 = vmatmul.f32.gmra.mxu0 %v266
        %v288 = vpop.f32.mrf.mxu0
        %v289 = vadd.f32 0.0, %v288
        %290 = vmatmul.f32.gmra.mxu0 %v269
        %v291 = vpop.f32.mrf.mxu0
        %v292 = vadd.f32 0.0, %v291
        %293 = vdwg.mxu0
        %294 = vmatpush.msra.mxu0 0.0
        %295 = vmatpush.msra.mxu0 0.0
        %296 = vmatpush.msra.mxu0 0.0
        %297 = vmatpush.msra.mxu0 0.0
        %298 = vmatpush.msra.mxu0 0.0
        %299 = vmatpush.msra.mxu0 0.0
        %300 = vmatpush.msra.mxu0 0.0
        %301 = vmatpush.msra.mxu0 0.0
        %302 = vmatpush.msra.mxu0 0.0
        %303 = vmatpush.msra.mxu0 0.0
        %304 = vmatpush.msra.mxu0 0.0
        %305 = vmatpush.msra.mxu0 0.0
        %306 = vmatpush.msra.mxu0 %v261
        %307 = vmatpush.msra.mxu0 %v259
        %308 = vmatpush.msra.mxu0 %v257
        %309 = vmatpush.msra.mxu0 %v255
        %310 = vmatmul.f32.gmra.mxu0 %v266
        %v311 = vpop.f32.mrf.mxu0
        %v312 = vadd.f32 0.0, %v311
        %313 = vmatmul.f32.gmra.mxu0 %v269
        %v314 = vpop.f32.mrf.mxu0
        %v315 = vadd.f32 0.0, %v314
        %316 = vdwg.mxu0
        %v317 = vld [vmem:[%s2] sm:$0xff]
        %v318 = vld [vmem:[%s2 + $0x8] sm:$0xff]
        %320 = vset.pattern.permute.xlu0 0
        %321 = vperm.xlu0 %320, %v317
        %v322 = vpop.permute.xlu0 %321
        %325 = vset.pattern.permute.xlu0 0
        %326 = vperm.xlu0 %325, %v318
        %v327 = vpop.permute.xlu0 %326
        %v329 = vmul.f32 %v289, %v322
        %v330 = vmul.f32 %v312, %v322
        %v331 = vmul.f32 %v292, %v327
        %v332 = vmul.f32 %v315, %v327
        %v333 = vld [vmem:[%s3] sm:$0xff]
        %v334 = vld [vmem:[%s3 + $0x8] sm:$0xff]
        %336 = vset.pattern.permute.xlu0 0
        %337 = vperm.xlu0 %336, %v333
        %v338 = vpop.permute.xlu0 %337
        %341 = vset.pattern.permute.xlu0 0
        %342 = vperm.xlu0 %341, %v334
        %v343 = vpop.permute.xlu0 %342
        %v345 = vadd.f32 %v329, %v338
        %v346 = vadd.f32 %v330, %v338
        %v347 = vadd.f32 %v331, %v343
        %v348 = vadd.f32 %v332, %v343
        %v349 = vsub.f32 0.0, %v345
        %v350 = vsub.f32 0.0, %v346
        %v351 = vsub.f32 0.0, %v347
        %v352 = vsub.f32 0.0, %v348
        %v353 = vmul.f32 %v349, 1.442695
        %v354 = vpow.pop %v353
        %v355 = vmul.f32 %v350, 1.442695
        %v356 = vpow.pop %v355
        %v357 = vmul.f32 %v351, 1.442695
        %v358 = vpow.pop %v357
        %v359 = vmul.f32 %v352, 1.442695
        %v360 = vpow.pop %v359
        %v361 = vadd.f32 %v354, 1.0
        %v362 = vadd.f32 %v356, 1.0
        %v363 = vadd.f32 %v358, 1.0
        %v364 = vadd.f32 %v360, 1.0
        %v365 = vrcp.pop %v361
        %v366 = vmul.f32 %v361, %v365
        %v367 = vsub.f32 1.0, %v366
        %v368 = vmul.f32 %v365, %v367
        %v369 = vadd.f32 %v365, %v368
        %vm370 = vweird.f32 %v361
        %vm371 = vweird.f32 %v365
        %vm372 = vmor %vm370, %vm371
        %v373 = vsel %vm372, %v365, %v369
        %v374 = vand.u32 2147483647, %v361
        %vm375 = vcmp.eq.f32.partialorder %v374, 8.507059e+37
        %v376 = vand.u32 %v361, 2147483648
        %v377 = vor.u32 1.1754944e-38, %v376
        %v378 = vsel %vm375, %v377, %v373
        %v379 = vmul.f32 1.0, %v378
        %v380 = vrcp.pop %v362
        %v381 = vmul.f32 %v362, %v380
        %v382 = vsub.f32 1.0, %v381
        %v383 = vmul.f32 %v380, %v382
        %v384 = vadd.f32 %v380, %v383
        %vm385 = vweird.f32 %v362
        %vm386 = vweird.f32 %v380
        %vm387 = vmor %vm385, %vm386
        %v388 = vsel %vm387, %v380, %v384
        %v389 = vand.u32 2147483647, %v362
        %vm390 = vcmp.eq.f32.partialorder %v389, 8.507059e+37
        %v391 = vand.u32 %v362, 2147483648
        %v392 = vor.u32 1.1754944e-38, %v391
        %v393 = vsel %vm390, %v392, %v388
        %v394 = vmul.f32 1.0, %v393
        %v395 = vrcp.pop %v363
        %v396 = vmul.f32 %v363, %v395
        %v397 = vsub.f32 1.0, %v396
        %v398 = vmul.f32 %v395, %v397
        %v399 = vadd.f32 %v395, %v398
        %vm400 = vweird.f32 %v363
        %vm401 = vweird.f32 %v395
        %vm402 = vmor %vm400, %vm401
        %v403 = vsel %vm402, %v395, %v399
        %v404 = vand.u32 2147483647, %v363
        %vm405 = vcmp.eq.f32.partialorder %v404, 8.507059e+37
        %v406 = vand.u32 %v363, 2147483648
        %v407 = vor.u32 1.1754944e-38, %v406
        %v408 = vsel %vm405, %v407, %v403
        %v409 = vmul.f32 1.0, %v408
        %v410 = vrcp.pop %v364
        %v411 = vmul.f32 %v364, %v410
        %v412 = vsub.f32 1.0, %v411
        %v413 = vmul.f32 %v410, %v412
        %v414 = vadd.f32 %v410, %v413
        %vm415 = vweird.f32 %v364
        %vm416 = vweird.f32 %v410
        %vm417 = vmor %vm415, %vm416
        %v418 = vsel %vm417, %v410, %v414
        %v419 = vand.u32 2147483647, %v364
        %vm420 = vcmp.eq.f32.partialorder %v419, 8.507059e+37
        %v421 = vand.u32 %v364, 2147483648
        %v422 = vor.u32 1.1754944e-38, %v421
        %v423 = vsel %vm420, %v422, %v418
        %v424 = vmul.f32 1.0, %v423
        %v425 = vmul.f32 %v345, %v379
        %v426 = vmul.f32 %v346, %v394
        %v427 = vmul.f32 %v347, %v409
        %v428 = vmul.f32 %v348, %v424
        %429 = vst [vmem:[%s252] sm:$0xff] %v425
        %430 = vst [vmem:[%s252 + $0x8] sm:$0xff] %v426
        %431 = vst [vmem:[%s252 + $0x10] sm:$0xff] %v427
        %432 = vst [vmem:[%s252 + $0x18] sm:$0xff] %v428
        %s433 = smul.u32 2, %s21
        %p434 = scmp.lt.s32.totalorder %s20, 1
        %s435 = scalar_select %p434, %s20, 1
        %p436 = scmp.lt.s32.totalorder %s433, 1
        %s437 = scalar_select %p436, %s433, 1
        %s438 = smul.addr %s435, 4
        %s439 = sadd.s32 %s437, %s438
        %s440 = smul.addr %s439, 8
        %s441 = scalar_lea.vmem %s4, %s440
        // Predicated region
        $region41: #{c3x_forward_pallas.8} parent=35 // pred_check
          %p442 = pneg %p139
        $region42: #{c3x_forward_pallas.8} parent=35 // pred_check_branch
          %444 = sbr.rel (%p442) target = $region44
        $region43: #{c3x_forward_pallas.8} parent=35 // pred_region
          %s445 = smul.u32 2, %s21
        $region44: #{c3x_forward_pallas.8} parent=35 // pred_fallthru
          _
      $region36: #{c3x_forward_pallas.8} parent=5 // pred_fallthru
        _
      %p446 = scmp.le.s32.totalorder 2, %s11
      // Predicated region
      $region45: #{c3x_forward_pallas.8} parent=5 // pred_check
        %p447 = pneg %p446
      $region46: #{c3x_forward_pallas.8} parent=5 // pred_check_branch
        %449 = sbr.rel (%p447) target = $region48
      $region47: #{c3x_forward_pallas.8} parent=5 // pred_region
        %s450 = ssub.s32 %s11, 2
        // Predicated region
        $region49: #{c3x_forward_pallas.8} parent=47 // pred_check
          %p451 = pneg %p145
        $region50: #{c3x_forward_pallas.8} parent=47 // pred_check_branch
          %453 = sbr.rel (%p451) target = $region52
        $region51: #{c3x_forward_pallas.8} parent=47 // pred_region
          %s454 = smul.u32 2, %s23
          %p455 = scmp.lt.s32.totalorder %s22, 1
          %s456 = scalar_select %p455, %s22, 1
          %p457 = scmp.lt.s32.totalorder %s454, 1
          %s458 = scalar_select %p457, %s454, 1
          %s459 = smul.addr %s456, 4
          %s460 = sadd.s32 %s458, %s459
          %s461 = smul.addr %s460, 8
          %s462 = scalar_lea.vmem %s4, %s461
        $region52: #{c3x_forward_pallas.8} parent=47 // pred_fallthru
          _
      $region48: #{c3x_forward_pallas.8} parent=5 // pred_fallthru
        _
    $region6: #{c3x_forward_pallas.8} parent=1 // loop_footer
      %s15 = sadd.s32 1, %s11
    $region7: #{c3x_forward_pallas.8} parent=1 // loop_footer_branch
      %10 = sbr.rel target = $region3
    $region8: #{c3x_forward_pallas.8} parent=1 // loop_exit
      _
    %463 = vsyncpa [#allocation3], 1
    %s464 = scalar_lea.sflag [#allocation3], 1
    %465 = vsyncpa %s464, 1

// kernel: c3x_forward_pallas.11
$region0: #{c3x_forward_pallas.11}
  #allocation0 [shape = 'u32[]', space=smem, size = 0x4, offset = 0x4, fixed_abs, tag = 'smem constant byte address 0x4 - core index']
  #allocation1 [shape = 'u32[72,128]{1,0:T(1,128)}', space=vmem, size = 0x9000, scoped, tag = 'internal scratch']
  %s0 = inlined_call_operand.vmem [shape: f32[2,144,256], index: 0, kind: input, shape index: {}]
  %s1 = inlined_call_operand.vmem [shape: f32[16,144], index: 1, kind: input, shape index: {}]
  %s2 = inlined_call_operand.vmem [shape: f32[16,1], index: 2, kind: input, shape index: {}]
  %s3 = inlined_call_operand.vmem [shape: f32[16,1], index: 3, kind: input, shape index: {}]
  %s4 = inlined_call_operand.vmem [shape: f32[2,16,256], index: 4, kind: input, shape index: {}]
  %s5 = inlined_call_operand.vmem [shape: f32[2,16,256], index: 5, kind: output, shape index: {}]
  %s6 = sld [smem:[#allocation0]]
  $region53: #{c3x_forward_pallas.11} parent=0
    _
  %s8 = ssub.s32 1, %s6
  %s9 = scalar_select 0, %s8, %s6
  loop: start=0, step=1, limit=4
  $region2: #{c3x_forward_pallas.11} parent=0 // loop_pre_header
    _
  $region3: #{c3x_forward_pallas.11} parent=0 // loop_header
    %s11 = sphi 0, %s15
    %p12 = scmp.ge.s32.totalorder %s11, 4
    %s18 = sphi 0, %s30
    %s19 = sphi 0, %s26
    %s20 = sphi 0, %s18
    %s21 = sphi 0, %s19
    %s22 = sphi 0, %s20
    %s23 = sphi 0, %s21
    %s35 = sphi 0, %s37
    %s38 = sphi 0, %s35
    %s39 = sphi 0, %s38
    %s55 = sphi 0, %s39
    %s59 = sphi 0, %s59
    %s61 = sphi 0, %s59
    %s62 = sphi 0, %s61
    %s76 = sphi 0, %s62
    %s80 = sphi 0, %s80
    %s82 = sphi 0, %s80
    %s83 = sphi 0, %s82
    %s97 = sphi 0, %s83
    %s101 = sphi 0, %s101
    %s103 = sphi 0, %s101
    %s104 = sphi 0, %s103
    %s118 = sphi 0, %s104
    %s126 = sphi 0, %s128
    %s129 = sphi 0, %s126
    %s130 = sphi 0, %s129
    %s146 = sphi 0, %s130
    %s154 = sphi 0, %s156
    %s157 = sphi 0, %s154
    %s158 = sphi 0, %s157
    %s174 = sphi 0, %s158
  $region4: #{c3x_forward_pallas.11} parent=0 // loop_header_branch
    %14 = sbr.rel (%p12) target = $region8
  $region5: #{c3x_forward_pallas.11} parent=0 // loop_body
    %s16 = ssub.s32 %s11, 1
    %s17 = ssub.s32 %s11, 2
    %s24 = sadd.s32 1, %s19
    %p25 = scmp.ge.s32.totalorder %s24, 1
    %s26 = scalar_select %p25, 0, %s24
    %s27 = sadd.s32 1, %s18
    %s28 = scalar_select %p25, %s27, %s18
    %p29 = scmp.ge.s32.totalorder %s28, 2
    %s30 = scalar_select %p29, 0, %s28
    %s31 = ssub.s32 %s18, %s30
    %s32 = ssub.s32 %s19, %s26
    %s33 = sor.u32 %s31, %s32
    %p34 = scmp.eq.s32.totalorder %s33, 0
    %s36 = sadd.s32 %s35, 1
    %s37 = scalar_select %p34, %s35, %s36
    %p40 = pneg %p34
    %p41 = scmp.eq.s32.totalorder %s11, 1
    %p42 = por %p40, %p41
    %p43 = scmp.ne.s32.totalorder %s35, %s38
    %p44 = scmp.eq.s32.totalorder %s11, 0
    %p45 = por %p43, %p44
    %p46 = scmp.ne.s32.totalorder %s35, %s38
    %p47 = scmp.eq.s32.totalorder %s16, 1
    %p48 = por %p46, %p47
    %p49 = scmp.ne.s32.totalorder %s38, %s39
    %p50 = scmp.eq.s32.totalorder %s16, 0
    %p51 = por %p49, %p50
    %p52 = scmp.ne.s32.totalorder %s38, %s39
    %p53 = scmp.eq.s32.totalorder %s17, 1
    %p54 = por %p52, %p53
    %p56 = scmp.ne.s32.totalorder %s39, %s55
    %p57 = scmp.eq.s32.totalorder %s17, 0
    %p58 = por %p56, %p57
    %s60 = sadd.s32 %s59, 1
    %p63 = scmp.eq.s32.totalorder %s11, 1
    %p64 = scmp.ne.s32.totalorder %s59, %s61
    %p65 = scmp.eq.s32.totalorder %s11, 0
    %p66 = por %p64, %p65
    %p67 = scmp.ne.s32.totalorder %s59, %s61
    %p68 = scmp.eq.s32.totalorder %s16, 1
    %p69 = por %p67, %p68
    %p70 = scmp.ne.s32.totalorder %s61, %s62
    %p71 = scmp.eq.s32.totalorder %s16, 0
    %p72 = por %p70, %p71
    %p73 = scmp.ne.s32.totalorder %s61, %s62
    %p74 = scmp.eq.s32.totalorder %s17, 1
    %p75 = por %p73, %p74
    %p77 = scmp.ne.s32.totalorder %s62, %s76
    %p78 = scmp.eq.s32.totalorder %s17, 0
    %p79 = por %p77, %p78
    %s81 = sadd.s32 %s80, 1
    %p84 = scmp.eq.s32.totalorder %s11, 1
    %p85 = scmp.ne.s32.totalorder %s80, %s82
    %p86 = scmp.eq.s32.totalorder %s11, 0
    %p87 = por %p85, %p86
    %p88 = scmp.ne.s32.totalorder %s80, %s82
    %p89 = scmp.eq.s32.totalorder %s16, 1
    %p90 = por %p88, %p89
    %p91 = scmp.ne.s32.totalorder %s82, %s83
    %p92 = scmp.eq.s32.totalorder %s16, 0
    %p93 = por %p91, %p92
    %p94 = scmp.ne.s32.totalorder %s82, %s83
    %p95 = scmp.eq.s32.totalorder %s17, 1
    %p96 = por %p94, %p95
    %p98 = scmp.ne.s32.totalorder %s83, %s97
    %p99 = scmp.eq.s32.totalorder %s17, 0
    %p100 = por %p98, %p99
    %s102 = sadd.s32 %s101, 1
    %p105 = scmp.eq.s32.totalorder %s11, 1
    %p106 = scmp.ne.s32.totalorder %s101, %s103
    %p107 = scmp.eq.s32.totalorder %s11, 0
    %p108 = por %p106, %p107
    %p109 = scmp.ne.s32.totalorder %s101, %s103
    %p110 = scmp.eq.s32.totalorder %s16, 1
    %p111 = por %p109, %p110
    %p112 = scmp.ne.s32.totalorder %s103, %s104
    %p113 = scmp.eq.s32.totalorder %s16, 0
    %p114 = por %p112, %p113
    %p115 = scmp.ne.s32.totalorder %s103, %s104
    %p116 = scmp.eq.s32.totalorder %s17, 1
    %p117 = por %p115, %p116
    %p119 = scmp.ne.s32.totalorder %s104, %s118
    %p120 = scmp.eq.s32.totalorder %s17, 0
    %p121 = por %p119, %p120
    %s122 = ssub.s32 %s18, %s30
    %s123 = ssub.s32 %s19, %s26
    %s124 = sor.u32 %s122, %s123
    %p125 = scmp.eq.s32.totalorder %s124, 0
    %s127 = sadd.s32 %s126, 1
    %s128 = scalar_select %p125, %s126, %s127
    %p131 = pneg %p125
    %p132 = scmp.eq.s32.totalorder %s11, 1
    %p133 = por %p131, %p132
    %p134 = scmp.ne.s32.totalorder %s126, %s129
    %p135 = scmp.eq.s32.totalorder %s11, 0
    %p136 = por %p134, %p135
    %p137 = scmp.ne.s32.totalorder %s126, %s129
    %p138 = scmp.eq.s32.totalorder %s16, 1
    %p139 = por %p137, %p138
    %p140 = scmp.ne.s32.totalorder %s129, %s130
    %p141 = scmp.eq.s32.totalorder %s16, 0
    %p142 = por %p140, %p141
    %p143 = scmp.ne.s32.totalorder %s129, %s130
    %p144 = scmp.eq.s32.totalorder %s17, 1
    %p145 = por %p143, %p144
    %p147 = scmp.ne.s32.totalorder %s130, %s146
    %p148 = scmp.eq.s32.totalorder %s17, 0
    %p149 = por %p147, %p148
    %s150 = ssub.s32 %s18, %s30
    %s151 = ssub.s32 %s19, %s26
    %s152 = sor.u32 %s150, %s151
    %p153 = scmp.eq.s32.totalorder %s152, 0
    %s155 = sadd.s32 %s154, 1
    %s156 = scalar_select %p153, %s154, %s155
    %p159 = pneg %p153
    %p160 = scmp.eq.s32.totalorder %s11, 1
    %p161 = por %p159, %p160
    %p162 = scmp.ne.s32.totalorder %s154, %s157
    %p163 = scmp.eq.s32.totalorder %s11, 0
    %p164 = por %p162, %p163
    %p165 = scmp.ne.s32.totalorder %s154, %s157
    %p166 = scmp.eq.s32.totalorder %s16, 1
    %p167 = por %p165, %p166
    %p168 = scmp.ne.s32.totalorder %s157, %s158
    %p169 = scmp.eq.s32.totalorder %s16, 0
    %p170 = por %p168, %p169
    %p171 = scmp.ne.s32.totalorder %s157, %s158
    %p172 = scmp.eq.s32.totalorder %s17, 1
    %p173 = por %p171, %p172
    %p175 = scmp.ne.s32.totalorder %s158, %s174
    %p176 = scmp.eq.s32.totalorder %s17, 0
    %p177 = por %p175, %p176
    %p178 = scmp.le.s32.totalorder 1, %s11
    %p179 = scmp.lt.s32.totalorder %s11, 3
    %p180 = pnand %p178, %p179
    %p181 = pneg %p180
    // Predicated region
    $region9: #{c3x_forward_pallas.11} parent=5 // pred_check
      _
    $region10: #{c3x_forward_pallas.11} parent=5 // pred_check_branch
      %183 = sbr.rel (%p180) target = $region12
    $region11: #{c3x_forward_pallas.11} parent=5 // pred_region
      %s184 = ssub.s32 %s11, 1
      // Predicated region
      $region13: #{c3x_forward_pallas.11} parent=11 // pred_check
        %p185 = pneg %p72
      $region14: #{c3x_forward_pallas.11} parent=11 // pred_check_branch
        %187 = sbr.rel (%p185) target = $region16
      $region15: #{c3x_forward_pallas.11} parent=11 // pred_region
        _
      $region16: #{c3x_forward_pallas.11} parent=11 // pred_fallthru
        _
      // Predicated region
      $region17: #{c3x_forward_pallas.11} parent=11 // pred_check
        %p188 = pneg %p93
      $region18: #{c3x_forward_pallas.11} parent=11 // pred_check_branch
        %190 = sbr.rel (%p188) target = $region20
      $region19: #{c3x_forward_pallas.11} parent=11 // pred_region
        _
      $region20: #{c3x_forward_pallas.11} parent=11 // pred_fallthru
        _
      // Predicated region
      $region21: #{c3x_forward_pallas.11} parent=11 // pred_check
        %p191 = pneg %p114
      $region22: #{c3x_forward_pallas.11} parent=11 // pred_check_branch
        %193 = sbr.rel (%p191) target = $region24
      $region23: #{c3x_forward_pallas.11} parent=11 // pred_region
        _
      $region24: #{c3x_forward_pallas.11} parent=11 // pred_fallthru
        _
    $region12: #{c3x_forward_pallas.11} parent=5 // pred_fallthru
      _
    %p194 = scmp.lt.s32.totalorder %s11, 2
    // Predicated region
    $region25: #{c3x_forward_pallas.11} parent=5 // pred_check
      %p195 = pneg %p194
    $region26: #{c3x_forward_pallas.11} parent=5 // pred_check_branch
      %197 = sbr.rel (%p195) target = $region28
    $region27: #{c3x_forward_pallas.11} parent=5 // pred_region
      // Predicated region
      $region29: #{c3x_forward_pallas.11} parent=27 // pred_check
        %p198 = pneg %p45
      $region30: #{c3x_forward_pallas.11} parent=27 // pred_check_branch
        %200 = sbr.rel (%p198) target = $region32
      $region31: #{c3x_forward_pallas.11} parent=27 // pred_region
        %s201 = smul.u32 2, %s19
        %p202 = scmp.lt.s32.totalorder %s18, 1
        %s203 = scalar_select %p202, %s18, 1
        %p204 = scmp.lt.s32.totalorder %s201, 1
        %s205 = scalar_select %p204, %s201, 1
        %s206 = smul.addr %s203, 36
        %s207 = sadd.s32 %s205, %s206
        %s208 = smul.addr %s207, 8
        %s209 = scalar_lea.vmem %s0, %s208
        %s210 = smul.u32 2, %s19
      $region32: #{c3x_forward_pallas.11} parent=27 // pred_fallthru
        _
      // Predicated region
      $region33: #{c3x_forward_pallas.11} parent=27 // pred_check
        %p211 = pneg %p136
      $region34: #{c3x_forward_pallas.11} parent=27 // pred_check_branch
        %213 = sbr.rel (%p211) target = $region36
      $region35: #{c3x_forward_pallas.11} parent=27 // pred_region
        %s214 = smul.u32 2, %s19
        %p215 = scmp.lt.s32.totalorder %s18, 1
        %s216 = scalar_select %p215, %s18, 1
        %p217 = scmp.lt.s32.totalorder %s214, 1
        %s218 = scalar_select %p217, %s214, 1
        %s219 = smul.addr %s216, 4
        %s220 = sadd.s32 %s218, %s219
        %s221 = smul.addr %s220, 8
        %s222 = scalar_lea.vmem %s4, %s221
        %s223 = smul.u32 2, %s19
      $region36: #{c3x_forward_pallas.11} parent=27 // pred_fallthru
        _
    $region28: #{c3x_forward_pallas.11} parent=5 // pred_fallthru
      _
    %p224 = scmp.le.s32.totalorder 1, %s11
    %p225 = scmp.lt.s32.totalorder %s11, 3
    %p226 = pnand %p224, %p225
    %p227 = pneg %p226
    // Predicated region
    $region37: #{c3x_forward_pallas.11} parent=5 // pred_check
      _
    $region38: #{c3x_forward_pallas.11} parent=5 // pred_check_branch
      %229 = sbr.rel (%p226) target = $region40
    $region39: #{c3x_forward_pallas.11} parent=5 // pred_region
      %s230 = ssub.s32 %s11, 1
      %s231 = smul.u32 2, %s21
      %p232 = scmp.lt.s32.totalorder %s20, 1
      %s233 = scalar_select %p232, %s20, 1
      %p234 = scmp.lt.s32.totalorder %s231, 1
      %s235 = scalar_select %p234, %s231, 1
      %s236 = smul.addr %s233, 36
      %s237 = sadd.s32 %s235, %s236
      %s238 = smul.addr %s237, 8
      %s239 = scalar_lea.vmem %s0, %s238
      %p240 = pneg %p51
      %p241 = pneg %p48
      %p242 = pneg %p72
      %p243 = pneg %p69
      %p244 = pneg %p93
      %p245 = pneg %p90
      %p246 = pneg %p114
      %p247 = pneg %p111
      %s248 = smul.u32 2, %s21
      %p249 = scmp.lt.s32.totalorder %s20, 1
      %s250 = scalar_select %p249, %s20, 1
      %p251 = scmp.lt.s32.totalorder %s248, 1
      %s252 = scalar_select %p251, %s248, 1
      %s253 = smul.addr %s250, 4
      %s254 = sadd.s32 %s252, %s253
      %s255 = smul.addr %s254, 8
      %s256 = scalar_lea.vmem %s4, %s255
      %p257 = pneg %p142
      %p258 = pneg %p139
      %p259 = pneg %p170
      %p260 = pneg %p167
      %s261 = smul.u32 2, %s21
      %p262 = scmp.lt.s32.totalorder %s20, 1
      %s263 = scalar_select %p262, %s20, 1
      %p264 = scmp.lt.s32.totalorder %s261, 1
      %s265 = scalar_select %p264, %s261, 1
      %s266 = smul.addr %s263, 4
      %s267 = sadd.s32 %s265, %s266
      %s268 = smul.addr %s267, 8
      %s269 = scalar_lea.vmem %s5, %s268
      %s270 = smul.u32 2, %s21
      %p271 = scmp.lt.s32.totalorder %s20, 1
      %s272 = scalar_select %p271, %s20, 1
      %p273 = scmp.lt.s32.totalorder %s270, 1
      %s274 = scalar_select %p273, %s270, 1
      %s275 = smul.addr %s272, 36
      %s276 = sadd.s32 %s274, %s275
      %s277 = smul.addr %s276, 8
      %s278 = scalar_lea.vmem %s0, %s277
      %s279 = smul.u32 2, %s21
      %s280 = smul.u32 2, %s21
      %p281 = scmp.lt.s32.totalorder %s20, 1
      %s282 = scalar_select %p281, %s20, 1
      %p283 = scmp.lt.s32.totalorder %s280, 1
      %s284 = scalar_select %p283, %s280, 1
      %s285 = smul.addr %s282, 4
      %s286 = sadd.s32 %s284, %s285
      %s287 = smul.addr %s286, 8
      %s288 = scalar_lea.vmem %s4, %s287
      %s289 = smul.u32 2, %s21
      %s290 = smul.u32 2, %s21
      %p291 = scmp.lt.s32.totalorder %s20, 1
      %s292 = scalar_select %p291, %s20, 1
      %p293 = scmp.lt.s32.totalorder %s290, 1
      %s294 = scalar_select %p293, %s290, 1
      %s295 = smul.addr %s292, 4
      %s296 = sadd.s32 %s294, %s295
      %s297 = smul.addr %s296, 8
      %s298 = scalar_lea.vmem %s5, %s297
      %s299 = smul.u32 2, %s21
      %v300 = vld [vmem:[%s278] sm:$0xff]
      %v301 = vld [vmem:[%s278 + $0x8] sm:$0xff]
      %v302 = vld [vmem:[%s278 + $0x10] sm:$0xff]
      %v303 = vld [vmem:[%s278 + $0x18] sm:$0xff]
      %v304 = vld [vmem:[%s278 + $0x20] sm:$0xff]
      %v305 = vld [vmem:[%s278 + $0x28] sm:$0xff]
      %v306 = vld [vmem:[%s278 + $0x30] sm:$0xff]
      %v307 = vld [vmem:[%s278 + $0x38] sm:$0xff]
      %v308 = vld [vmem:[%s278 + $0x40] sm:$0xff]
      %v309 = vld [vmem:[%s278 + $0x48] sm:$0xff]
      %v310 = vld [vmem:[%s278 + $0x50] sm:$0xff]
      %v311 = vld [vmem:[%s278 + $0x58] sm:$0xff]
      %v312 = vld [vmem:[%s278 + $0x60] sm:$0xff]
      %v313 = vld [vmem:[%s278 + $0x68] sm:$0xff]
      %v314 = vld [vmem:[%s278 + $0x70] sm:$0xff]
      %v315 = vld [vmem:[%s278 + $0x78] sm:$0xff]
      %v316 = vld [vmem:[%s278 + $0x80] sm:$0xff]
      %v317 = vld [vmem:[%s278 + $0x88] sm:$0xff]
      %v318 = vld [vmem:[%s278 + $0x90] sm:$0xff]
      %v319 = vld [vmem:[%s278 + $0x98] sm:$0xff]
      %v320 = vld [vmem:[%s278 + $0xa0] sm:$0xff]
      %v321 = vld [vmem:[%s278 + $0xa8] sm:$0xff]
      %v322 = vld [vmem:[%s278 + $0xb0] sm:$0xff]
      %v323 = vld [vmem:[%s278 + $0xb8] sm:$0xff]
      %v324 = vld [vmem:[%s278 + $0xc0] sm:$0xff]
      %v325 = vld [vmem:[%s278 + $0xc8] sm:$0xff]
      %v326 = vld [vmem:[%s278 + $0xd0] sm:$0xff]
      %v327 = vld [vmem:[%s278 + $0xd8] sm:$0xff]
      %v328 = vld [vmem:[%s278 + $0xe0] sm:$0xff]
      %v329 = vld [vmem:[%s278 + $0xe8] sm:$0xff]
      %v330 = vld [vmem:[%s278 + $0xf0] sm:$0xff]
      %v331 = vld [vmem:[%s278 + $0xf8] sm:$0xff]
      %v332 = vld [vmem:[%s278 + $0x100] sm:$0xff]
      %v333 = vld [vmem:[%s278 + $0x108] sm:$0xff]
      %v334 = vld [vmem:[%s278 + $0x110] sm:$0xff]
      %v335 = vld [vmem:[%s278 + $0x118] sm:$0xff]
      %v336 = vld [vmem:[%s1] sm:$0xff]
      %v337 = vld [vmem:[%s1 + $0x8] sm:$0xff]
      %v338 = vld [vmem:[%s1 + $0x10] sm:$0xff]
      %v339 = vld [vmem:[%s1 + $0x18] sm:$0xff]
      %vm340 = vcmask 130048
      %v342 = vsel %vm340, %v337, 0
      %v345 = vsel %vm340, %v339, 0
      %347 = vmatpush.msra.mxu0 %v330
      %348 = vmatpush.msra.mxu0 %v328
      %349 = vmatpush.msra.mxu0 %v326
      %350 = vmatpush.msra.mxu0 %v324
      %351 = vmatpush.msra.mxu0 %v322
      %352 = vmatpush.msra.mxu0 %v320
      %353 = vmatpush.msra.mxu0 %v318
      %354 = vmatpush.msra.mxu0 %v316
      %355 = vmatpush.msra.mxu0 %v314
      %356 = vmatpush.msra.mxu0 %v312
      %357 = vmatpush.msra.mxu0 %v310
      %358 = vmatpush.msra.mxu0 %v308
      %359 = vmatpush.msra.mxu0 %v306
      %360 = vmatpush.msra.mxu0 %v304
      %361 = vmatpush.msra.mxu0 %v302
      %362 = vmatpush.msra.mxu0 %v300
      %363 = vmatmul.f32.gmra.mxu0 %v336
      %v364 = vpop.f32.mrf.mxu0
      %v365 = vadd.f32 0.0, %v364
      %366 = vmatmul.f32.gmra.mxu0 %v338
      %v367 = vpop.f32.mrf.mxu0
      %v368 = vadd.f32 0.0, %v367
      %369 = vdwg.mxu0
      %370 = vmatpush.msra.mxu0 0.0
      %371 = vmatpush.msra.mxu0 0.0
      %372 = vmatpush.msra.mxu0 0.0
      %373 = vmatpush.msra.mxu0 0.0
      %374 = vmatpush.msra.mxu0 0.0
      %375 = vmatpush.msra.mxu0 0.0
      %376 = vmatpush.msra.mxu0 0.0
      %377 = vmatpush.msra.mxu0 0.0
      %378 = vmatpush.msra.mxu0 0.0
      %379 = vmatpush.msra.mxu0 0.0
      %380 = vmatpush.msra.mxu0 0.0
      %381 = vmatpush.msra.mxu0 0.0
      %382 = vmatpush.msra.mxu0 0.0
      %383 = vmatpush.msra.mxu0 0.0
      %384 = vmatpush.msra.mxu0 %v334
      %385 = vmatpush.msra.mxu0 %v332
      %386 = vmatmul.f32.gmra.mxu0 %v342
      %v387 = vpop.f32.mrf.mxu0
      %v388 = vadd.f32 %v365, %v387
      %389 = vmatmul.f32.gmra.mxu0 %v345
      %v390 = vpop.f32.mrf.mxu0
      %v391 = vadd.f32 %v368, %v390
      %392 = vdwg.mxu0
      %393 = vmatpush.msra.mxu0 %v331
      %394 = vmatpush.msra.mxu0 %v329
      %395 = vmatpush.msra.mxu0 %v327
      %396 = vmatpush.msra.mxu0 %v325
      %397 = vmatpush.msra.mxu0 %v323
      %398 = vmatpush.msra.mxu0 %v321
      %399 = vmatpush.msra.mxu0 %v319
      %400 = vmatpush.msra.mxu0 %v317
      %401 = vmatpush.msra.mxu0 %v315
      %402 = vmatpush.msra.mxu0 %v313
      %403 = vmatpush.msra.mxu0 %v311
      %404 = vmatpush.msra.mxu0 %v309
      %405 = vmatpush.msra.mxu0 %v307
      %406 = vmatpush.msra.mxu0 %v305
      %407 = vmatpush.msra.mxu0 %v303
      %408 = vmatpush.msra.mxu0 %v301
      %409 = vmatmul.f32.gmra.mxu0 %v336
      %v410 = vpop.f32.mrf.mxu0
      %v411 = vadd.f32 0.0, %v410
      %412 = vmatmul.f32.gmra.mxu0 %v338
      %v413 = vpop.f32.mrf.mxu0
      %v414 = vadd.f32 0.0, %v413
      %415 = vdwg.mxu0
      %416 = vmatpush.msra.mxu0 0.0
      %417 = vmatpush.msra.mxu0 0.0
      %418 = vmatpush.msra.mxu0 0.0
      %419 = vmatpush.msra.mxu0 0.0
      %420 = vmatpush.msra.mxu0 0.0
      %421 = vmatpush.msra.mxu0 0.0
      %422 = vmatpush.msra.mxu0 0.0
      %423 = vmatpush.msra.mxu0 0.0
      %424 = vmatpush.msra.mxu0 0.0
      %425 = vmatpush.msra.mxu0 0.0
      %426 = vmatpush.msra.mxu0 0.0
      %427 = vmatpush.msra.mxu0 0.0
      %428 = vmatpush.msra.mxu0 0.0
      %429 = vmatpush.msra.mxu0 0.0
      %430 = vmatpush.msra.mxu0 %v335
      %431 = vmatpush.msra.mxu0 %v333
      %432 = vmatmul.f32.gmra.mxu0 %v342
      %v433 = vpop.f32.mrf.mxu0
      %v434 = vadd.f32 %v411, %v433
      %435 = vmatmul.f32.gmra.mxu0 %v345
      %v436 = vpop.f32.mrf.mxu0
      %v437 = vadd.f32 %v414, %v436
      %438 = vdwg.mxu0
      %v439 = vld [vmem:[%s2] sm:$0xff]
      %v440 = vld [vmem:[%s2 + $0x8] sm:$0xff]
      %442 = vset.pattern.permute.xlu0 0
      %443 = vperm.xlu0 %442, %v439
      %v444 = vpop.permute.xlu0 %443
      %447 = vset.pattern.permute.xlu0 0
      %448 = vperm.xlu0 %447, %v440
      %v449 = vpop.permute.xlu0 %448
      %v451 = vmul.f32 %v388, %v444
      %v452 = vmul.f32 %v434, %v444
      %v453 = vmul.f32 %v391, %v449
      %v454 = vmul.f32 %v437, %v449
      %v455 = vld [vmem:[%s3] sm:$0xff]
      %v456 = vld [vmem:[%s3 + $0x8] sm:$0xff]
      %458 = vset.pattern.permute.xlu0 0
      %459 = vperm.xlu0 %458, %v455
      %v460 = vpop.permute.xlu0 %459
      %463 = vset.pattern.permute.xlu0 0
      %464 = vperm.xlu0 %463, %v456
      %v465 = vpop.permute.xlu0 %464
      %v467 = vadd.f32 %v451, %v460
      %v468 = vadd.f32 %v452, %v460
      %v469 = vadd.f32 %v453, %v465
      %v470 = vadd.f32 %v454, %v465
      %v471 = vsub.f32 0.0, %v467
      %v472 = vsub.f32 0.0, %v468
      %v473 = vsub.f32 0.0, %v469
      %v474 = vsub.f32 0.0, %v470
      %v475 = vmul.f32 %v471, 1.442695
      %v476 = vpow.pop %v475
      %v477 = vmul.f32 %v472, 1.442695
      %v478 = vpow.pop %v477
      %v479 = vmul.f32 %v473, 1.442695
      %v480 = vpow.pop %v479
      %v481 = vmul.f32 %v474, 1.442695
      %v482 = vpow.pop %v481
      %v483 = vadd.f32 %v476, 1.0
      %v484 = vadd.f32 %v478, 1.0
      %v485 = vadd.f32 %v480, 1.0
      %v486 = vadd.f32 %v482, 1.0
      %v487 = vrcp.pop %v483
      %v488 = vmul.f32 %v483, %v487
      %v489 = vsub.f32 1.0, %v488
      %v490 = vmul.f32 %v487, %v489
      %v491 = vadd.f32 %v487, %v490
      %vm492 = vweird.f32 %v483
      %vm493 = vweird.f32 %v487
      %vm494 = vmor %vm492, %vm493
      %v495 = vsel %vm494, %v487, %v491
      %v496 = vand.u32 2147483647, %v483
      %vm497 = vcmp.eq.f32.partialorder %v496, 8.507059e+37
      %v498 = vand.u32 %v483, 2147483648
      %v499 = vor.u32 1.1754944e-38, %v498
      %v500 = vsel %vm497, %v499, %v495
      %v501 = vmul.f32 1.0, %v500
      %v502 = vrcp.pop %v484
      %v503 = vmul.f32 %v484, %v502
      %v504 = vsub.f32 1.0, %v503
      %v505 = vmul.f32 %v502, %v504
      %v506 = vadd.f32 %v502, %v505
      %vm507 = vweird.f32 %v484
      %vm508 = vweird.f32 %v502
      %vm509 = vmor %vm507, %vm508
      %v510 = vsel %vm509, %v502, %v506
      %v511 = vand.u32 2147483647, %v484
      %vm512 = vcmp.eq.f32.partialorder %v511, 8.507059e+37
      %v513 = vand.u32 %v484, 2147483648
      %v514 = vor.u32 1.1754944e-38, %v513
      %v515 = vsel %vm512, %v514, %v510
      %v516 = vmul.f32 1.0, %v515
      %v517 = vrcp.pop %v485
      %v518 = vmul.f32 %v485, %v517
      %v519 = vsub.f32 1.0, %v518
      %v520 = vmul.f32 %v517, %v519
      %v521 = vadd.f32 %v517, %v520
      %vm522 = vweird.f32 %v485
      %vm523 = vweird.f32 %v517
      %vm524 = vmor %vm522, %vm523
      %v525 = vsel %vm524, %v517, %v521
      %v526 = vand.u32 2147483647, %v485
      %vm527 = vcmp.eq.f32.partialorder %v526, 8.507059e+37
      %v528 = vand.u32 %v485, 2147483648
      %v529 = vor.u32 1.1754944e-38, %v528
      %v530 = vsel %vm527, %v529, %v525
      %v531 = vmul.f32 1.0, %v530
      %v532 = vrcp.pop %v486
      %v533 = vmul.f32 %v486, %v532
      %v534 = vsub.f32 1.0, %v533
      %v535 = vmul.f32 %v532, %v534
      %v536 = vadd.f32 %v532, %v535
      %vm537 = vweird.f32 %v486
      %vm538 = vweird.f32 %v532
      %vm539 = vmor %vm537, %vm538
      %v540 = vsel %vm539, %v532, %v536
      %v541 = vand.u32 2147483647, %v486
      %vm542 = vcmp.eq.f32.partialorder %v541, 8.507059e+37
      %v543 = vand.u32 %v486, 2147483648
      %v544 = vor.u32 1.1754944e-38, %v543
      %v545 = vsel %vm542, %v544, %v540
      %v546 = vmul.f32 1.0, %v545
      %v547 = vmul.f32 %v467, %v501
      %v548 = vmul.f32 %v468, %v516
      %v549 = vmul.f32 %v469, %v531
      %v550 = vmul.f32 %v470, %v546
      %v551 = vld [vmem:[%s288] sm:$0xff]
      %v552 = vld [vmem:[%s288 + $0x8] sm:$0xff]
      %v553 = vld [vmem:[%s288 + $0x10] sm:$0xff]
      %v554 = vld [vmem:[%s288 + $0x18] sm:$0xff]
      %v555 = vadd.f32 %v547, %v551
      %v556 = vadd.f32 %v548, %v552
      %v557 = vadd.f32 %v549, %v553
      %v558 = vadd.f32 %v550, %v554
      %559 = vst [vmem:[%s298] sm:$0xff] %v555
      %560 = vst [vmem:[%s298 + $0x8] sm:$0xff] %v556
      %561 = vst [vmem:[%s298 + $0x10] sm:$0xff] %v557
      %562 = vst [vmem:[%s298 + $0x18] sm:$0xff] %v558
      %s563 = smul.u32 2, %s21
      %p564 = scmp.lt.s32.totalorder %s20, 1
      %s565 = scalar_select %p564, %s20, 1
      %p566 = scmp.lt.s32.totalorder %s563, 1
      %s567 = scalar_select %p566, %s563, 1
      %s568 = smul.addr %s565, 4
      %s569 = sadd.s32 %s567, %s568
      %s570 = smul.addr %s569, 8
      %s571 = scalar_lea.vmem %s5, %s570
      // Predicated region
      $region41: #{c3x_forward_pallas.11} parent=39 // pred_check
        %p572 = pneg %p167
      $region42: #{c3x_forward_pallas.11} parent=39 // pred_check_branch
        %574 = sbr.rel (%p572) target = $region44
      $region43: #{c3x_forward_pallas.11} parent=39 // pred_region
        %s575 = smul.u32 2, %s21
      $region44: #{c3x_forward_pallas.11} parent=39 // pred_fallthru
        _
    $region40: #{c3x_forward_pallas.11} parent=5 // pred_fallthru
      _
    %p576 = scmp.le.s32.totalorder 2, %s11
    // Predicated region
    $region45: #{c3x_forward_pallas.11} parent=5 // pred_check
      %p577 = pneg %p576
    $region46: #{c3x_forward_pallas.11} parent=5 // pred_check_branch
      %579 = sbr.rel (%p577) target = $region48
    $region47: #{c3x_forward_pallas.11} parent=5 // pred_region
      %s580 = ssub.s32 %s11, 2
      // Predicated region
      $region49: #{c3x_forward_pallas.11} parent=47 // pred_check
        %p581 = pneg %p173
      $region50: #{c3x_forward_pallas.11} parent=47 // pred_check_branch
        %583 = sbr.rel (%p581) target = $region52
      $region51: #{c3x_forward_pallas.11} parent=47 // pred_region
        %s584 = smul.u32 2, %s23
        %p585 = scmp.lt.s32.totalorder %s22, 1
        %s586 = scalar_select %p585, %s22, 1
        %p587 = scmp.lt.s32.totalorder %s584, 1
        %s588 = scalar_select %p587, %s584, 1
        %s589 = smul.addr %s586, 4
        %s590 = sadd.s32 %s588, %s589
        %s591 = smul.addr %s590, 8
        %s592 = scalar_lea.vmem %s5, %s591
      $region52: #{c3x_forward_pallas.11} parent=47 // pred_fallthru
        _
    $region48: #{c3x_forward_pallas.11} parent=5 // pred_fallthru
      _
  $region6: #{c3x_forward_pallas.11} parent=0 // loop_footer
    %s15 = sadd.s32 1, %s11
  $region7: #{c3x_forward_pallas.11} parent=0 // loop_footer_branch
    %10 = sbr.rel target = $region3
  $region8: #{c3x_forward_pallas.11} parent=0 // loop_exit
    _

// kernel: c3x_forward_pallas.9
$region0: #{c3x_forward_pallas.9}
  #allocation0 [shape = 'u32[]', space=smem, size = 0x4, offset = 0x4, fixed_abs, tag = 'smem constant byte address 0x4 - core index']
  #allocation1 [shape = 'u32[72,128]{1,0:T(1,128)}', space=vmem, size = 0x9000, scoped, tag = 'internal scratch']
  %s0 = inlined_call_operand.vmem [shape: f32[2,32,256], index: 0, kind: input, shape index: {}]
  %s1 = inlined_call_operand.vmem [shape: f32[16,32], index: 1, kind: input, shape index: {}]
  %s2 = inlined_call_operand.vmem [shape: f32[16,1], index: 2, kind: input, shape index: {}]
  %s3 = inlined_call_operand.vmem [shape: f32[16,1], index: 3, kind: input, shape index: {}]
  %s4 = inlined_call_operand.vmem [shape: f32[2,16,256], index: 4, kind: output, shape index: {}]
  %s5 = sld [smem:[#allocation0]]
  $region49: #{c3x_forward_pallas.9} parent=0
    _
  %s7 = ssub.s32 1, %s5
  %s8 = scalar_select 0, %s7, %s5
  loop: start=0, step=1, limit=4
  $region2: #{c3x_forward_pallas.9} parent=0 // loop_pre_header
    _
  $region3: #{c3x_forward_pallas.9} parent=0 // loop_header
    %s10 = sphi 0, %s14
    %p11 = scmp.ge.s32.totalorder %s10, 4
    %s17 = sphi 0, %s29
    %s18 = sphi 0, %s25
    %s19 = sphi 0, %s17
    %s20 = sphi 0, %s18
    %s21 = sphi 0, %s19
    %s22 = sphi 0, %s20
    %s34 = sphi 0, %s36
    %s37 = sphi 0, %s34
    %s38 = sphi 0, %s37
    %s54 = sphi 0, %s38
    %s58 = sphi 0, %s58
    %s60 = sphi 0, %s58
    %s61 = sphi 0, %s60
    %s75 = sphi 0, %s61
    %s79 = sphi 0, %s79
    %s81 = sphi 0, %s79
    %s82 = sphi 0, %s81
    %s96 = sphi 0, %s82
    %s100 = sphi 0, %s100
    %s102 = sphi 0, %s100
    %s103 = sphi 0, %s102
    %s117 = sphi 0, %s103
    %s125 = sphi 0, %s127
    %s128 = sphi 0, %s125
    %s129 = sphi 0, %s128
    %s145 = sphi 0, %s129
  $region4: #{c3x_forward_pallas.9} parent=0 // loop_header_branch
    %13 = sbr.rel (%p11) target = $region8
  $region5: #{c3x_forward_pallas.9} parent=0 // loop_body
    %s15 = ssub.s32 %s10, 1
    %s16 = ssub.s32 %s10, 2
    %s23 = sadd.s32 1, %s18
    %p24 = scmp.ge.s32.totalorder %s23, 1
    %s25 = scalar_select %p24, 0, %s23
    %s26 = sadd.s32 1, %s17
    %s27 = scalar_select %p24, %s26, %s17
    %p28 = scmp.ge.s32.totalorder %s27, 2
    %s29 = scalar_select %p28, 0, %s27
    %s30 = ssub.s32 %s17, %s29
    %s31 = ssub.s32 %s18, %s25
    %s32 = sor.u32 %s30, %s31
    %p33 = scmp.eq.s32.totalorder %s32, 0
    %s35 = sadd.s32 %s34, 1
    %s36 = scalar_select %p33, %s34, %s35
    %p39 = pneg %p33
    %p40 = scmp.eq.s32.totalorder %s10, 1
    %p41 = por %p39, %p40
    %p42 = scmp.ne.s32.totalorder %s34, %s37
    %p43 = scmp.eq.s32.totalorder %s10, 0
    %p44 = por %p42, %p43
    %p45 = scmp.ne.s32.totalorder %s34, %s37
    %p46 = scmp.eq.s32.totalorder %s15, 1
    %p47 = por %p45, %p46
    %p48 = scmp.ne.s32.totalorder %s37, %s38
    %p49 = scmp.eq.s32.totalorder %s15, 0
    %p50 = por %p48, %p49
    %p51 = scmp.ne.s32.totalorder %s37, %s38
    %p52 = scmp.eq.s32.totalorder %s16, 1
    %p53 = por %p51, %p52
    %p55 = scmp.ne.s32.totalorder %s38, %s54
    %p56 = scmp.eq.s32.totalorder %s16, 0
    %p57 = por %p55, %p56
    %s59 = sadd.s32 %s58, 1
    %p62 = scmp.eq.s32.totalorder %s10, 1
    %p63 = scmp.ne.s32.totalorder %s58, %s60
    %p64 = scmp.eq.s32.totalorder %s10, 0
    %p65 = por %p63, %p64
    %p66 = scmp.ne.s32.totalorder %s58, %s60
    %p67 = scmp.eq.s32.totalorder %s15, 1
    %p68 = por %p66, %p67
    %p69 = scmp.ne.s32.totalorder %s60, %s61
    %p70 = scmp.eq.s32.totalorder %s15, 0
    %p71 = por %p69, %p70
    %p72 = scmp.ne.s32.totalorder %s60, %s61
    %p73 = scmp.eq.s32.totalorder %s16, 1
    %p74 = por %p72, %p73
    %p76 = scmp.ne.s32.totalorder %s61, %s75
    %p77 = scmp.eq.s32.totalorder %s16, 0
    %p78 = por %p76, %p77
    %s80 = sadd.s32 %s79, 1
    %p83 = scmp.eq.s32.totalorder %s10, 1
    %p84 = scmp.ne.s32.totalorder %s79, %s81
    %p85 = scmp.eq.s32.totalorder %s10, 0
    %p86 = por %p84, %p85
    %p87 = scmp.ne.s32.totalorder %s79, %s81
    %p88 = scmp.eq.s32.totalorder %s15, 1
    %p89 = por %p87, %p88
    %p90 = scmp.ne.s32.totalorder %s81, %s82
    %p91 = scmp.eq.s32.totalorder %s15, 0
    %p92 = por %p90, %p91
    %p93 = scmp.ne.s32.totalorder %s81, %s82
    %p94 = scmp.eq.s32.totalorder %s16, 1
    %p95 = por %p93, %p94
    %p97 = scmp.ne.s32.totalorder %s82, %s96
    %p98 = scmp.eq.s32.totalorder %s16, 0
    %p99 = por %p97, %p98
    %s101 = sadd.s32 %s100, 1
    %p104 = scmp.eq.s32.totalorder %s10, 1
    %p105 = scmp.ne.s32.totalorder %s100, %s102
    %p106 = scmp.eq.s32.totalorder %s10, 0
    %p107 = por %p105, %p106
    %p108 = scmp.ne.s32.totalorder %s100, %s102
    %p109 = scmp.eq.s32.totalorder %s15, 1
    %p110 = por %p108, %p109
    %p111 = scmp.ne.s32.totalorder %s102, %s103
    %p112 = scmp.eq.s32.totalorder %s15, 0
    %p113 = por %p111, %p112
    %p114 = scmp.ne.s32.totalorder %s102, %s103
    %p115 = scmp.eq.s32.totalorder %s16, 1
    %p116 = por %p114, %p115
    %p118 = scmp.ne.s32.totalorder %s103, %s117
    %p119 = scmp.eq.s32.totalorder %s16, 0
    %p120 = por %p118, %p119
    %s121 = ssub.s32 %s17, %s29
    %s122 = ssub.s32 %s18, %s25
    %s123 = sor.u32 %s121, %s122
    %p124 = scmp.eq.s32.totalorder %s123, 0
    %s126 = sadd.s32 %s125, 1
    %s127 = scalar_select %p124, %s125, %s126
    %p130 = pneg %p124
    %p131 = scmp.eq.s32.totalorder %s10, 1
    %p132 = por %p130, %p131
    %p133 = scmp.ne.s32.totalorder %s125, %s128
    %p134 = scmp.eq.s32.totalorder %s10, 0
    %p135 = por %p133, %p134
    %p136 = scmp.ne.s32.totalorder %s125, %s128
    %p137 = scmp.eq.s32.totalorder %s15, 1
    %p138 = por %p136, %p137
    %p139 = scmp.ne.s32.totalorder %s128, %s129
    %p140 = scmp.eq.s32.totalorder %s15, 0
    %p141 = por %p139, %p140
    %p142 = scmp.ne.s32.totalorder %s128, %s129
    %p143 = scmp.eq.s32.totalorder %s16, 1
    %p144 = por %p142, %p143
    %p146 = scmp.ne.s32.totalorder %s129, %s145
    %p147 = scmp.eq.s32.totalorder %s16, 0
    %p148 = por %p146, %p147
    %p149 = scmp.le.s32.totalorder 1, %s10
    %p150 = scmp.lt.s32.totalorder %s10, 3
    %p151 = pnand %p149, %p150
    %p152 = pneg %p151
    // Predicated region
    $region9: #{c3x_forward_pallas.9} parent=5 // pred_check
      _
    $region10: #{c3x_forward_pallas.9} parent=5 // pred_check_branch
      %154 = sbr.rel (%p151) target = $region12
    $region11: #{c3x_forward_pallas.9} parent=5 // pred_region
      %s155 = ssub.s32 %s10, 1
      // Predicated region
      $region13: #{c3x_forward_pallas.9} parent=11 // pred_check
        %p156 = pneg %p71
      $region14: #{c3x_forward_pallas.9} parent=11 // pred_check_branch
        %158 = sbr.rel (%p156) target = $region16
      $region15: #{c3x_forward_pallas.9} parent=11 // pred_region
        _
      $region16: #{c3x_forward_pallas.9} parent=11 // pred_fallthru
        _
      // Predicated region
      $region17: #{c3x_forward_pallas.9} parent=11 // pred_check
        %p159 = pneg %p92
      $region18: #{c3x_forward_pallas.9} parent=11 // pred_check_branch
        %161 = sbr.rel (%p159) target = $region20
      $region19: #{c3x_forward_pallas.9} parent=11 // pred_region
        _
      $region20: #{c3x_forward_pallas.9} parent=11 // pred_fallthru
        _
      // Predicated region
      $region21: #{c3x_forward_pallas.9} parent=11 // pred_check
        %p162 = pneg %p113
      $region22: #{c3x_forward_pallas.9} parent=11 // pred_check_branch
        %164 = sbr.rel (%p162) target = $region24
      $region23: #{c3x_forward_pallas.9} parent=11 // pred_region
        _
      $region24: #{c3x_forward_pallas.9} parent=11 // pred_fallthru
        _
    $region12: #{c3x_forward_pallas.9} parent=5 // pred_fallthru
      _
    %p165 = scmp.lt.s32.totalorder %s10, 2
    // Predicated region
    $region25: #{c3x_forward_pallas.9} parent=5 // pred_check
      %p166 = pneg %p165
    $region26: #{c3x_forward_pallas.9} parent=5 // pred_check_branch
      %168 = sbr.rel (%p166) target = $region28
    $region27: #{c3x_forward_pallas.9} parent=5 // pred_region
      // Predicated region
      $region29: #{c3x_forward_pallas.9} parent=27 // pred_check
        %p169 = pneg %p44
      $region30: #{c3x_forward_pallas.9} parent=27 // pred_check_branch
        %171 = sbr.rel (%p169) target = $region32
      $region31: #{c3x_forward_pallas.9} parent=27 // pred_region
        %s172 = smul.u32 2, %s18
        %p173 = scmp.lt.s32.totalorder %s17, 1
        %s174 = scalar_select %p173, %s17, 1
        %p175 = scmp.lt.s32.totalorder %s172, 1
        %s176 = scalar_select %p175, %s172, 1
        %s177 = smul.addr %s174, 8
        %s178 = sadd.s32 %s176, %s177
        %s179 = smul.addr %s178, 8
        %s180 = scalar_lea.vmem %s0, %s179
        %s181 = smul.u32 2, %s18
      $region32: #{c3x_forward_pallas.9} parent=27 // pred_fallthru
        _
    $region28: #{c3x_forward_pallas.9} parent=5 // pred_fallthru
      _
    %p182 = scmp.le.s32.totalorder 1, %s10
    %p183 = scmp.lt.s32.totalorder %s10, 3
    %p184 = pnand %p182, %p183
    %p185 = pneg %p184
    // Predicated region
    $region33: #{c3x_forward_pallas.9} parent=5 // pred_check
      _
    $region34: #{c3x_forward_pallas.9} parent=5 // pred_check_branch
      %187 = sbr.rel (%p184) target = $region36
    $region35: #{c3x_forward_pallas.9} parent=5 // pred_region
      %s188 = ssub.s32 %s10, 1
      %s189 = smul.u32 2, %s20
      %p190 = scmp.lt.s32.totalorder %s19, 1
      %s191 = scalar_select %p190, %s19, 1
      %p192 = scmp.lt.s32.totalorder %s189, 1
      %s193 = scalar_select %p192, %s189, 1
      %s194 = smul.addr %s191, 8
      %s195 = sadd.s32 %s193, %s194
      %s196 = smul.addr %s195, 8
      %s197 = scalar_lea.vmem %s0, %s196
      %p198 = pneg %p50
      %p199 = pneg %p47
      %p200 = pneg %p71
      %p201 = pneg %p68
      %p202 = pneg %p92
      %p203 = pneg %p89
      %p204 = pneg %p113
      %p205 = pneg %p110
      %p206 = pneg %p141
      %p207 = pneg %p138
      %s208 = smul.u32 2, %s20
      %p209 = scmp.lt.s32.totalorder %s19, 1
      %s210 = scalar_select %p209, %s19, 1
      %p211 = scmp.lt.s32.totalorder %s208, 1
      %s212 = scalar_select %p211, %s208, 1
      %s213 = smul.addr %s210, 4
      %s214 = sadd.s32 %s212, %s213
      %s215 = smul.addr %s214, 8
      %s216 = scalar_lea.vmem %s4, %s215
      %s217 = smul.u32 2, %s20
      %p218 = scmp.lt.s32.totalorder %s19, 1
      %s219 = scalar_select %p218, %s19, 1
      %p220 = scmp.lt.s32.totalorder %s217, 1
      %s221 = scalar_select %p220, %s217, 1
      %s222 = smul.addr %s219, 8
      %s223 = sadd.s32 %s221, %s222
      %s224 = smul.addr %s223, 8
      %s225 = scalar_lea.vmem %s0, %s224
      %s226 = smul.u32 2, %s20
      %s227 = smul.u32 2, %s20
      %p228 = scmp.lt.s32.totalorder %s19, 1
      %s229 = scalar_select %p228, %s19, 1
      %p230 = scmp.lt.s32.totalorder %s227, 1
      %s231 = scalar_select %p230, %s227, 1
      %s232 = smul.addr %s229, 4
      %s233 = sadd.s32 %s231, %s232
      %s234 = smul.addr %s233, 8
      %s235 = scalar_lea.vmem %s4, %s234
      %s236 = smul.u32 2, %s20
      %v237 = vld [vmem:[%s225] sm:$0xff]
      %v238 = vld [vmem:[%s225 + $0x8] sm:$0xff]
      %v239 = vld [vmem:[%s225 + $0x10] sm:$0xff]
      %v240 = vld [vmem:[%s225 + $0x18] sm:$0xff]
      %v241 = vld [vmem:[%s225 + $0x20] sm:$0xff]
      %v242 = vld [vmem:[%s225 + $0x28] sm:$0xff]
      %v243 = vld [vmem:[%s225 + $0x30] sm:$0xff]
      %v244 = vld [vmem:[%s225 + $0x38] sm:$0xff]
      %v245 = vld [vmem:[%s1] sm:$0xff]
      %v246 = vld [vmem:[%s1 + $0x8] sm:$0xff]
      %vm247 = vcmask 261120
      %v249 = vsel %vm247, %v245, 0
      %v252 = vsel %vm247, %v246, 0
      %254 = vmatpush.msra.mxu0 0.0
      %255 = vmatpush.msra.mxu0 0.0
      %256 = vmatpush.msra.mxu0 0.0
      %257 = vmatpush.msra.mxu0 0.0
      %258 = vmatpush.msra.mxu0 0.0
      %259 = vmatpush.msra.mxu0 0.0
      %260 = vmatpush.msra.mxu0 0.0
      %261 = vmatpush.msra.mxu0 0.0
      %262 = vmatpush.msra.mxu0 0.0
      %263 = vmatpush.msra.mxu0 0.0
      %264 = vmatpush.msra.mxu0 0.0
      %265 = vmatpush.msra.mxu0 0.0
      %266 = vmatpush.msra.mxu0 %v243
      %267 = vmatpush.msra.mxu0 %v241
      %268 = vmatpush.msra.mxu0 %v239
      %269 = vmatpush.msra.mxu0 %v237
      %270 = vmatmul.f32.gmra.mxu0 %v249
      %v271 = vpop.f32.mrf.mxu0
      %v272 = vadd.f32 0.0, %v271
      %273 = vmatmul.f32.gmra.mxu0 %v252
      %v274 = vpop.f32.mrf.mxu0
      %v275 = vadd.f32 0.0, %v274
      %276 = vdwg.mxu0
      %277 = vmatpush.msra.mxu0 0.0
      %278 = vmatpush.msra.mxu0 0.0
      %279 = vmatpush.msra.mxu0 0.0
      %280 = vmatpush.msra.mxu0 0.0
      %281 = vmatpush.msra.mxu0 0.0
      %282 = vmatpush.msra.mxu0 0.0
      %283 = vmatpush.msra.mxu0 0.0
      %284 = vmatpush.msra.mxu0 0.0
      %285 = vmatpush.msra.mxu0 0.0
      %286 = vmatpush.msra.mxu0 0.0
      %287 = vmatpush.msra.mxu0 0.0
      %288 = vmatpush.msra.mxu0 0.0
      %289 = vmatpush.msra.mxu0 %v244
      %290 = vmatpush.msra.mxu0 %v242
      %291 = vmatpush.msra.mxu0 %v240
      %292 = vmatpush.msra.mxu0 %v238
      %293 = vmatmul.f32.gmra.mxu0 %v249
      %v294 = vpop.f32.mrf.mxu0
      %v295 = vadd.f32 0.0, %v294
      %296 = vmatmul.f32.gmra.mxu0 %v252
      %v297 = vpop.f32.mrf.mxu0
      %v298 = vadd.f32 0.0, %v297
      %299 = vdwg.mxu0
      %v300 = vld [vmem:[%s2] sm:$0xff]
      %v301 = vld [vmem:[%s2 + $0x8] sm:$0xff]
      %303 = vset.pattern.permute.xlu0 0
      %304 = vperm.xlu0 %303, %v300
      %v305 = vpop.permute.xlu0 %304
      %308 = vset.pattern.permute.xlu0 0
      %309 = vperm.xlu0 %308, %v301
      %v310 = vpop.permute.xlu0 %309
      %v312 = vmul.f32 %v272, %v305
      %v313 = vmul.f32 %v295, %v305
      %v314 = vmul.f32 %v275, %v310
      %v315 = vmul.f32 %v298, %v310
      %v316 = vld [vmem:[%s3] sm:$0xff]
      %v317 = vld [vmem:[%s3 + $0x8] sm:$0xff]
      %319 = vset.pattern.permute.xlu0 0
      %320 = vperm.xlu0 %319, %v316
      %v321 = vpop.permute.xlu0 %320
      %324 = vset.pattern.permute.xlu0 0
      %325 = vperm.xlu0 %324, %v317
      %v326 = vpop.permute.xlu0 %325
      %v328 = vadd.f32 %v312, %v321
      %v329 = vadd.f32 %v313, %v321
      %v330 = vadd.f32 %v314, %v326
      %v331 = vadd.f32 %v315, %v326
      %v332 = vsub.f32 0.0, %v328
      %v333 = vsub.f32 0.0, %v329
      %v334 = vsub.f32 0.0, %v330
      %v335 = vsub.f32 0.0, %v331
      %v336 = vmul.f32 %v332, 1.442695
      %v337 = vpow.pop %v336
      %v338 = vmul.f32 %v333, 1.442695
      %v339 = vpow.pop %v338
      %v340 = vmul.f32 %v334, 1.442695
      %v341 = vpow.pop %v340
      %v342 = vmul.f32 %v335, 1.442695
      %v343 = vpow.pop %v342
      %v344 = vadd.f32 %v337, 1.0
      %v345 = vadd.f32 %v339, 1.0
      %v346 = vadd.f32 %v341, 1.0
      %v347 = vadd.f32 %v343, 1.0
      %v348 = vrcp.pop %v344
      %v349 = vmul.f32 %v344, %v348
      %v350 = vsub.f32 1.0, %v349
      %v351 = vmul.f32 %v348, %v350
      %v352 = vadd.f32 %v348, %v351
      %vm353 = vweird.f32 %v344
      %vm354 = vweird.f32 %v348
      %vm355 = vmor %vm353, %vm354
      %v356 = vsel %vm355, %v348, %v352
      %v357 = vand.u32 2147483647, %v344
      %vm358 = vcmp.eq.f32.partialorder %v357, 8.507059e+37
      %v359 = vand.u32 %v344, 2147483648
      %v360 = vor.u32 1.1754944e-38, %v359
      %v361 = vsel %vm358, %v360, %v356
      %v362 = vmul.f32 1.0, %v361
      %v363 = vrcp.pop %v345
      %v364 = vmul.f32 %v345, %v363
      %v365 = vsub.f32 1.0, %v364
      %v366 = vmul.f32 %v363, %v365
      %v367 = vadd.f32 %v363, %v366
      %vm368 = vweird.f32 %v345
      %vm369 = vweird.f32 %v363
      %vm370 = vmor %vm368, %vm369
      %v371 = vsel %vm370, %v363, %v367
      %v372 = vand.u32 2147483647, %v345
      %vm373 = vcmp.eq.f32.partialorder %v372, 8.507059e+37
      %v374 = vand.u32 %v345, 2147483648
      %v375 = vor.u32 1.1754944e-38, %v374
      %v376 = vsel %vm373, %v375, %v371
      %v377 = vmul.f32 1.0, %v376
      %v378 = vrcp.pop %v346
      %v379 = vmul.f32 %v346, %v378
      %v380 = vsub.f32 1.0, %v379
      %v381 = vmul.f32 %v378, %v380
      %v382 = vadd.f32 %v378, %v381
      %vm383 = vweird.f32 %v346
      %vm384 = vweird.f32 %v378
      %vm385 = vmor %vm383, %vm384
      %v386 = vsel %vm385, %v378, %v382
      %v387 = vand.u32 2147483647, %v346
      %vm388 = vcmp.eq.f32.partialorder %v387, 8.507059e+37
      %v389 = vand.u32 %v346, 2147483648
      %v390 = vor.u32 1.1754944e-38, %v389
      %v391 = vsel %vm388, %v390, %v386
      %v392 = vmul.f32 1.0, %v391
      %v393 = vrcp.pop %v347
      %v394 = vmul.f32 %v347, %v393
      %v395 = vsub.f32 1.0, %v394
      %v396 = vmul.f32 %v393, %v395
      %v397 = vadd.f32 %v393, %v396
      %vm398 = vweird.f32 %v347
      %vm399 = vweird.f32 %v393
      %vm400 = vmor %vm398, %vm399
      %v401 = vsel %vm400, %v393, %v397
      %v402 = vand.u32 2147483647, %v347
      %vm403 = vcmp.eq.f32.partialorder %v402, 8.507059e+37
      %v404 = vand.u32 %v347, 2147483648
      %v405 = vor.u32 1.1754944e-38, %v404
      %v406 = vsel %vm403, %v405, %v401
      %v407 = vmul.f32 1.0, %v406
      %v408 = vmul.f32 %v328, %v362
      %v409 = vmul.f32 %v329, %v377
      %v410 = vmul.f32 %v330, %v392
      %v411 = vmul.f32 %v331, %v407
      %412 = vst [vmem:[%s235] sm:$0xff] %v408
      %413 = vst [vmem:[%s235 + $0x8] sm:$0xff] %v409
      %414 = vst [vmem:[%s235 + $0x10] sm:$0xff] %v410
      %415 = vst [vmem:[%s235 + $0x18] sm:$0xff] %v411
      %s416 = smul.u32 2, %s20
      %p417 = scmp.lt.s32.totalorder %s19, 1
      %s418 = scalar_select %p417, %s19, 1
      %p419 = scmp.lt.s32.totalorder %s416, 1
      %s420 = scalar_select %p419, %s416, 1
      %s421 = smul.addr %s418, 4
      %s422 = sadd.s32 %s420, %s421
      %s423 = smul.addr %s422, 8
      %s424 = scalar_lea.vmem %s4, %s423
      // Predicated region
      $region37: #{c3x_forward_pallas.9} parent=35 // pred_check
        %p425 = pneg %p138
      $region38: #{c3x_forward_pallas.9} parent=35 // pred_check_branch
        %427 = sbr.rel (%p425) target = $region40
      $region39: #{c3x_forward_pallas.9} parent=35 // pred_region
        %s428 = smul.u32 2, %s20
      $region40: #{c3x_forward_pallas.9} parent=35 // pred_fallthru
        _
    $region36: #{c3x_forward_pallas.9} parent=5 // pred_fallthru
      _
    %p429 = scmp.le.s32.totalorder 2, %s10
    // Predicated region
    $region41: #{c3x_forward_pallas.9} parent=5 // pred_check
      %p430 = pneg %p429
    $region42: #{c3x_forward_pallas.9} parent=5 // pred_check_branch
      %432 = sbr.rel (%p430) target = $region44
    $region43: #{c3x_forward_pallas.9} parent=5 // pred_region
      %s433 = ssub.s32 %s10, 2
      // Predicated region
      $region45: #{c3x_forward_pallas.9} parent=43 // pred_check
        %p434 = pneg %p144
      $region46: #{c3x_forward_pallas.9} parent=43 // pred_check_branch
        %436 = sbr.rel (%p434) target = $region48
      $region47: #{c3x_forward_pallas.9} parent=43 // pred_region
        %s437 = smul.u32 2, %s22
        %p438 = scmp.lt.s32.totalorder %s21, 1
        %s439 = scalar_select %p438, %s21, 1
        %p440 = scmp.lt.s32.totalorder %s437, 1
        %s441 = scalar_select %p440, %s437, 1
        %s442 = smul.addr %s439, 4
        %s443 = sadd.s32 %s441, %s442
        %s444 = smul.addr %s443, 8
        %s445 = scalar_lea.vmem %s4, %s444
      $region48: #{c3x_forward_pallas.9} parent=43 // pred_fallthru
        _
    $region44: #{c3x_forward_pallas.9} parent=5 // pred_fallthru
      _
  $region6: #{c3x_forward_pallas.9} parent=0 // loop_footer
    %s14 = sadd.s32 1, %s10
  $region7: #{c3x_forward_pallas.9} parent=0 // loop_footer_branch
    %9 = sbr.rel target = $region3
  $region8: #{c3x_forward_pallas.9} parent=0 // loop_exit
    _

// kernel: c3x_forward_pallas.12
$region0: #{c3x_forward_pallas.12}
  #allocation0 [shape = 'u32[]', space=smem, size = 0x4, offset = 0x4, fixed_abs, tag = 'smem constant byte address 0x4 - core index']
  #allocation1 [shape = 'u32[72,128]{1,0:T(1,128)}', space=vmem, size = 0x9000, scoped, tag = 'internal scratch']
  %s0 = inlined_call_operand.vmem [shape: f32[2,16,256], index: 0, kind: input, shape index: {}]
  %s1 = inlined_call_operand.vmem [shape: f32[16,16], index: 1, kind: input, shape index: {}]
  %s2 = inlined_call_operand.vmem [shape: f32[16,1], index: 2, kind: input, shape index: {}]
  %s3 = inlined_call_operand.vmem [shape: f32[16,1], index: 3, kind: input, shape index: {}]
  %s4 = inlined_call_operand.vmem [shape: f32[2,16,256], index: 4, kind: output, shape index: {}]
  %s5 = sld [smem:[#allocation0]]
  $region49: #{c3x_forward_pallas.12} parent=0
    _
  %s7 = ssub.s32 1, %s5
  %s8 = scalar_select 0, %s7, %s5
  loop: start=0, step=1, limit=4
  $region2: #{c3x_forward_pallas.12} parent=0 // loop_pre_header
    _
  $region3: #{c3x_forward_pallas.12} parent=0 // loop_header
    %s10 = sphi 0, %s14
    %p11 = scmp.ge.s32.totalorder %s10, 4
    %s17 = sphi 0, %s29
    %s18 = sphi 0, %s25
    %s19 = sphi 0, %s17
    %s20 = sphi 0, %s18
    %s21 = sphi 0, %s19
    %s22 = sphi 0, %s20
    %s34 = sphi 0, %s36
    %s37 = sphi 0, %s34
    %s38 = sphi 0, %s37
    %s54 = sphi 0, %s38
    %s58 = sphi 0, %s58
    %s60 = sphi 0, %s58
    %s61 = sphi 0, %s60
    %s75 = sphi 0, %s61
    %s79 = sphi 0, %s79
    %s81 = sphi 0, %s79
    %s82 = sphi 0, %s81
    %s96 = sphi 0, %s82
    %s100 = sphi 0, %s100
    %s102 = sphi 0, %s100
    %s103 = sphi 0, %s102
    %s117 = sphi 0, %s103
    %s125 = sphi 0, %s127
    %s128 = sphi 0, %s125
    %s129 = sphi 0, %s128
    %s145 = sphi 0, %s129
  $region4: #{c3x_forward_pallas.12} parent=0 // loop_header_branch
    %13 = sbr.rel (%p11) target = $region8
  $region5: #{c3x_forward_pallas.12} parent=0 // loop_body
    %s15 = ssub.s32 %s10, 1
    %s16 = ssub.s32 %s10, 2
    %s23 = sadd.s32 1, %s18
    %p24 = scmp.ge.s32.totalorder %s23, 1
    %s25 = scalar_select %p24, 0, %s23
    %s26 = sadd.s32 1, %s17
    %s27 = scalar_select %p24, %s26, %s17
    %p28 = scmp.ge.s32.totalorder %s27, 2
    %s29 = scalar_select %p28, 0, %s27
    %s30 = ssub.s32 %s17, %s29
    %s31 = ssub.s32 %s18, %s25
    %s32 = sor.u32 %s30, %s31
    %p33 = scmp.eq.s32.totalorder %s32, 0
    %s35 = sadd.s32 %s34, 1
    %s36 = scalar_select %p33, %s34, %s35
    %p39 = pneg %p33
    %p40 = scmp.eq.s32.totalorder %s10, 1
    %p41 = por %p39, %p40
    %p42 = scmp.ne.s32.totalorder %s34, %s37
    %p43 = scmp.eq.s32.totalorder %s10, 0
    %p44 = por %p42, %p43
    %p45 = scmp.ne.s32.totalorder %s34, %s37
    %p46 = scmp.eq.s32.totalorder %s15, 1
    %p47 = por %p45, %p46
    %p48 = scmp.ne.s32.totalorder %s37, %s38
    %p49 = scmp.eq.s32.totalorder %s15, 0
    %p50 = por %p48, %p49
    %p51 = scmp.ne.s32.totalorder %s37, %s38
    %p52 = scmp.eq.s32.totalorder %s16, 1
    %p53 = por %p51, %p52
    %p55 = scmp.ne.s32.totalorder %s38, %s54
    %p56 = scmp.eq.s32.totalorder %s16, 0
    %p57 = por %p55, %p56
    %s59 = sadd.s32 %s58, 1
    %p62 = scmp.eq.s32.totalorder %s10, 1
    %p63 = scmp.ne.s32.totalorder %s58, %s60
    %p64 = scmp.eq.s32.totalorder %s10, 0
    %p65 = por %p63, %p64
    %p66 = scmp.ne.s32.totalorder %s58, %s60
    %p67 = scmp.eq.s32.totalorder %s15, 1
    %p68 = por %p66, %p67
    %p69 = scmp.ne.s32.totalorder %s60, %s61
    %p70 = scmp.eq.s32.totalorder %s15, 0
    %p71 = por %p69, %p70
    %p72 = scmp.ne.s32.totalorder %s60, %s61
    %p73 = scmp.eq.s32.totalorder %s16, 1
    %p74 = por %p72, %p73
    %p76 = scmp.ne.s32.totalorder %s61, %s75
    %p77 = scmp.eq.s32.totalorder %s16, 0
    %p78 = por %p76, %p77
    %s80 = sadd.s32 %s79, 1
    %p83 = scmp.eq.s32.totalorder %s10, 1
    %p84 = scmp.ne.s32.totalorder %s79, %s81
    %p85 = scmp.eq.s32.totalorder %s10, 0
    %p86 = por %p84, %p85
    %p87 = scmp.ne.s32.totalorder %s79, %s81
    %p88 = scmp.eq.s32.totalorder %s15, 1
    %p89 = por %p87, %p88
    %p90 = scmp.ne.s32.totalorder %s81, %s82
    %p91 = scmp.eq.s32.totalorder %s15, 0
    %p92 = por %p90, %p91
    %p93 = scmp.ne.s32.totalorder %s81, %s82
    %p94 = scmp.eq.s32.totalorder %s16, 1
    %p95 = por %p93, %p94
    %p97 = scmp.ne.s32.totalorder %s82, %s96
    %p98 = scmp.eq.s32.totalorder %s16, 0
    %p99 = por %p97, %p98
    %s101 = sadd.s32 %s100, 1
    %p104 = scmp.eq.s32.totalorder %s10, 1
    %p105 = scmp.ne.s32.totalorder %s100, %s102
    %p106 = scmp.eq.s32.totalorder %s10, 0
    %p107 = por %p105, %p106
    %p108 = scmp.ne.s32.totalorder %s100, %s102
    %p109 = scmp.eq.s32.totalorder %s15, 1
    %p110 = por %p108, %p109
    %p111 = scmp.ne.s32.totalorder %s102, %s103
    %p112 = scmp.eq.s32.totalorder %s15, 0
    %p113 = por %p111, %p112
    %p114 = scmp.ne.s32.totalorder %s102, %s103
    %p115 = scmp.eq.s32.totalorder %s16, 1
    %p116 = por %p114, %p115
    %p118 = scmp.ne.s32.totalorder %s103, %s117
    %p119 = scmp.eq.s32.totalorder %s16, 0
    %p120 = por %p118, %p119
    %s121 = ssub.s32 %s17, %s29
    %s122 = ssub.s32 %s18, %s25
    %s123 = sor.u32 %s121, %s122
    %p124 = scmp.eq.s32.totalorder %s123, 0
    %s126 = sadd.s32 %s125, 1
    %s127 = scalar_select %p124, %s125, %s126
    %p130 = pneg %p124
    %p131 = scmp.eq.s32.totalorder %s10, 1
    %p132 = por %p130, %p131
    %p133 = scmp.ne.s32.totalorder %s125, %s128
    %p134 = scmp.eq.s32.totalorder %s10, 0
    %p135 = por %p133, %p134
    %p136 = scmp.ne.s32.totalorder %s125, %s128
    %p137 = scmp.eq.s32.totalorder %s15, 1
    %p138 = por %p136, %p137
    %p139 = scmp.ne.s32.totalorder %s128, %s129
    %p140 = scmp.eq.s32.totalorder %s15, 0
    %p141 = por %p139, %p140
    %p142 = scmp.ne.s32.totalorder %s128, %s129
    %p143 = scmp.eq.s32.totalorder %s16, 1
    %p144 = por %p142, %p143
    %p146 = scmp.ne.s32.totalorder %s129, %s145
    %p147 = scmp.eq.s32.totalorder %s16, 0
    %p148 = por %p146, %p147
    %p149 = scmp.le.s32.totalorder 1, %s10
    %p150 = scmp.lt.s32.totalorder %s10, 3
    %p151 = pnand %p149, %p150
    %p152 = pneg %p151
    // Predicated region
    $region9: #{c3x_forward_pallas.12} parent=5 // pred_check
      _
    $region10: #{c3x_forward_pallas.12} parent=5 // pred_check_branch
      %154 = sbr.rel (%p151) target = $region12
    $region11: #{c3x_forward_pallas.12} parent=5 // pred_region
      %s155 = ssub.s32 %s10, 1
      // Predicated region
      $region13: #{c3x_forward_pallas.12} parent=11 // pred_check
        %p156 = pneg %p71
      $region14: #{c3x_forward_pallas.12} parent=11 // pred_check_branch
        %158 = sbr.rel (%p156) target = $region16
      $region15: #{c3x_forward_pallas.12} parent=11 // pred_region
        _
      $region16: #{c3x_forward_pallas.12} parent=11 // pred_fallthru
        _
      // Predicated region
      $region17: #{c3x_forward_pallas.12} parent=11 // pred_check
        %p159 = pneg %p92
      $region18: #{c3x_forward_pallas.12} parent=11 // pred_check_branch
        %161 = sbr.rel (%p159) target = $region20
      $region19: #{c3x_forward_pallas.12} parent=11 // pred_region
        _
      $region20: #{c3x_forward_pallas.12} parent=11 // pred_fallthru
        _
      // Predicated region
      $region21: #{c3x_forward_pallas.12} parent=11 // pred_check
        %p162 = pneg %p113
      $region22: #{c3x_forward_pallas.12} parent=11 // pred_check_branch
        %164 = sbr.rel (%p162) target = $region24
      $region23: #{c3x_forward_pallas.12} parent=11 // pred_region
        _
      $region24: #{c3x_forward_pallas.12} parent=11 // pred_fallthru
        _
    $region12: #{c3x_forward_pallas.12} parent=5 // pred_fallthru
      _
    %p165 = scmp.lt.s32.totalorder %s10, 2
    // Predicated region
    $region25: #{c3x_forward_pallas.12} parent=5 // pred_check
      %p166 = pneg %p165
    $region26: #{c3x_forward_pallas.12} parent=5 // pred_check_branch
      %168 = sbr.rel (%p166) target = $region28
    $region27: #{c3x_forward_pallas.12} parent=5 // pred_region
      // Predicated region
      $region29: #{c3x_forward_pallas.12} parent=27 // pred_check
        %p169 = pneg %p44
      $region30: #{c3x_forward_pallas.12} parent=27 // pred_check_branch
        %171 = sbr.rel (%p169) target = $region32
      $region31: #{c3x_forward_pallas.12} parent=27 // pred_region
        %s172 = smul.u32 2, %s18
        %p173 = scmp.lt.s32.totalorder %s17, 1
        %s174 = scalar_select %p173, %s17, 1
        %p175 = scmp.lt.s32.totalorder %s172, 1
        %s176 = scalar_select %p175, %s172, 1
        %s177 = smul.addr %s174, 4
        %s178 = sadd.s32 %s176, %s177
        %s179 = smul.addr %s178, 8
        %s180 = scalar_lea.vmem %s0, %s179
        %s181 = smul.u32 2, %s18
      $region32: #{c3x_forward_pallas.12} parent=27 // pred_fallthru
        _
    $region28: #{c3x_forward_pallas.12} parent=5 // pred_fallthru
      _
    %p182 = scmp.le.s32.totalorder 1, %s10
    %p183 = scmp.lt.s32.totalorder %s10, 3
    %p184 = pnand %p182, %p183
    %p185 = pneg %p184
    // Predicated region
    $region33: #{c3x_forward_pallas.12} parent=5 // pred_check
      _
    $region34: #{c3x_forward_pallas.12} parent=5 // pred_check_branch
      %187 = sbr.rel (%p184) target = $region36
    $region35: #{c3x_forward_pallas.12} parent=5 // pred_region
      %s188 = ssub.s32 %s10, 1
      %s189 = smul.u32 2, %s20
      %p190 = scmp.lt.s32.totalorder %s19, 1
      %s191 = scalar_select %p190, %s19, 1
      %p192 = scmp.lt.s32.totalorder %s189, 1
      %s193 = scalar_select %p192, %s189, 1
      %s194 = smul.addr %s191, 4
      %s195 = sadd.s32 %s193, %s194
      %s196 = smul.addr %s195, 8
      %s197 = scalar_lea.vmem %s0, %s196
      %p198 = pneg %p50
      %p199 = pneg %p47
      %p200 = pneg %p71
      %p201 = pneg %p68
      %p202 = pneg %p92
      %p203 = pneg %p89
      %p204 = pneg %p113
      %p205 = pneg %p110
      %p206 = pneg %p141
      %p207 = pneg %p138
      %s208 = smul.u32 2, %s20
      %p209 = scmp.lt.s32.totalorder %s19, 1
      %s210 = scalar_select %p209, %s19, 1
      %p211 = scmp.lt.s32.totalorder %s208, 1
      %s212 = scalar_select %p211, %s208, 1
      %s213 = smul.addr %s210, 4
      %s214 = sadd.s32 %s212, %s213
      %s215 = smul.addr %s214, 8
      %s216 = scalar_lea.vmem %s4, %s215
      %s217 = smul.u32 2, %s20
      %p218 = scmp.lt.s32.totalorder %s19, 1
      %s219 = scalar_select %p218, %s19, 1
      %p220 = scmp.lt.s32.totalorder %s217, 1
      %s221 = scalar_select %p220, %s217, 1
      %s222 = smul.addr %s219, 4
      %s223 = sadd.s32 %s221, %s222
      %s224 = smul.addr %s223, 8
      %s225 = scalar_lea.vmem %s0, %s224
      %s226 = smul.u32 2, %s20
      %s227 = smul.u32 2, %s20
      %p228 = scmp.lt.s32.totalorder %s19, 1
      %s229 = scalar_select %p228, %s19, 1
      %p230 = scmp.lt.s32.totalorder %s227, 1
      %s231 = scalar_select %p230, %s227, 1
      %s232 = smul.addr %s229, 4
      %s233 = sadd.s32 %s231, %s232
      %s234 = smul.addr %s233, 8
      %s235 = scalar_lea.vmem %s4, %s234
      %s236 = smul.u32 2, %s20
      %v237 = vld [vmem:[%s225] sm:$0xff]
      %v238 = vld [vmem:[%s225 + $0x8] sm:$0xff]
      %v239 = vld [vmem:[%s225 + $0x10] sm:$0xff]
      %v240 = vld [vmem:[%s225 + $0x18] sm:$0xff]
      %v241 = vld [vmem:[%s1] sm:$0xff]
      %v242 = vld [vmem:[%s1 + $0x8] sm:$0xff]
      %vm243 = vcmask 130048
      %v245 = vsel %vm243, %v241, 0
      %v248 = vsel %vm243, %v242, 0
      %250 = vmatpush.msra.mxu0 0.0
      %251 = vmatpush.msra.mxu0 0.0
      %252 = vmatpush.msra.mxu0 0.0
      %253 = vmatpush.msra.mxu0 0.0
      %254 = vmatpush.msra.mxu0 0.0
      %255 = vmatpush.msra.mxu0 0.0
      %256 = vmatpush.msra.mxu0 0.0
      %257 = vmatpush.msra.mxu0 0.0
      %258 = vmatpush.msra.mxu0 0.0
      %259 = vmatpush.msra.mxu0 0.0
      %260 = vmatpush.msra.mxu0 0.0
      %261 = vmatpush.msra.mxu0 0.0
      %262 = vmatpush.msra.mxu0 0.0
      %263 = vmatpush.msra.mxu0 0.0
      %264 = vmatpush.msra.mxu0 %v239
      %265 = vmatpush.msra.mxu0 %v237
      %266 = vmatmul.f32.gmra.mxu0 %v245
      %v267 = vpop.f32.mrf.mxu0
      %v268 = vadd.f32 0.0, %v267
      %269 = vmatmul.f32.gmra.mxu0 %v248
      %v270 = vpop.f32.mrf.mxu0
      %v271 = vadd.f32 0.0, %v270
      %272 = vdwg.mxu0
      %273 = vmatpush.msra.mxu0 0.0
      %274 = vmatpush.msra.mxu0 0.0
      %275 = vmatpush.msra.mxu0 0.0
      %276 = vmatpush.msra.mxu0 0.0
      %277 = vmatpush.msra.mxu0 0.0
      %278 = vmatpush.msra.mxu0 0.0
      %279 = vmatpush.msra.mxu0 0.0
      %280 = vmatpush.msra.mxu0 0.0
      %281 = vmatpush.msra.mxu0 0.0
      %282 = vmatpush.msra.mxu0 0.0
      %283 = vmatpush.msra.mxu0 0.0
      %284 = vmatpush.msra.mxu0 0.0
      %285 = vmatpush.msra.mxu0 0.0
      %286 = vmatpush.msra.mxu0 0.0
      %287 = vmatpush.msra.mxu0 %v240
      %288 = vmatpush.msra.mxu0 %v238
      %289 = vmatmul.f32.gmra.mxu0 %v245
      %v290 = vpop.f32.mrf.mxu0
      %v291 = vadd.f32 0.0, %v290
      %292 = vmatmul.f32.gmra.mxu0 %v248
      %v293 = vpop.f32.mrf.mxu0
      %v294 = vadd.f32 0.0, %v293
      %295 = vdwg.mxu0
      %v296 = vld [vmem:[%s2] sm:$0xff]
      %v297 = vld [vmem:[%s2 + $0x8] sm:$0xff]
      %299 = vset.pattern.permute.xlu0 0
      %300 = vperm.xlu0 %299, %v296
      %v301 = vpop.permute.xlu0 %300
      %304 = vset.pattern.permute.xlu0 0
      %305 = vperm.xlu0 %304, %v297
      %v306 = vpop.permute.xlu0 %305
      %v308 = vmul.f32 %v268, %v301
      %v309 = vmul.f32 %v291, %v301
      %v310 = vmul.f32 %v271, %v306
      %v311 = vmul.f32 %v294, %v306
      %v312 = vld [vmem:[%s3] sm:$0xff]
      %v313 = vld [vmem:[%s3 + $0x8] sm:$0xff]
      %315 = vset.pattern.permute.xlu0 0
      %316 = vperm.xlu0 %315, %v312
      %v317 = vpop.permute.xlu0 %316
      %320 = vset.pattern.permute.xlu0 0
      %321 = vperm.xlu0 %320, %v313
      %v322 = vpop.permute.xlu0 %321
      %v324 = vadd.f32 %v308, %v317
      %v325 = vadd.f32 %v309, %v317
      %v326 = vadd.f32 %v310, %v322
      %v327 = vadd.f32 %v311, %v322
      %v328 = vsub.f32 0.0, %v324
      %v329 = vsub.f32 0.0, %v325
      %v330 = vsub.f32 0.0, %v326
      %v331 = vsub.f32 0.0, %v327
      %v332 = vmul.f32 %v328, 1.442695
      %v333 = vpow.pop %v332
      %v334 = vmul.f32 %v329, 1.442695
      %v335 = vpow.pop %v334
      %v336 = vmul.f32 %v330, 1.442695
      %v337 = vpow.pop %v336
      %v338 = vmul.f32 %v331, 1.442695
      %v339 = vpow.pop %v338
      %v340 = vadd.f32 %v333, 1.0
      %v341 = vadd.f32 %v335, 1.0
      %v342 = vadd.f32 %v337, 1.0
      %v343 = vadd.f32 %v339, 1.0
      %v344 = vrcp.pop %v340
      %v345 = vmul.f32 %v340, %v344
      %v346 = vsub.f32 1.0, %v345
      %v347 = vmul.f32 %v344, %v346
      %v348 = vadd.f32 %v344, %v347
      %vm349 = vweird.f32 %v340
      %vm350 = vweird.f32 %v344
      %vm351 = vmor %vm349, %vm350
      %v352 = vsel %vm351, %v344, %v348
      %v353 = vand.u32 2147483647, %v340
      %vm354 = vcmp.eq.f32.partialorder %v353, 8.507059e+37
      %v355 = vand.u32 %v340, 2147483648
      %v356 = vor.u32 1.1754944e-38, %v355
      %v357 = vsel %vm354, %v356, %v352
      %v358 = vmul.f32 1.0, %v357
      %v359 = vrcp.pop %v341
      %v360 = vmul.f32 %v341, %v359
      %v361 = vsub.f32 1.0, %v360
      %v362 = vmul.f32 %v359, %v361
      %v363 = vadd.f32 %v359, %v362
      %vm364 = vweird.f32 %v341
      %vm365 = vweird.f32 %v359
      %vm366 = vmor %vm364, %vm365
      %v367 = vsel %vm366, %v359, %v363
      %v368 = vand.u32 2147483647, %v341
      %vm369 = vcmp.eq.f32.partialorder %v368, 8.507059e+37
      %v370 = vand.u32 %v341, 2147483648
      %v371 = vor.u32 1.1754944e-38, %v370
      %v372 = vsel %vm369, %v371, %v367
      %v373 = vmul.f32 1.0, %v372
      %v374 = vrcp.pop %v342
      %v375 = vmul.f32 %v342, %v374
      %v376 = vsub.f32 1.0, %v375
      %v377 = vmul.f32 %v374, %v376
      %v378 = vadd.f32 %v374, %v377
      %vm379 = vweird.f32 %v342
      %vm380 = vweird.f32 %v374
      %vm381 = vmor %vm379, %vm380
      %v382 = vsel %vm381, %v374, %v378
      %v383 = vand.u32 2147483647, %v342
      %vm384 = vcmp.eq.f32.partialorder %v383, 8.507059e+37
      %v385 = vand.u32 %v342, 2147483648
      %v386 = vor.u32 1.1754944e-38, %v385
      %v387 = vsel %vm384, %v386, %v382
      %v388 = vmul.f32 1.0, %v387
      %v389 = vrcp.pop %v343
      %v390 = vmul.f32 %v343, %v389
      %v391 = vsub.f32 1.0, %v390
      %v392 = vmul.f32 %v389, %v391
      %v393 = vadd.f32 %v389, %v392
      %vm394 = vweird.f32 %v343
      %vm395 = vweird.f32 %v389
      %vm396 = vmor %vm394, %vm395
      %v397 = vsel %vm396, %v389, %v393
      %v398 = vand.u32 2147483647, %v343
      %vm399 = vcmp.eq.f32.partialorder %v398, 8.507059e+37
      %v400 = vand.u32 %v343, 2147483648
      %v401 = vor.u32 1.1754944e-38, %v400
      %v402 = vsel %vm399, %v401, %v397
      %v403 = vmul.f32 1.0, %v402
      %v404 = vmul.f32 %v324, %v358
      %v405 = vmul.f32 %v325, %v373
      %v406 = vmul.f32 %v326, %v388
      %v407 = vmul.f32 %v327, %v403
      %408 = vst [vmem:[%s235] sm:$0xff] %v404
      %409 = vst [vmem:[%s235 + $0x8] sm:$0xff] %v405
      %410 = vst [vmem:[%s235 + $0x10] sm:$0xff] %v406
      %411 = vst [vmem:[%s235 + $0x18] sm:$0xff] %v407
      %s412 = smul.u32 2, %s20
      %p413 = scmp.lt.s32.totalorder %s19, 1
      %s414 = scalar_select %p413, %s19, 1
      %p415 = scmp.lt.s32.totalorder %s412, 1
      %s416 = scalar_select %p415, %s412, 1
      %s417 = smul.addr %s414, 4
      %s418 = sadd.s32 %s416, %s417
      %s419 = smul.addr %s418, 8
      %s420 = scalar_lea.vmem %s4, %s419
      // Predicated region
      $region37: #{c3x_forward_pallas.12} parent=35 // pred_check
        %p421 = pneg %p138
      $region38: #{c3x_forward_pallas.12} parent=35 // pred_check_branch
        %423 = sbr.rel (%p421) target = $region40
      $region39: #{c3x_forward_pallas.12} parent=35 // pred_region
        %s424 = smul.u32 2, %s20
      $region40: #{c3x_forward_pallas.12} parent=35 // pred_fallthru
        _
    $region36: #{c3x_forward_pallas.12} parent=5 // pred_fallthru
      _
    %p425 = scmp.le.s32.totalorder 2, %s10
    // Predicated region
    $region41: #{c3x_forward_pallas.12} parent=5 // pred_check
      %p426 = pneg %p425
    $region42: #{c3x_forward_pallas.12} parent=5 // pred_check_branch
      %428 = sbr.rel (%p426) target = $region44
    $region43: #{c3x_forward_pallas.12} parent=5 // pred_region
      %s429 = ssub.s32 %s10, 2
      // Predicated region
      $region45: #{c3x_forward_pallas.12} parent=43 // pred_check
        %p430 = pneg %p144
      $region46: #{c3x_forward_pallas.12} parent=43 // pred_check_branch
        %432 = sbr.rel (%p430) target = $region48
      $region47: #{c3x_forward_pallas.12} parent=43 // pred_region
        %s433 = smul.u32 2, %s22
        %p434 = scmp.lt.s32.totalorder %s21, 1
        %s435 = scalar_select %p434, %s21, 1
        %p436 = scmp.lt.s32.totalorder %s433, 1
        %s437 = scalar_select %p436, %s433, 1
        %s438 = smul.addr %s435, 4
        %s439 = sadd.s32 %s437, %s438
        %s440 = smul.addr %s439, 8
        %s441 = scalar_lea.vmem %s4, %s440
      $region48: #{c3x_forward_pallas.12} parent=43 // pred_fallthru
        _
    $region44: #{c3x_forward_pallas.12} parent=5 // pred_fallthru
      _
  $region6: #{c3x_forward_pallas.12} parent=0 // loop_footer
    %s14 = sadd.s32 1, %s10
  $region7: #{c3x_forward_pallas.12} parent=0 // loop_footer_branch
    %9 = sbr.rel target = $region3
  $region8: #{c3x_forward_pallas.12} parent=0 // loop_exit
    _

// kernel: c3x_forward_pallas.14
$region0: #{c3x_forward_pallas.14}
  #allocation0 [shape = 'u32[]', space=smem, size = 0x4, offset = 0x4, fixed_abs, tag = 'smem constant byte address 0x4 - core index']
  #allocation1 [shape = 'u32[72,128]{1,0:T(1,128)}', space=vmem, size = 0x9000, scoped, tag = 'internal scratch']
  %s0 = inlined_call_operand.vmem [shape: f32[2,16,256], index: 0, kind: input, shape index: {}]
  %s1 = inlined_call_operand.vmem [shape: f32[2,16,256], index: 1, kind: input, shape index: {}]
  %s2 = inlined_call_operand.vmem [shape: f32[2,32,256], index: 2, kind: output, shape index: {}]
  %s3 = sld [smem:[#allocation0]]
  $region41: #{c3x_forward_pallas.14} parent=0
    _
  %s5 = ssub.s32 1, %s3
  %s6 = scalar_select 0, %s5, %s3
  loop: start=0, step=1, limit=4
  $region2: #{c3x_forward_pallas.14} parent=0 // loop_pre_header
    _
  $region3: #{c3x_forward_pallas.14} parent=0 // loop_header
    %s8 = sphi 0, %s12
    %p9 = scmp.ge.s32.totalorder %s8, 4
    %s15 = sphi 0, %s27
    %s16 = sphi 0, %s23
    %s17 = sphi 0, %s15
    %s18 = sphi 0, %s16
    %s19 = sphi 0, %s17
    %s20 = sphi 0, %s18
    %s32 = sphi 0, %s34
    %s35 = sphi 0, %s32
    %s36 = sphi 0, %s35
    %s52 = sphi 0, %s36
    %s60 = sphi 0, %s62
    %s63 = sphi 0, %s60
    %s64 = sphi 0, %s63
    %s80 = sphi 0, %s64
    %s88 = sphi 0, %s90
    %s91 = sphi 0, %s88
    %s92 = sphi 0, %s91
    %s108 = sphi 0, %s92
  $region4: #{c3x_forward_pallas.14} parent=0 // loop_header_branch
    %11 = sbr.rel (%p9) target = $region8
  $region5: #{c3x_forward_pallas.14} parent=0 // loop_body
    %s13 = ssub.s32 %s8, 1
    %s14 = ssub.s32 %s8, 2
    %s21 = sadd.s32 1, %s16
    %p22 = scmp.ge.s32.totalorder %s21, 1
    %s23 = scalar_select %p22, 0, %s21
    %s24 = sadd.s32 1, %s15
    %s25 = scalar_select %p22, %s24, %s15
    %p26 = scmp.ge.s32.totalorder %s25, 2
    %s27 = scalar_select %p26, 0, %s25
    %s28 = ssub.s32 %s15, %s27
    %s29 = ssub.s32 %s16, %s23
    %s30 = sor.u32 %s28, %s29
    %p31 = scmp.eq.s32.totalorder %s30, 0
    %s33 = sadd.s32 %s32, 1
    %s34 = scalar_select %p31, %s32, %s33
    %p37 = pneg %p31
    %p38 = scmp.eq.s32.totalorder %s8, 1
    %p39 = por %p37, %p38
    %p40 = scmp.ne.s32.totalorder %s32, %s35
    %p41 = scmp.eq.s32.totalorder %s8, 0
    %p42 = por %p40, %p41
    %p43 = scmp.ne.s32.totalorder %s32, %s35
    %p44 = scmp.eq.s32.totalorder %s13, 1
    %p45 = por %p43, %p44
    %p46 = scmp.ne.s32.totalorder %s35, %s36
    %p47 = scmp.eq.s32.totalorder %s13, 0
    %p48 = por %p46, %p47
    %p49 = scmp.ne.s32.totalorder %s35, %s36
    %p50 = scmp.eq.s32.totalorder %s14, 1
    %p51 = por %p49, %p50
    %p53 = scmp.ne.s32.totalorder %s36, %s52
    %p54 = scmp.eq.s32.totalorder %s14, 0
    %p55 = por %p53, %p54
    %s56 = ssub.s32 %s15, %s27
    %s57 = ssub.s32 %s16, %s23
    %s58 = sor.u32 %s56, %s57
    %p59 = scmp.eq.s32.totalorder %s58, 0
    %s61 = sadd.s32 %s60, 1
    %s62 = scalar_select %p59, %s60, %s61
    %p65 = pneg %p59
    %p66 = scmp.eq.s32.totalorder %s8, 1
    %p67 = por %p65, %p66
    %p68 = scmp.ne.s32.totalorder %s60, %s63
    %p69 = scmp.eq.s32.totalorder %s8, 0
    %p70 = por %p68, %p69
    %p71 = scmp.ne.s32.totalorder %s60, %s63
    %p72 = scmp.eq.s32.totalorder %s13, 1
    %p73 = por %p71, %p72
    %p74 = scmp.ne.s32.totalorder %s63, %s64
    %p75 = scmp.eq.s32.totalorder %s13, 0
    %p76 = por %p74, %p75
    %p77 = scmp.ne.s32.totalorder %s63, %s64
    %p78 = scmp.eq.s32.totalorder %s14, 1
    %p79 = por %p77, %p78
    %p81 = scmp.ne.s32.totalorder %s64, %s80
    %p82 = scmp.eq.s32.totalorder %s14, 0
    %p83 = por %p81, %p82
    %s84 = ssub.s32 %s15, %s27
    %s85 = ssub.s32 %s16, %s23
    %s86 = sor.u32 %s84, %s85
    %p87 = scmp.eq.s32.totalorder %s86, 0
    %s89 = sadd.s32 %s88, 1
    %s90 = scalar_select %p87, %s88, %s89
    %p93 = pneg %p87
    %p94 = scmp.eq.s32.totalorder %s8, 1
    %p95 = por %p93, %p94
    %p96 = scmp.ne.s32.totalorder %s88, %s91
    %p97 = scmp.eq.s32.totalorder %s8, 0
    %p98 = por %p96, %p97
    %p99 = scmp.ne.s32.totalorder %s88, %s91
    %p100 = scmp.eq.s32.totalorder %s13, 1
    %p101 = por %p99, %p100
    %p102 = scmp.ne.s32.totalorder %s91, %s92
    %p103 = scmp.eq.s32.totalorder %s13, 0
    %p104 = por %p102, %p103
    %p105 = scmp.ne.s32.totalorder %s91, %s92
    %p106 = scmp.eq.s32.totalorder %s14, 1
    %p107 = por %p105, %p106
    %p109 = scmp.ne.s32.totalorder %s92, %s108
    %p110 = scmp.eq.s32.totalorder %s14, 0
    %p111 = por %p109, %p110
    %p112 = scmp.le.s32.totalorder 1, %s8
    %p113 = scmp.lt.s32.totalorder %s8, 3
    %p114 = pnand %p112, %p113
    %p115 = pneg %p114
    // Predicated region
    $region9: #{c3x_forward_pallas.14} parent=5 // pred_check
      _
    $region10: #{c3x_forward_pallas.14} parent=5 // pred_check_branch
      %117 = sbr.rel (%p114) target = $region12
    $region11: #{c3x_forward_pallas.14} parent=5 // pred_region
      %s118 = ssub.s32 %s8, 1
    $region12: #{c3x_forward_pallas.14} parent=5 // pred_fallthru
      _
    %p119 = scmp.lt.s32.totalorder %s8, 2
    // Predicated region
    $region13: #{c3x_forward_pallas.14} parent=5 // pred_check
      %p120 = pneg %p119
    $region14: #{c3x_forward_pallas.14} parent=5 // pred_check_branch
      %122 = sbr.rel (%p120) target = $region16
    $region15: #{c3x_forward_pallas.14} parent=5 // pred_region
      // Predicated region
      $region17: #{c3x_forward_pallas.14} parent=15 // pred_check
        %p123 = pneg %p42
      $region18: #{c3x_forward_pallas.14} parent=15 // pred_check_branch
        %125 = sbr.rel (%p123) target = $region20
      $region19: #{c3x_forward_pallas.14} parent=15 // pred_region
        %s126 = smul.u32 2, %s16
        %p127 = scmp.lt.s32.totalorder %s15, 1
        %s128 = scalar_select %p127, %s15, 1
        %p129 = scmp.lt.s32.totalorder %s126, 1
        %s130 = scalar_select %p129, %s126, 1
        %s131 = smul.addr %s128, 4
        %s132 = sadd.s32 %s130, %s131
        %s133 = smul.addr %s132, 8
        %s134 = scalar_lea.vmem %s0, %s133
        %s135 = smul.u32 2, %s16
      $region20: #{c3x_forward_pallas.14} parent=15 // pred_fallthru
        _
      // Predicated region
      $region21: #{c3x_forward_pallas.14} parent=15 // pred_check
        %p136 = pneg %p70
      $region22: #{c3x_forward_pallas.14} parent=15 // pred_check_branch
        %138 = sbr.rel (%p136) target = $region24
      $region23: #{c3x_forward_pallas.14} parent=15 // pred_region
        %s139 = smul.u32 2, %s16
        %p140 = scmp.lt.s32.totalorder %s15, 1
        %s141 = scalar_select %p140, %s15, 1
        %p142 = scmp.lt.s32.totalorder %s139, 1
        %s143 = scalar_select %p142, %s139, 1
        %s144 = smul.addr %s141, 4
        %s145 = sadd.s32 %s143, %s144
        %s146 = smul.addr %s145, 8
        %s147 = scalar_lea.vmem %s1, %s146
        %s148 = smul.u32 2, %s16
      $region24: #{c3x_forward_pallas.14} parent=15 // pred_fallthru
        _
    $region16: #{c3x_forward_pallas.14} parent=5 // pred_fallthru
      _
    %p149 = scmp.le.s32.totalorder 1, %s8
    %p150 = scmp.lt.s32.totalorder %s8, 3
    %p151 = pnand %p149, %p150
    %p152 = pneg %p151
    // Predicated region
    $region25: #{c3x_forward_pallas.14} parent=5 // pred_check
      _
    $region26: #{c3x_forward_pallas.14} parent=5 // pred_check_branch
      %154 = sbr.rel (%p151) target = $region28
    $region27: #{c3x_forward_pallas.14} parent=5 // pred_region
      %s155 = ssub.s32 %s8, 1
      %s156 = smul.u32 2, %s18
      %p157 = scmp.lt.s32.totalorder %s17, 1
      %s158 = scalar_select %p157, %s17, 1
      %p159 = scmp.lt.s32.totalorder %s156, 1
      %s160 = scalar_select %p159, %s156, 1
      %s161 = smul.addr %s158, 4
      %s162 = sadd.s32 %s160, %s161
      %s163 = smul.addr %s162, 8
      %s164 = scalar_lea.vmem %s0, %s163
      %p165 = pneg %p48
      %p166 = pneg %p45
      %s167 = smul.u32 2, %s18
      %p168 = scmp.lt.s32.totalorder %s17, 1
      %s169 = scalar_select %p168, %s17, 1
      %p170 = scmp.lt.s32.totalorder %s167, 1
      %s171 = scalar_select %p170, %s167, 1
      %s172 = smul.addr %s169, 4
      %s173 = sadd.s32 %s171, %s172
      %s174 = smul.addr %s173, 8
      %s175 = scalar_lea.vmem %s1, %s174
      %p176 = pneg %p76
      %p177 = pneg %p73
      %p178 = pneg %p104
      %p179 = pneg %p101
      %s180 = smul.u32 2, %s18
      %p181 = scmp.lt.s32.totalorder %s17, 1
      %s182 = scalar_select %p181, %s17, 1
      %p183 = scmp.lt.s32.totalorder %s180, 1
      %s184 = scalar_select %p183, %s180, 1
      %s185 = smul.addr %s182, 8
      %s186 = sadd.s32 %s184, %s185
      %s187 = smul.addr %s186, 8
      %s188 = scalar_lea.vmem %s2, %s187
      %s189 = smul.u32 2, %s18
      %p190 = scmp.lt.s32.totalorder %s17, 1
      %s191 = scalar_select %p190, %s17, 1
      %p192 = scmp.lt.s32.totalorder %s189, 1
      %s193 = scalar_select %p192, %s189, 1
      %s194 = smul.addr %s191, 4
      %s195 = sadd.s32 %s193, %s194
      %s196 = smul.addr %s195, 8
      %s197 = scalar_lea.vmem %s0, %s196
      %s198 = smul.u32 2, %s18
      %s199 = smul.u32 2, %s18
      %p200 = scmp.lt.s32.totalorder %s17, 1
      %s201 = scalar_select %p200, %s17, 1
      %p202 = scmp.lt.s32.totalorder %s199, 1
      %s203 = scalar_select %p202, %s199, 1
      %s204 = smul.addr %s201, 4
      %s205 = sadd.s32 %s203, %s204
      %s206 = smul.addr %s205, 8
      %s207 = scalar_lea.vmem %s1, %s206
      %s208 = smul.u32 2, %s18
      %s209 = smul.u32 2, %s18
      %p210 = scmp.lt.s32.totalorder %s17, 1
      %s211 = scalar_select %p210, %s17, 1
      %p212 = scmp.lt.s32.totalorder %s209, 1
      %s213 = scalar_select %p212, %s209, 1
      %s214 = smul.addr %s211, 8
      %s215 = sadd.s32 %s213, %s214
      %s216 = smul.addr %s215, 8
      %s217 = scalar_lea.vmem %s2, %s216
      %s218 = smul.u32 2, %s18
      %v219 = vld [vmem:[%s197] sm:$0xff]
      %v220 = vld [vmem:[%s197 + $0x8] sm:$0xff]
      %v221 = vld [vmem:[%s197 + $0x10] sm:$0xff]
      %v222 = vld [vmem:[%s197 + $0x18] sm:$0xff]
      %223 = vst [vmem:[%s217] sm:$0xff] %v219
      %224 = vst [vmem:[%s217 + $0x8] sm:$0xff] %v220
      %225 = vst [vmem:[%s217 + $0x10] sm:$0xff] %v221
      %226 = vst [vmem:[%s217 + $0x18] sm:$0xff] %v222
      %v227 = vld [vmem:[%s207] sm:$0xff]
      %v228 = vld [vmem:[%s207 + $0x8] sm:$0xff]
      %v229 = vld [vmem:[%s207 + $0x10] sm:$0xff]
      %v230 = vld [vmem:[%s207 + $0x18] sm:$0xff]
      %231 = vst [vmem:[%s217 + $0x20] sm:$0xff] %v227
      %232 = vst [vmem:[%s217 + $0x28] sm:$0xff] %v228
      %233 = vst [vmem:[%s217 + $0x30] sm:$0xff] %v229
      %234 = vst [vmem:[%s217 + $0x38] sm:$0xff] %v230
      %s235 = smul.u32 2, %s18
      %p236 = scmp.lt.s32.totalorder %s17, 1
      %s237 = scalar_select %p236, %s17, 1
      %p238 = scmp.lt.s32.totalorder %s235, 1
      %s239 = scalar_select %p238, %s235, 1
      %s240 = smul.addr %s237, 8
      %s241 = sadd.s32 %s239, %s240
      %s242 = smul.addr %s241, 8
      %s243 = scalar_lea.vmem %s2, %s242
      // Predicated region
      $region29: #{c3x_forward_pallas.14} parent=27 // pred_check
        %p244 = pneg %p101
      $region30: #{c3x_forward_pallas.14} parent=27 // pred_check_branch
        %246 = sbr.rel (%p244) target = $region32
      $region31: #{c3x_forward_pallas.14} parent=27 // pred_region
        %s247 = smul.u32 2, %s18
      $region32: #{c3x_forward_pallas.14} parent=27 // pred_fallthru
        _
    $region28: #{c3x_forward_pallas.14} parent=5 // pred_fallthru
      _
    %p248 = scmp.le.s32.totalorder 2, %s8
    // Predicated region
    $region33: #{c3x_forward_pallas.14} parent=5 // pred_check
      %p249 = pneg %p248
    $region34: #{c3x_forward_pallas.14} parent=5 // pred_check_branch
      %251 = sbr.rel (%p249) target = $region36
    $region35: #{c3x_forward_pallas.14} parent=5 // pred_region
      %s252 = ssub.s32 %s8, 2
      // Predicated region
      $region37: #{c3x_forward_pallas.14} parent=35 // pred_check
        %p253 = pneg %p107
      $region38: #{c3x_forward_pallas.14} parent=35 // pred_check_branch
        %255 = sbr.rel (%p253) target = $region40
      $region39: #{c3x_forward_pallas.14} parent=35 // pred_region
        %s256 = smul.u32 2, %s20
        %p257 = scmp.lt.s32.totalorder %s19, 1
        %s258 = scalar_select %p257, %s19, 1
        %p259 = scmp.lt.s32.totalorder %s256, 1
        %s260 = scalar_select %p259, %s256, 1
        %s261 = smul.addr %s258, 8
        %s262 = sadd.s32 %s260, %s261
        %s263 = smul.addr %s262, 8
        %s264 = scalar_lea.vmem %s2, %s263
      $region40: #{c3x_forward_pallas.14} parent=35 // pred_fallthru
        _
    $region36: #{c3x_forward_pallas.14} parent=5 // pred_fallthru
      _
  $region6: #{c3x_forward_pallas.14} parent=0 // loop_footer
    %s12 = sadd.s32 1, %s8
  $region7: #{c3x_forward_pallas.14} parent=0 // loop_footer_branch
    %7 = sbr.rel target = $region3
  $region8: #{c3x_forward_pallas.14} parent=0 // loop_exit
    _

// kernel: c3x_forward_pallas.15
$region0: #{c3x_forward_pallas.15}
  #allocation0 [shape = 'u32[]', space=smem, size = 0x4, offset = 0x4, fixed_abs, tag = 'smem constant byte address 0x4 - core index']
  #allocation1 [shape = 'u32[72,128]{1,0:T(1,128)}', space=vmem, size = 0x9000, scoped, tag = 'internal scratch']
  %s0 = inlined_call_operand.vmem [shape: f32[2,32,256], index: 0, kind: input, shape index: {}]
  %s1 = inlined_call_operand.vmem [shape: f32[32,32], index: 1, kind: input, shape index: {}]
  %s2 = inlined_call_operand.vmem [shape: f32[32,1], index: 2, kind: input, shape index: {}]
  %s3 = inlined_call_operand.vmem [shape: f32[32,1], index: 3, kind: input, shape index: {}]
  %s4 = inlined_call_operand.vmem [shape: f32[2,32,256], index: 4, kind: output, shape index: {}]
  %s5 = sld [smem:[#allocation0]]
  $region49: #{c3x_forward_pallas.15} parent=0
    _
  %s7 = ssub.s32 1, %s5
  %s8 = scalar_select 0, %s7, %s5
  loop: start=0, step=1, limit=4
  $region2: #{c3x_forward_pallas.15} parent=0 // loop_pre_header
    _
  $region3: #{c3x_forward_pallas.15} parent=0 // loop_header
    %s10 = sphi 0, %s14
    %p11 = scmp.ge.s32.totalorder %s10, 4
    %s17 = sphi 0, %s29
    %s18 = sphi 0, %s25
    %s19 = sphi 0, %s17
    %s20 = sphi 0, %s18
    %s21 = sphi 0, %s19
    %s22 = sphi 0, %s20
    %s34 = sphi 0, %s36
    %s37 = sphi 0, %s34
    %s38 = sphi 0, %s37
    %s54 = sphi 0, %s38
    %s58 = sphi 0, %s58
    %s60 = sphi 0, %s58
    %s61 = sphi 0, %s60
    %s75 = sphi 0, %s61
    %s79 = sphi 0, %s79
    %s81 = sphi 0, %s79
    %s82 = sphi 0, %s81
    %s96 = sphi 0, %s82
    %s100 = sphi 0, %s100
    %s102 = sphi 0, %s100
    %s103 = sphi 0, %s102
    %s117 = sphi 0, %s103
    %s125 = sphi 0, %s127
    %s128 = sphi 0, %s125
    %s129 = sphi 0, %s128
    %s145 = sphi 0, %s129
  $region4: #{c3x_forward_pallas.15} parent=0 // loop_header_branch
    %13 = sbr.rel (%p11) target = $region8
  $region5: #{c3x_forward_pallas.15} parent=0 // loop_body
    %s15 = ssub.s32 %s10, 1
    %s16 = ssub.s32 %s10, 2
    %s23 = sadd.s32 1, %s18
    %p24 = scmp.ge.s32.totalorder %s23, 1
    %s25 = scalar_select %p24, 0, %s23
    %s26 = sadd.s32 1, %s17
    %s27 = scalar_select %p24, %s26, %s17
    %p28 = scmp.ge.s32.totalorder %s27, 2
    %s29 = scalar_select %p28, 0, %s27
    %s30 = ssub.s32 %s17, %s29
    %s31 = ssub.s32 %s18, %s25
    %s32 = sor.u32 %s30, %s31
    %p33 = scmp.eq.s32.totalorder %s32, 0
    %s35 = sadd.s32 %s34, 1
    %s36 = scalar_select %p33, %s34, %s35
    %p39 = pneg %p33
    %p40 = scmp.eq.s32.totalorder %s10, 1
    %p41 = por %p39, %p40
    %p42 = scmp.ne.s32.totalorder %s34, %s37
    %p43 = scmp.eq.s32.totalorder %s10, 0
    %p44 = por %p42, %p43
    %p45 = scmp.ne.s32.totalorder %s34, %s37
    %p46 = scmp.eq.s32.totalorder %s15, 1
    %p47 = por %p45, %p46
    %p48 = scmp.ne.s32.totalorder %s37, %s38
    %p49 = scmp.eq.s32.totalorder %s15, 0
    %p50 = por %p48, %p49
    %p51 = scmp.ne.s32.totalorder %s37, %s38
    %p52 = scmp.eq.s32.totalorder %s16, 1
    %p53 = por %p51, %p52
    %p55 = scmp.ne.s32.totalorder %s38, %s54
    %p56 = scmp.eq.s32.totalorder %s16, 0
    %p57 = por %p55, %p56
    %s59 = sadd.s32 %s58, 1
    %p62 = scmp.eq.s32.totalorder %s10, 1
    %p63 = scmp.ne.s32.totalorder %s58, %s60
    %p64 = scmp.eq.s32.totalorder %s10, 0
    %p65 = por %p63, %p64
    %p66 = scmp.ne.s32.totalorder %s58, %s60
    %p67 = scmp.eq.s32.totalorder %s15, 1
    %p68 = por %p66, %p67
    %p69 = scmp.ne.s32.totalorder %s60, %s61
    %p70 = scmp.eq.s32.totalorder %s15, 0
    %p71 = por %p69, %p70
    %p72 = scmp.ne.s32.totalorder %s60, %s61
    %p73 = scmp.eq.s32.totalorder %s16, 1
    %p74 = por %p72, %p73
    %p76 = scmp.ne.s32.totalorder %s61, %s75
    %p77 = scmp.eq.s32.totalorder %s16, 0
    %p78 = por %p76, %p77
    %s80 = sadd.s32 %s79, 1
    %p83 = scmp.eq.s32.totalorder %s10, 1
    %p84 = scmp.ne.s32.totalorder %s79, %s81
    %p85 = scmp.eq.s32.totalorder %s10, 0
    %p86 = por %p84, %p85
    %p87 = scmp.ne.s32.totalorder %s79, %s81
    %p88 = scmp.eq.s32.totalorder %s15, 1
    %p89 = por %p87, %p88
    %p90 = scmp.ne.s32.totalorder %s81, %s82
    %p91 = scmp.eq.s32.totalorder %s15, 0
    %p92 = por %p90, %p91
    %p93 = scmp.ne.s32.totalorder %s81, %s82
    %p94 = scmp.eq.s32.totalorder %s16, 1
    %p95 = por %p93, %p94
    %p97 = scmp.ne.s32.totalorder %s82, %s96
    %p98 = scmp.eq.s32.totalorder %s16, 0
    %p99 = por %p97, %p98
    %s101 = sadd.s32 %s100, 1
    %p104 = scmp.eq.s32.totalorder %s10, 1
    %p105 = scmp.ne.s32.totalorder %s100, %s102
    %p106 = scmp.eq.s32.totalorder %s10, 0
    %p107 = por %p105, %p106
    %p108 = scmp.ne.s32.totalorder %s100, %s102
    %p109 = scmp.eq.s32.totalorder %s15, 1
    %p110 = por %p108, %p109
    %p111 = scmp.ne.s32.totalorder %s102, %s103
    %p112 = scmp.eq.s32.totalorder %s15, 0
    %p113 = por %p111, %p112
    %p114 = scmp.ne.s32.totalorder %s102, %s103
    %p115 = scmp.eq.s32.totalorder %s16, 1
    %p116 = por %p114, %p115
    %p118 = scmp.ne.s32.totalorder %s103, %s117
    %p119 = scmp.eq.s32.totalorder %s16, 0
    %p120 = por %p118, %p119
    %s121 = ssub.s32 %s17, %s29
    %s122 = ssub.s32 %s18, %s25
    %s123 = sor.u32 %s121, %s122
    %p124 = scmp.eq.s32.totalorder %s123, 0
    %s126 = sadd.s32 %s125, 1
    %s127 = scalar_select %p124, %s125, %s126
    %p130 = pneg %p124
    %p131 = scmp.eq.s32.totalorder %s10, 1
    %p132 = por %p130, %p131
    %p133 = scmp.ne.s32.totalorder %s125, %s128
    %p134 = scmp.eq.s32.totalorder %s10, 0
    %p135 = por %p133, %p134
    %p136 = scmp.ne.s32.totalorder %s125, %s128
    %p137 = scmp.eq.s32.totalorder %s15, 1
    %p138 = por %p136, %p137
    %p139 = scmp.ne.s32.totalorder %s128, %s129
    %p140 = scmp.eq.s32.totalorder %s15, 0
    %p141 = por %p139, %p140
    %p142 = scmp.ne.s32.totalorder %s128, %s129
    %p143 = scmp.eq.s32.totalorder %s16, 1
    %p144 = por %p142, %p143
    %p146 = scmp.ne.s32.totalorder %s129, %s145
    %p147 = scmp.eq.s32.totalorder %s16, 0
    %p148 = por %p146, %p147
    %p149 = scmp.le.s32.totalorder 1, %s10
    %p150 = scmp.lt.s32.totalorder %s10, 3
    %p151 = pnand %p149, %p150
    %p152 = pneg %p151
    // Predicated region
    $region9: #{c3x_forward_pallas.15} parent=5 // pred_check
      _
    $region10: #{c3x_forward_pallas.15} parent=5 // pred_check_branch
      %154 = sbr.rel (%p151) target = $region12
    $region11: #{c3x_forward_pallas.15} parent=5 // pred_region
      %s155 = ssub.s32 %s10, 1
      // Predicated region
      $region13: #{c3x_forward_pallas.15} parent=11 // pred_check
        %p156 = pneg %p71
      $region14: #{c3x_forward_pallas.15} parent=11 // pred_check_branch
        %158 = sbr.rel (%p156) target = $region16
      $region15: #{c3x_forward_pallas.15} parent=11 // pred_region
        _
      $region16: #{c3x_forward_pallas.15} parent=11 // pred_fallthru
        _
      // Predicated region
      $region17: #{c3x_forward_pallas.15} parent=11 // pred_check
        %p159 = pneg %p92
      $region18: #{c3x_forward_pallas.15} parent=11 // pred_check_branch
        %161 = sbr.rel (%p159) target = $region20
      $region19: #{c3x_forward_pallas.15} parent=11 // pred_region
        _
      $region20: #{c3x_forward_pallas.15} parent=11 // pred_fallthru
        _
      // Predicated region
      $region21: #{c3x_forward_pallas.15} parent=11 // pred_check
        %p162 = pneg %p113
      $region22: #{c3x_forward_pallas.15} parent=11 // pred_check_branch
        %164 = sbr.rel (%p162) target = $region24
      $region23: #{c3x_forward_pallas.15} parent=11 // pred_region
        _
      $region24: #{c3x_forward_pallas.15} parent=11 // pred_fallthru
        _
    $region12: #{c3x_forward_pallas.15} parent=5 // pred_fallthru
      _
    %p165 = scmp.lt.s32.totalorder %s10, 2
    // Predicated region
    $region25: #{c3x_forward_pallas.15} parent=5 // pred_check
      %p166 = pneg %p165
    $region26: #{c3x_forward_pallas.15} parent=5 // pred_check_branch
      %168 = sbr.rel (%p166) target = $region28
    $region27: #{c3x_forward_pallas.15} parent=5 // pred_region
      // Predicated region
      $region29: #{c3x_forward_pallas.15} parent=27 // pred_check
        %p169 = pneg %p44
      $region30: #{c3x_forward_pallas.15} parent=27 // pred_check_branch
        %171 = sbr.rel (%p169) target = $region32
      $region31: #{c3x_forward_pallas.15} parent=27 // pred_region
        %s172 = smul.u32 2, %s18
        %p173 = scmp.lt.s32.totalorder %s17, 1
        %s174 = scalar_select %p173, %s17, 1
        %p175 = scmp.lt.s32.totalorder %s172, 1
        %s176 = scalar_select %p175, %s172, 1
        %s177 = smul.addr %s174, 8
        %s178 = sadd.s32 %s176, %s177
        %s179 = smul.addr %s178, 8
        %s180 = scalar_lea.vmem %s0, %s179
        %s181 = smul.u32 2, %s18
      $region32: #{c3x_forward_pallas.15} parent=27 // pred_fallthru
        _
    $region28: #{c3x_forward_pallas.15} parent=5 // pred_fallthru
      _
    %p182 = scmp.le.s32.totalorder 1, %s10
    %p183 = scmp.lt.s32.totalorder %s10, 3
    %p184 = pnand %p182, %p183
    %p185 = pneg %p184
    // Predicated region
    $region33: #{c3x_forward_pallas.15} parent=5 // pred_check
      _
    $region34: #{c3x_forward_pallas.15} parent=5 // pred_check_branch
      %187 = sbr.rel (%p184) target = $region36
    $region35: #{c3x_forward_pallas.15} parent=5 // pred_region
      %s188 = ssub.s32 %s10, 1
      %s189 = smul.u32 2, %s20
      %p190 = scmp.lt.s32.totalorder %s19, 1
      %s191 = scalar_select %p190, %s19, 1
      %p192 = scmp.lt.s32.totalorder %s189, 1
      %s193 = scalar_select %p192, %s189, 1
      %s194 = smul.addr %s191, 8
      %s195 = sadd.s32 %s193, %s194
      %s196 = smul.addr %s195, 8
      %s197 = scalar_lea.vmem %s0, %s196
      %p198 = pneg %p50
      %p199 = pneg %p47
      %p200 = pneg %p71
      %p201 = pneg %p68
      %p202 = pneg %p92
      %p203 = pneg %p89
      %p204 = pneg %p113
      %p205 = pneg %p110
      %p206 = pneg %p141
      %p207 = pneg %p138
      %s208 = smul.u32 2, %s20
      %p209 = scmp.lt.s32.totalorder %s19, 1
      %s210 = scalar_select %p209, %s19, 1
      %p211 = scmp.lt.s32.totalorder %s208, 1
      %s212 = scalar_select %p211, %s208, 1
      %s213 = smul.addr %s210, 8
      %s214 = sadd.s32 %s212, %s213
      %s215 = smul.addr %s214, 8
      %s216 = scalar_lea.vmem %s4, %s215
      %s217 = smul.u32 2, %s20
      %p218 = scmp.lt.s32.totalorder %s19, 1
      %s219 = scalar_select %p218, %s19, 1
      %p220 = scmp.lt.s32.totalorder %s217, 1
      %s221 = scalar_select %p220, %s217, 1
      %s222 = smul.addr %s219, 8
      %s223 = sadd.s32 %s221, %s222
      %s224 = smul.addr %s223, 8
      %s225 = scalar_lea.vmem %s0, %s224
      %s226 = smul.u32 2, %s20
      %s227 = smul.u32 2, %s20
      %p228 = scmp.lt.s32.totalorder %s19, 1
      %s229 = scalar_select %p228, %s19, 1
      %p230 = scmp.lt.s32.totalorder %s227, 1
      %s231 = scalar_select %p230, %s227, 1
      %s232 = smul.addr %s229, 8
      %s233 = sadd.s32 %s231, %s232
      %s234 = smul.addr %s233, 8
      %s235 = scalar_lea.vmem %s4, %s234
      %s236 = smul.u32 2, %s20
      %v237 = vld [vmem:[%s225] sm:$0xff]
      %v238 = vld [vmem:[%s225 + $0x8] sm:$0xff]
      %v239 = vld [vmem:[%s225 + $0x10] sm:$0xff]
      %v240 = vld [vmem:[%s225 + $0x18] sm:$0xff]
      %v241 = vld [vmem:[%s225 + $0x20] sm:$0xff]
      %v242 = vld [vmem:[%s225 + $0x28] sm:$0xff]
      %v243 = vld [vmem:[%s225 + $0x30] sm:$0xff]
      %v244 = vld [vmem:[%s225 + $0x38] sm:$0xff]
      %v245 = vld [vmem:[%s1] sm:$0xff]
      %v246 = vld [vmem:[%s1 + $0x8] sm:$0xff]
      %v247 = vld [vmem:[%s1 + $0x10] sm:$0xff]
      %v248 = vld [vmem:[%s1 + $0x18] sm:$0xff]
      %vm249 = vcmask 261120
      %v251 = vsel %vm249, %v245, 0
      %v254 = vsel %vm249, %v246, 0
      %v257 = vsel %vm249, %v247, 0
      %v260 = vsel %vm249, %v248, 0
      %262 = vmatpush.msra.mxu0 0.0
      %263 = vmatpush.msra.mxu0 0.0
      %264 = vmatpush.msra.mxu0 0.0
      %265 = vmatpush.msra.mxu0 0.0
      %266 = vmatpush.msra.mxu0 0.0
      %267 = vmatpush.msra.mxu0 0.0
      %268 = vmatpush.msra.mxu0 0.0
      %269 = vmatpush.msra.mxu0 0.0
      %270 = vmatpush.msra.mxu0 0.0
      %271 = vmatpush.msra.mxu0 0.0
      %272 = vmatpush.msra.mxu0 0.0
      %273 = vmatpush.msra.mxu0 0.0
      %274 = vmatpush.msra.mxu0 %v243
      %275 = vmatpush.msra.mxu0 %v241
      %276 = vmatpush.msra.mxu0 %v239
      %277 = vmatpush.msra.mxu0 %v237
      %278 = vmatmul.f32.gmra.mxu0 %v251
      %v279 = vpop.f32.mrf.mxu0
      %v280 = vadd.f32 0.0, %v279
      %281 = vmatmul.f32.gmra.mxu0 %v254
      %v282 = vpop.f32.mrf.mxu0
      %v283 = vadd.f32 0.0, %v282
      %284 = vmatmul.f32.gmra.mxu0 %v257
      %v285 = vpop.f32.mrf.mxu0
      %v286 = vadd.f32 0.0, %v285
      %287 = vmatmul.f32.gmra.mxu0 %v260
      %v288 = vpop.f32.mrf.mxu0
      %v289 = vadd.f32 0.0, %v288
      %290 = vdwg.mxu0
      %291 = vmatpush.msra.mxu0 0.0
      %292 = vmatpush.msra.mxu0 0.0
      %293 = vmatpush.msra.mxu0 0.0
      %294 = vmatpush.msra.mxu0 0.0
      %295 = vmatpush.msra.mxu0 0.0
      %296 = vmatpush.msra.mxu0 0.0
      %297 = vmatpush.msra.mxu0 0.0
      %298 = vmatpush.msra.mxu0 0.0
      %299 = vmatpush.msra.mxu0 0.0
      %300 = vmatpush.msra.mxu0 0.0
      %301 = vmatpush.msra.mxu0 0.0
      %302 = vmatpush.msra.mxu0 0.0
      %303 = vmatpush.msra.mxu0 %v244
      %304 = vmatpush.msra.mxu0 %v242
      %305 = vmatpush.msra.mxu0 %v240
      %306 = vmatpush.msra.mxu0 %v238
      %307 = vmatmul.f32.gmra.mxu0 %v251
      %v308 = vpop.f32.mrf.mxu0
      %v309 = vadd.f32 0.0, %v308
      %310 = vmatmul.f32.gmra.mxu0 %v254
      %v311 = vpop.f32.mrf.mxu0
      %v312 = vadd.f32 0.0, %v311
      %313 = vmatmul.f32.gmra.mxu0 %v257
      %v314 = vpop.f32.mrf.mxu0
      %v315 = vadd.f32 0.0, %v314
      %316 = vmatmul.f32.gmra.mxu0 %v260
      %v317 = vpop.f32.mrf.mxu0
      %v318 = vadd.f32 0.0, %v317
      %319 = vdwg.mxu0
      %v320 = vld [vmem:[%s2] sm:$0xff]
      %v321 = vld [vmem:[%s2 + $0x8] sm:$0xff]
      %v322 = vld [vmem:[%s2 + $0x10] sm:$0xff]
      %v323 = vld [vmem:[%s2 + $0x18] sm:$0xff]
      %325 = vset.pattern.permute.xlu0 0
      %326 = vperm.xlu0 %325, %v320
      %v327 = vpop.permute.xlu0 %326
      %330 = vset.pattern.permute.xlu0 0
      %331 = vperm.xlu0 %330, %v321
      %v332 = vpop.permute.xlu0 %331
      %335 = vset.pattern.permute.xlu0 0
      %336 = vperm.xlu0 %335, %v322
      %v337 = vpop.permute.xlu0 %336
      %340 = vset.pattern.permute.xlu0 0
      %341 = vperm.xlu0 %340, %v323
      %v342 = vpop.permute.xlu0 %341
      %v344 = vmul.f32 %v280, %v327
      %v345 = vmul.f32 %v309, %v327
      %v346 = vmul.f32 %v283, %v332
      %v347 = vmul.f32 %v312, %v332
      %v348 = vmul.f32 %v286, %v337
      %v349 = vmul.f32 %v315, %v337
      %v350 = vmul.f32 %v289, %v342
      %v351 = vmul.f32 %v318, %v342
      %v352 = vld [vmem:[%s3] sm:$0xff]
      %v353 = vld [vmem:[%s3 + $0x8] sm:$0xff]
      %v354 = vld [vmem:[%s3 + $0x10] sm:$0xff]
      %v355 = vld [vmem:[%s3 + $0x18] sm:$0xff]
      %357 = vset.pattern.permute.xlu0 0
      %358 = vperm.xlu0 %357, %v352
      %v359 = vpop.permute.xlu0 %358
      %362 = vset.pattern.permute.xlu0 0
      %363 = vperm.xlu0 %362, %v353
      %v364 = vpop.permute.xlu0 %363
      %367 = vset.pattern.permute.xlu0 0
      %368 = vperm.xlu0 %367, %v354
      %v369 = vpop.permute.xlu0 %368
      %372 = vset.pattern.permute.xlu0 0
      %373 = vperm.xlu0 %372, %v355
      %v374 = vpop.permute.xlu0 %373
      %v376 = vadd.f32 %v344, %v359
      %v377 = vadd.f32 %v345, %v359
      %v378 = vadd.f32 %v346, %v364
      %v379 = vadd.f32 %v347, %v364
      %v380 = vadd.f32 %v348, %v369
      %v381 = vadd.f32 %v349, %v369
      %v382 = vadd.f32 %v350, %v374
      %v383 = vadd.f32 %v351, %v374
      %v384 = vsub.f32 0.0, %v376
      %v385 = vsub.f32 0.0, %v377
      %v386 = vsub.f32 0.0, %v378
      %v387 = vsub.f32 0.0, %v379
      %v388 = vsub.f32 0.0, %v380
      %v389 = vsub.f32 0.0, %v381
      %v390 = vsub.f32 0.0, %v382
      %v391 = vsub.f32 0.0, %v383
      %v392 = vmul.f32 %v384, 1.442695
      %v393 = vpow.pop %v392
      %v394 = vmul.f32 %v385, 1.442695
      %v395 = vpow.pop %v394
      %v396 = vmul.f32 %v386, 1.442695
      %v397 = vpow.pop %v396
      %v398 = vmul.f32 %v387, 1.442695
      %v399 = vpow.pop %v398
      %v400 = vmul.f32 %v388, 1.442695
      %v401 = vpow.pop %v400
      %v402 = vmul.f32 %v389, 1.442695
      %v403 = vpow.pop %v402
      %v404 = vmul.f32 %v390, 1.442695
      %v405 = vpow.pop %v404
      %v406 = vmul.f32 %v391, 1.442695
      %v407 = vpow.pop %v406
      %v408 = vadd.f32 %v393, 1.0
      %v409 = vadd.f32 %v395, 1.0
      %v410 = vadd.f32 %v397, 1.0
      %v411 = vadd.f32 %v399, 1.0
      %v412 = vadd.f32 %v401, 1.0
      %v413 = vadd.f32 %v403, 1.0
      %v414 = vadd.f32 %v405, 1.0
      %v415 = vadd.f32 %v407, 1.0
      %v416 = vrcp.pop %v408
      %v417 = vmul.f32 %v408, %v416
      %v418 = vsub.f32 1.0, %v417
      %v419 = vmul.f32 %v416, %v418
      %v420 = vadd.f32 %v416, %v419
      %vm421 = vweird.f32 %v408
      %vm422 = vweird.f32 %v416
      %vm423 = vmor %vm421, %vm422
      %v424 = vsel %vm423, %v416, %v420
      %v425 = vand.u32 2147483647, %v408
      %vm426 = vcmp.eq.f32.partialorder %v425, 8.507059e+37
      %v427 = vand.u32 %v408, 2147483648
      %v428 = vor.u32 1.1754944e-38, %v427
      %v429 = vsel %vm426, %v428, %v424
      %v430 = vmul.f32 1.0, %v429
      %v431 = vrcp.pop %v409
      %v432 = vmul.f32 %v409, %v431
      %v433 = vsub.f32 1.0, %v432
      %v434 = vmul.f32 %v431, %v433
      %v435 = vadd.f32 %v431, %v434
      %vm436 = vweird.f32 %v409
      %vm437 = vweird.f32 %v431
      %vm438 = vmor %vm436, %vm437
      %v439 = vsel %vm438, %v431, %v435
      %v440 = vand.u32 2147483647, %v409
      %vm441 = vcmp.eq.f32.partialorder %v440, 8.507059e+37
      %v442 = vand.u32 %v409, 2147483648
      %v443 = vor.u32 1.1754944e-38, %v442
      %v444 = vsel %vm441, %v443, %v439
      %v445 = vmul.f32 1.0, %v444
      %v446 = vrcp.pop %v410
      %v447 = vmul.f32 %v410, %v446
      %v448 = vsub.f32 1.0, %v447
      %v449 = vmul.f32 %v446, %v448
      %v450 = vadd.f32 %v446, %v449
      %vm451 = vweird.f32 %v410
      %vm452 = vweird.f32 %v446
      %vm453 = vmor %vm451, %vm452
      %v454 = vsel %vm453, %v446, %v450
      %v455 = vand.u32 2147483647, %v410
      %vm456 = vcmp.eq.f32.partialorder %v455, 8.507059e+37
      %v457 = vand.u32 %v410, 2147483648
      %v458 = vor.u32 1.1754944e-38, %v457
      %v459 = vsel %vm456, %v458, %v454
      %v460 = vmul.f32 1.0, %v459
      %v461 = vrcp.pop %v411
      %v462 = vmul.f32 %v411, %v461
      %v463 = vsub.f32 1.0, %v462
      %v464 = vmul.f32 %v461, %v463
      %v465 = vadd.f32 %v461, %v464
      %vm466 = vweird.f32 %v411
      %vm467 = vweird.f32 %v461
      %vm468 = vmor %vm466, %vm467
      %v469 = vsel %vm468, %v461, %v465
      %v470 = vand.u32 2147483647, %v411
      %vm471 = vcmp.eq.f32.partialorder %v470, 8.507059e+37
      %v472 = vand.u32 %v411, 2147483648
      %v473 = vor.u32 1.1754944e-38, %v472
      %v474 = vsel %vm471, %v473, %v469
      %v475 = vmul.f32 1.0, %v474
      %v476 = vrcp.pop %v412
      %v477 = vmul.f32 %v412, %v476
      %v478 = vsub.f32 1.0, %v477
      %v479 = vmul.f32 %v476, %v478
      %v480 = vadd.f32 %v476, %v479
      %vm481 = vweird.f32 %v412
      %vm482 = vweird.f32 %v476
      %vm483 = vmor %vm481, %vm482
      %v484 = vsel %vm483, %v476, %v480
      %v485 = vand.u32 2147483647, %v412
      %vm486 = vcmp.eq.f32.partialorder %v485, 8.507059e+37
      %v487 = vand.u32 %v412, 2147483648
      %v488 = vor.u32 1.1754944e-38, %v487
      %v489 = vsel %vm486, %v488, %v484
      %v490 = vmul.f32 1.0, %v489
      %v491 = vrcp.pop %v413
      %v492 = vmul.f32 %v413, %v491
      %v493 = vsub.f32 1.0, %v492
      %v494 = vmul.f32 %v491, %v493
      %v495 = vadd.f32 %v491, %v494
      %vm496 = vweird.f32 %v413
      %vm497 = vweird.f32 %v491
      %vm498 = vmor %vm496, %vm497
      %v499 = vsel %vm498, %v491, %v495
      %v500 = vand.u32 2147483647, %v413
      %vm501 = vcmp.eq.f32.partialorder %v500, 8.507059e+37
      %v502 = vand.u32 %v413, 2147483648
      %v503 = vor.u32 1.1754944e-38, %v502
      %v504 = vsel %vm501, %v503, %v499
      %v505 = vmul.f32 1.0, %v504
      %v506 = vrcp.pop %v414
      %v507 = vmul.f32 %v414, %v506
      %v508 = vsub.f32 1.0, %v507
      %v509 = vmul.f32 %v506, %v508
      %v510 = vadd.f32 %v506, %v509
      %vm511 = vweird.f32 %v414
      %vm512 = vweird.f32 %v506
      %vm513 = vmor %vm511, %vm512
      %v514 = vsel %vm513, %v506, %v510
      %v515 = vand.u32 2147483647, %v414
      %vm516 = vcmp.eq.f32.partialorder %v515, 8.507059e+37
      %v517 = vand.u32 %v414, 2147483648
      %v518 = vor.u32 1.1754944e-38, %v517
      %v519 = vsel %vm516, %v518, %v514
      %v520 = vmul.f32 1.0, %v519
      %v521 = vrcp.pop %v415
      %v522 = vmul.f32 %v415, %v521
      %v523 = vsub.f32 1.0, %v522
      %v524 = vmul.f32 %v521, %v523
      %v525 = vadd.f32 %v521, %v524
      %vm526 = vweird.f32 %v415
      %vm527 = vweird.f32 %v521
      %vm528 = vmor %vm526, %vm527
      %v529 = vsel %vm528, %v521, %v525
      %v530 = vand.u32 2147483647, %v415
      %vm531 = vcmp.eq.f32.partialorder %v530, 8.507059e+37
      %v532 = vand.u32 %v415, 2147483648
      %v533 = vor.u32 1.1754944e-38, %v532
      %v534 = vsel %vm531, %v533, %v529
      %v535 = vmul.f32 1.0, %v534
      %v536 = vmul.f32 %v376, %v430
      %v537 = vmul.f32 %v377, %v445
      %v538 = vmul.f32 %v378, %v460
      %v539 = vmul.f32 %v379, %v475
      %v540 = vmul.f32 %v380, %v490
      %v541 = vmul.f32 %v381, %v505
      %v542 = vmul.f32 %v382, %v520
      %v543 = vmul.f32 %v383, %v535
      %544 = vst [vmem:[%s235] sm:$0xff] %v536
      %545 = vst [vmem:[%s235 + $0x8] sm:$0xff] %v537
      %546 = vst [vmem:[%s235 + $0x10] sm:$0xff] %v538
      %547 = vst [vmem:[%s235 + $0x18] sm:$0xff] %v539
      %548 = vst [vmem:[%s235 + $0x20] sm:$0xff] %v540
      %549 = vst [vmem:[%s235 + $0x28] sm:$0xff] %v541
      %550 = vst [vmem:[%s235 + $0x30] sm:$0xff] %v542
      %551 = vst [vmem:[%s235 + $0x38] sm:$0xff] %v543
      %s552 = smul.u32 2, %s20
      %p553 = scmp.lt.s32.totalorder %s19, 1
      %s554 = scalar_select %p553, %s19, 1
      %p555 = scmp.lt.s32.totalorder %s552, 1
      %s556 = scalar_select %p555, %s552, 1
      %s557 = smul.addr %s554, 8
      %s558 = sadd.s32 %s556, %s557
      %s559 = smul.addr %s558, 8
      %s560 = scalar_lea.vmem %s4, %s559
      // Predicated region
      $region37: #{c3x_forward_pallas.15} parent=35 // pred_check
        %p561 = pneg %p138
      $region38: #{c3x_forward_pallas.15} parent=35 // pred_check_branch
        %563 = sbr.rel (%p561) target = $region40
      $region39: #{c3x_forward_pallas.15} parent=35 // pred_region
        %s564 = smul.u32 2, %s20
      $region40: #{c3x_forward_pallas.15} parent=35 // pred_fallthru
        _
    $region36: #{c3x_forward_pallas.15} parent=5 // pred_fallthru
      _
    %p565 = scmp.le.s32.totalorder 2, %s10
    // Predicated region
    $region41: #{c3x_forward_pallas.15} parent=5 // pred_check
      %p566 = pneg %p565
    $region42: #{c3x_forward_pallas.15} parent=5 // pred_check_branch
      %568 = sbr.rel (%p566) target = $region44
    $region43: #{c3x_forward_pallas.15} parent=5 // pred_region
      %s569 = ssub.s32 %s10, 2
      // Predicated region
      $region45: #{c3x_forward_pallas.15} parent=43 // pred_check
        %p570 = pneg %p144
      $region46: #{c3x_forward_pallas.15} parent=43 // pred_check_branch
        %572 = sbr.rel (%p570) target = $region48
      $region47: #{c3x_forward_pallas.15} parent=43 // pred_region
        %s573 = smul.u32 2, %s22
        %p574 = scmp.lt.s32.totalorder %s21, 1
        %s575 = scalar_select %p574, %s21, 1
        %p576 = scmp.lt.s32.totalorder %s573, 1
        %s577 = scalar_select %p576, %s573, 1
        %s578 = smul.addr %s575, 8
        %s579 = sadd.s32 %s577, %s578
        %s580 = smul.addr %s579, 8
        %s581 = scalar_lea.vmem %s4, %s580
      $region48: #{c3x_forward_pallas.15} parent=43 // pred_fallthru
        _
    $region44: #{c3x_forward_pallas.15} parent=5 // pred_fallthru
      _
  $region6: #{c3x_forward_pallas.15} parent=0 // loop_footer
    %s14 = sadd.s32 1, %s10
  $region7: #{c3x_forward_pallas.15} parent=0 // loop_footer_branch
    %9 = sbr.rel target = $region3
  $region8: #{c3x_forward_pallas.15} parent=0 // loop_exit
    _

</llo_original>
